<compile_context>
chip_gen: v5e
topology: v5e:2x2
jax: 0.10.0
libtpu: 0.0.40
codegen_flags: <defaults>
</compile_context>

<pallas_src>
import math

import jax
import jax.numpy as jnp
from jax.experimental import pallas as pl
from jax.experimental.pallas import tpu as pltpu


# ---------------------------------------------------------------------------
# Pallas kernels
# ---------------------------------------------------------------------------
def _stats_kernel(x_ref, w_ref, stats_ref):
    """Pass 1: partial BatchNorm statistics of y = x @ w for one row tile.

    x_ref:     (tm, K)    tile of flattened input image rows
    w_ref:     (K, L)     block-diagonal deconv weight (resident in VMEM)
    stats_ref: (1, 2, L)  per-tile [column sum, column sum-of-squares]
    """
    y = jnp.dot(x_ref[...], w_ref[...], preferred_element_type=jnp.float32)
    s = jnp.sum(y, axis=0, keepdims=True)          # (1, L)
    ss = jnp.sum(y * y, axis=0, keepdims=True)     # (1, L)
    stats_ref[...] = jnp.concatenate([s, ss], axis=0)[None, :, :]


def _bn_relu_kernel(x_ref, w_ref, scale_ref, bias_ref, o_ref):
    """Pass 2: recompute y = x @ w (K tiny -> ~free) and apply BN affine + ReLU.

    Recomputing the matmul avoids storing / reloading the full y tensor in HBM.
    scale/bias are the folded BatchNorm terms: scale = 1/sqrt(var+eps),
    bias = -mean*scale, so the elementwise path is a single FMA + max.
    """
    y = jnp.dot(x_ref[...], w_ref[...], preferred_element_type=jnp.float32)
    o_ref[...] = jnp.maximum(y * scale_ref[...] + bias_ref[...], 0.0)


# ---------------------------------------------------------------------------
# Host-side helpers
# ---------------------------------------------------------------------------
def _row_tile(num_rows, bytes_per_row, budget_bytes=2 * 1024 * 1024):
    """Largest row tile that divides num_rows, is a multiple of 8 (or the full
    extent) and keeps one block under `budget_bytes` -> no padding, no masked tail."""
    cap = max(1, budget_bytes // max(1, bytes_per_row))
    if num_rows <= cap:
        return num_rows
    best = 0
    cand = 8
    while cand <= cap:
        if num_rows % cand == 0:
            best = cand
        cand += 8
    return best if best > 0 else num_rows


def _deconv2x2_s2_bn_relu(x_nhwc, w, *, eps=1e-5):
    """One up_pooling block.

    x_nhwc: (N, H, W, Cin) f32
    w:      (Cin, Cout, 2, 2) f32  (PyTorch ConvTranspose2d weight layout)
    returns (N, 2H, 2W, Cout) f32
    """
    N, H, W, Cin = x_nhwc.shape
    Cout = w.shape[1]
    K = W * Cin                 # contraction: one full input image row
    L = 4 * W * Cout            # lanes: (kh, w, kw, co) == two full output rows
    NH = N * H

    # Free (contiguous) reshape: rows are (n, h), lanes are (w, ci).
    x2d = x_nhwc.reshape(NH, K).astype(jnp.float32)

    # Block-diagonal weight: Wb[w*Cin+ci, kh*2WC + (2w+kw)*C + co] = w[ci, co, kh, kw]
    t = jnp.transpose(w.astype(jnp.float32), (0, 2, 3, 1))     # (Cin, kh, kw, Cout)
    eye = jnp.eye(W, dtype=jnp.float32)
    wbig = jnp.einsum("wp,iabo->wiapbo", eye, t).reshape(K, L)

    # Row tiling (no padding: tile always divides NH).
    tm = _row_tile(NH, (K + L) * 4)
    n_tiles = NH // tm
    grid = (n_tiles,)
    cparams = pltpu.CompilerParams(
        dimension_semantics=("parallel",),
        vmem_limit_bytes=32 * 1024 * 1024,
    )

    # ---- pass 1: per-tile partial stats (no serial accumulator -> parallel grid)
    partial = pl.pallas_call(
        _stats_kernel,
        out_shape=jax.ShapeDtypeStruct((n_tiles, 2, L), jnp.float32),
        grid_spec=pltpu.PrefetchScalarGridSpec(
            num_scalar_prefetch=0,
            grid=grid,
            in_specs=[pl.BlockSpec((tm, K), lambda i: (i, 0)),
                      pl.BlockSpec((K, L), lambda i: (0, 0))],
            out_specs=pl.BlockSpec((1, 2, L), lambda i: (i, 0, 0)),
        ),
        compiler_params=cparams,
    )(x2d, wbig)

    stats = jnp.sum(partial, axis=0)                           # (2, L)
    cnt = jnp.float32(4 * N * H * W)                           # = N * 2H * 2W
    ch_sum = stats[0].reshape(2, W, 2, Cout).sum(axis=(0, 1, 2))
    ch_ssq = stats[1].reshape(2, W, 2, Cout).sum(axis=(0, 1, 2))
    mean = ch_sum / cnt
    # Biased variance (PyTorch BN training forward). E[y^2]-E[y]^2 can go slightly
    # negative from cancellation -> clamp before rsqrt.
    var = jnp.maximum(ch_ssq / cnt - mean * mean, 0.0)
    invstd = jax.lax.rsqrt(var + eps)
    scale_cols = jnp.tile(invstd, 4 * W)[None, :]              # (1, L), co innermost
    bias_cols = jnp.tile(-mean * invstd, 4 * W)[None, :]       # (1, L)

    # ---- pass 2: recompute matmul + BN affine + ReLU, lane-dense output write
    o2d = pl.pallas_call(
        _bn_relu_kernel,
        out_shape=jax.ShapeDtypeStruct((NH, L), jnp.float32),
        grid_spec=pltpu.PrefetchScalarGridSpec(
            num_scalar_prefetch=0,
            grid=grid,
            in_specs=[pl.BlockSpec((tm, K), lambda i: (i, 0)),
                      pl.BlockSpec((K, L), lambda i: (0, 0)),
                      pl.BlockSpec((1, L), lambda i: (0, 0)),
                      pl.BlockSpec((1, L), lambda i: (0, 0))],
            out_specs=pl.BlockSpec((tm, L), lambda i: (i, 0)),
        ),
        compiler_params=cparams,
    )(x2d, wbig, scale_cols, bias_cols)

    # (NH, L) memory order is exactly (n, h, kh, 2w+kw, co) -> free reshape to NHWC.
    return o2d.reshape(N, 2 * H, 2 * W, Cout)


@jax.jit
def _upsampler_forward(x_nchw, weights):
    x = jnp.transpose(x_nchw, (0, 2, 3, 1)).astype(jnp.float32)  # NCHW -> NHWC
    for w in weights:
        x = _deconv2x2_s2_bn_relu(x, w)
    return jnp.transpose(x, (0, 3, 1, 2))                        # NHWC -> NCHW


class Upsampler:
    """JAX/Pallas port of the PyTorch Upsampler (kernel_size=2, stride=2, padding=0)."""

    def __init__(self, scale, in_channels, out_channels,
                 kernel_size=2, stride=2, padding=0, key=None):
        assert kernel_size == 2 and stride == 2 and padding == 0, \
            "Pallas port specialized to the module defaults (k=2, s=2, p=0)."
        self.scale = scale
        self.in_channels = in_channels

        chain = []
        ci = in_channels
        if scale > 1:
            for _ in range(scale - 1):
                chain.append((ci, out_channels))          # uplayers blocks
                ci = out_channels
            chain.append((out_channels, in_channels))     # upout
        else:
            chain.append((in_channels, in_channels))      # upout only

        key = jax.random.PRNGKey(0) if key is None else key
        self.weights = []
        for (cin, cout) in chain:
            key, sub = jax.random.split(key)
            # kaiming_normal_(mode='fan_out', relu) on (Cin, Cout, kH, kW):
            # PyTorch fan_out = size(0)*kH*kW = Cin*4 ; std = sqrt(2 / fan_out)
            std = math.sqrt(2.0 / (cin * kernel_size * kernel_size))
            w = std * jax.random.normal(sub, (cin, cout, kernel_size, kernel_size),
                                        dtype=jnp.float32)
            self.weights.append(w)
        # TODO(synk): BatchNorm running_mean/running_var buffer updates are stateful
        # side effects and do not affect the training-mode forward output; not modeled.

    def __call__(self, x_nchw):
        return _upsampler_forward(x_nchw, tuple(self.weights))


# ---------------------------------------------------------------------------
# Pure-JAX reference (for a correctness smoke test)
# ---------------------------------------------------------------------------
def _ref_forward(x_nchw, weights, eps=1e-5):
    x = jnp.transpose(x_nchw, (0, 2, 3, 1)).astype(jnp.float32)
    for w in weights:
        N, H, W, Cin = x.shape
        Cout = w.shape[1]
        y = jnp.einsum("nhwi,ioab->nhawbo", x, w,
                       precision=jax.lax.Precision.HIGHEST)
        y = y.reshape(N, 2 * H, 2 * W, Cout)
        mean = y.mean(axis=(0, 1, 2))
        var = y.var(axis=(0, 1, 2))
        x = jnp.maximum((y - mean) * jax.lax.rsqrt(var + eps), 0.0)
    return jnp.transpose(x, (0, 3, 1, 2))


if __name__ == "__main__":
    key = jax.random.PRNGKey(0)
    # NCHW input, mirroring PyTorch: batch=2, channels=4, spatial=16x16
    x = jax.random.normal(key, (2, 4, 16, 16), dtype=jnp.float32)

    model = Upsampler(scale=2, in_channels=4, out_channels=8)
    out = jax.block_until_ready(model(x))

    # scale=2 -> two up_pooling blocks -> spatial x4, channels back to in_channels
    assert out.shape == (2, 4, 64, 64), out.shape
    assert jnp.all(jnp.isfinite(out)), "non-finite output"
    assert jnp.all(out >= 0.0), "ReLU violated"

    ref = jax.block_until_ready(_ref_forward(x, tuple(model.weights)))
    max_err = float(jnp.max(jnp.abs(out - ref)))
    assert max_err < 5e-2, f"mismatch vs reference: max abs err = {max_err}"

    print("KERNEL_OK")
</pallas_src>

<mosaic_0001>
module attributes {stable_mosaic.version = 11 : i64} {
  func.func @_stats_kernel(%arg0: i32, %arg1: memref<32x64xf32, #tpu.memory_space<vmem>>, %arg2: memref<64x512xf32, #tpu.memory_space<vmem>>, %arg3: memref<1x2x512xf32, #tpu.memory_space<vmem>>) attributes {dimension_semantics = [#tpu.dimension_semantics<parallel>], iteration_bounds = array<i64: 1>, scalar_prefetch = 0 : i64, scratch_operands = 0 : i64, tpu.core_type = #tpu.core_type<tc>, window_params = [{transform_indices = @transform_0, window_bounds = array<i64: 32, 64>}, {pipeline_mode = #tpu.pipeline_mode<synchronous>, transform_indices = @transform_1, window_bounds = array<i64: 64, 512>}, {transform_indices = @transform_2, window_bounds = array<i64: 1, 2, 512>}]} {
    %c0 = arith.constant 0 : index
    %c0_0 = arith.constant 0 : index
    %0 = vector.load %arg1[%c0, %c0_0] : memref<32x64xf32, #tpu.memory_space<vmem>>, vector<32x64xf32>
    %c0_1 = arith.constant 0 : index
    %c0_2 = arith.constant 0 : index
    %1 = vector.load %arg2[%c0_1, %c0_2] : memref<64x512xf32, #tpu.memory_space<vmem>>, vector<64x512xf32>
    %cst = arith.constant dense<0.000000e+00> : vector<32x512xf32>
    %2 = tpu.matmul %0, %1, %cst {dimension_numbers = #tpu.dot_dimension_numbers<[1], [0], [0], [1], [0, 0, 1, 1], [], []>} : vector<32x64xf32>, vector<64x512xf32>, vector<32x512xf32> -> vector<32x512xf32>
    %cst_3 = arith.constant dense<0.000000e+00> : vector<512xf32>
    %3 = vector.multi_reduction <add>, %2, %cst_3 [0] : vector<32x512xf32> to vector<512xf32>
    %4 = vector.shape_cast %3 : vector<512xf32> to vector<1x512xf32>
    %5 = arith.mulf %2, %2 : vector<32x512xf32>
    %cst_4 = arith.constant dense<0.000000e+00> : vector<512xf32>
    %6 = vector.multi_reduction <add>, %5, %cst_4 [0] : vector<32x512xf32> to vector<512xf32>
    %7 = vector.shape_cast %6 : vector<512xf32> to vector<1x512xf32>
    %8 = tpu.concatenate %4, %7 in 0 : vector<1x512xf32>, vector<1x512xf32> -> vector<2x512xf32>
    %9 = vector.shape_cast %8 : vector<2x512xf32> to vector<1x2x512xf32>
    %c0_5 = arith.constant 0 : index
    %c0_6 = arith.constant 0 : index
    %c0_7 = arith.constant 0 : index
    %10 = vector.load %arg3[%c0_5, %c0_6, %c0_7] : memref<1x2x512xf32, #tpu.memory_space<vmem>>, vector<1x2x512xf32>
    tpu.vector_store %arg3[%c0_5, %c0_6, %c0_7], %9 {strides = array<i32>} : memref<1x2x512xf32, #tpu.memory_space<vmem>>, vector<1x2x512xf32>,
    return
  }
  func.func @transform_0(%arg0: i32) -> (i32, i32) {
    %c0_i32 = arith.constant 0 : i32
    %c0_i32_0 = arith.constant 0 : i32
    return %arg0, %c0_i32 : i32, i32
  }
  func.func @transform_1(%arg0: i32) -> (i32, i32) {
    %c0_i32 = arith.constant 0 : i32
    %c0_i32_0 = arith.constant 0 : i32
    %c0_i32_1 = arith.constant 0 : i32
    return %c0_i32, %c0_i32_0 : i32, i32
  }
  func.func @transform_2(%arg0: i32) -> (i32, i32, i32) {
    %c0_i32 = arith.constant 0 : i32
    %c0_i32_0 = arith.constant 0 : i32
    %c0_i32_1 = arith.constant 0 : i32
    return %arg0, %c0_i32, %c0_i32_0 : i32, i32, i32
  }
}

module attributes {stable_mosaic.version = 11 : i64} {
  func.func @_bn_relu_kernel(%arg0: i32, %arg1: memref<32x64xf32, #tpu.memory_space<vmem>>, %arg2: memref<64x512xf32, #tpu.memory_space<vmem>>, %arg3: memref<1x512xf32, #tpu.memory_space<vmem>>, %arg4: memref<1x512xf32, #tpu.memory_space<vmem>>, %arg5: memref<32x512xf32, #tpu.memory_space<vmem>>) attributes {dimension_semantics = [#tpu.dimension_semantics<parallel>], iteration_bounds = array<i64: 1>, scalar_prefetch = 0 : i64, scratch_operands = 0 : i64, tpu.core_type = #tpu.core_type<tc>, window_params = [{transform_indices = @transform_0, window_bounds = array<i64: 32, 64>}, {pipeline_mode = #tpu.pipeline_mode<synchronous>, transform_indices = @transform_1, window_bounds = array<i64: 64, 512>}, {pipeline_mode = #tpu.pipeline_mode<synchronous>, transform_indices = @transform_2, window_bounds = array<i64: 1, 512>}, {pipeline_mode = #tpu.pipeline_mode<synchronous>, transform_indices = @transform_3, window_bounds = array<i64: 1, 512>}, {transform_indices = @transform_4, window_bounds = array<i64: 32, 512>}]} {
    %c0 = arith.constant 0 : index
    %c0_0 = arith.constant 0 : index
    %0 = vector.load %arg1[%c0, %c0_0] : memref<32x64xf32, #tpu.memory_space<vmem>>, vector<32x64xf32>
    %c0_1 = arith.constant 0 : index
    %c0_2 = arith.constant 0 : index
    %1 = vector.load %arg2[%c0_1, %c0_2] : memref<64x512xf32, #tpu.memory_space<vmem>>, vector<64x512xf32>
    %cst = arith.constant dense<0.000000e+00> : vector<32x512xf32>
    %2 = tpu.matmul %0, %1, %cst {dimension_numbers = #tpu.dot_dimension_numbers<[1], [0], [0], [1], [0, 0, 1, 1], [], []>} : vector<32x64xf32>, vector<64x512xf32>, vector<32x512xf32> -> vector<32x512xf32>
    %c0_3 = arith.constant 0 : index
    %c0_4 = arith.constant 0 : index
    %3 = vector.load %arg3[%c0_3, %c0_4] : memref<1x512xf32, #tpu.memory_space<vmem>>, vector<1x512xf32>
    %4 = vector.broadcast %3 : vector<1x512xf32> to vector<32x512xf32>
    %5 = arith.mulf %2, %4 : vector<32x512xf32>
    %c0_5 = arith.constant 0 : index
    %c0_6 = arith.constant 0 : index
    %6 = vector.load %arg4[%c0_5, %c0_6] : memref<1x512xf32, #tpu.memory_space<vmem>>, vector<1x512xf32>
    %7 = vector.broadcast %6 : vector<1x512xf32> to vector<32x512xf32>
    %8 = arith.addf %5, %7 : vector<32x512xf32>
    %cst_7 = arith.constant 0.000000e+00 : f32
    %9 = vector.broadcast %cst_7 : f32 to vector<32x512xf32>
    %10 = arith.maximumf %8, %9 : vector<32x512xf32>
    %c0_8 = arith.constant 0 : index
    %c0_9 = arith.constant 0 : index
    %11 = vector.load %arg5[%c0_8, %c0_9] : memref<32x512xf32, #tpu.memory_space<vmem>>, vector<32x512xf32>
    tpu.vector_store %arg5[%c0_8, %c0_9], %10 {strides = array<i32>} : memref<32x512xf32, #tpu.memory_space<vmem>>, vector<32x512xf32>,
    return
  }
  func.func @transform_0(%arg0: i32) -> (i32, i32) {
    %c0_i32 = arith.constant 0 : i32
    %c0_i32_0 = arith.constant 0 : i32
    return %arg0, %c0_i32 : i32, i32
  }
  func.func @transform_1(%arg0: i32) -> (i32, i32) {
    %c0_i32 = arith.constant 0 : i32
    %c0_i32_0 = arith.constant 0 : i32
    %c0_i32_1 = arith.constant 0 : i32
    return %c0_i32, %c0_i32_0 : i32, i32
  }
  func.func @transform_2(%arg0: i32) -> (i32, i32) {
    %c0_i32 = arith.constant 0 : i32
    %c0_i32_0 = arith.constant 0 : i32
    %c0_i32_1 = arith.constant 0 : i32
    return %c0_i32, %c0_i32_0 : i32, i32
  }
  func.func @transform_3(%arg0: i32) -> (i32, i32) {
    %c0_i32 = arith.constant 0 : i32
    %c0_i32_0 = arith.constant 0 : i32
    %c0_i32_1 = arith.constant 0 : i32
    return %c0_i32, %c0_i32_0 : i32, i32
  }
  func.func @transform_4(%arg0: i32) -> (i32, i32) {
    %c0_i32 = arith.constant 0 : i32
    %c0_i32_0 = arith.constant 0 : i32
    return %arg0, %c0_i32 : i32, i32
  }
}

module attributes {stable_mosaic.version = 11 : i64} {
  func.func @_stats_kernel(%arg0: i32, %arg1: memref<64x256xf32, #tpu.memory_space<vmem>>, %arg2: memref<256x512xf32, #tpu.memory_space<vmem>>, %arg3: memref<1x2x512xf32, #tpu.memory_space<vmem>>) attributes {dimension_semantics = [#tpu.dimension_semantics<parallel>], iteration_bounds = array<i64: 1>, scalar_prefetch = 0 : i64, scratch_operands = 0 : i64, tpu.core_type = #tpu.core_type<tc>, window_params = [{transform_indices = @transform_0, window_bounds = array<i64: 64, 256>}, {pipeline_mode = #tpu.pipeline_mode<synchronous>, transform_indices = @transform_1, window_bounds = array<i64: 256, 512>}, {transform_indices = @transform_2, window_bounds = array<i64: 1, 2, 512>}]} {
    %c0 = arith.constant 0 : index
    %c0_0 = arith.constant 0 : index
    %0 = vector.load %arg1[%c0, %c0_0] : memref<64x256xf32, #tpu.memory_space<vmem>>, vector<64x256xf32>
    %c0_1 = arith.constant 0 : index
    %c0_2 = arith.constant 0 : index
    %1 = vector.load %arg2[%c0_1, %c0_2] : memref<256x512xf32, #tpu.memory_space<vmem>>, vector<256x512xf32>
    %cst = arith.constant dense<0.000000e+00> : vector<64x512xf32>
    %2 = tpu.matmul %0, %1, %cst {dimension_numbers = #tpu.dot_dimension_numbers<[1], [0], [0], [1], [0, 0, 1, 1], [], []>} : vector<64x256xf32>, vector<256x512xf32>, vector<64x512xf32> -> vector<64x512xf32>
    %cst_3 = arith.constant dense<0.000000e+00> : vector<512xf32>
    %3 = vector.multi_reduction <add>, %2, %cst_3 [0] : vector<64x512xf32> to vector<512xf32>
    %4 = vector.shape_cast %3 : vector<512xf32> to vector<1x512xf32>
    %5 = arith.mulf %2, %2 : vector<64x512xf32>
    %cst_4 = arith.constant dense<0.000000e+00> : vector<512xf32>
    %6 = vector.multi_reduction <add>, %5, %cst_4 [0] : vector<64x512xf32> to vector<512xf32>
    %7 = vector.shape_cast %6 : vector<512xf32> to vector<1x512xf32>
    %8 = tpu.concatenate %4, %7 in 0 : vector<1x512xf32>, vector<1x512xf32> -> vector<2x512xf32>
    %9 = vector.shape_cast %8 : vector<2x512xf32> to vector<1x2x512xf32>
    %c0_5 = arith.constant 0 : index
    %c0_6 = arith.constant 0 : index
    %c0_7 = arith.constant 0 : index
    %10 = vector.load %arg3[%c0_5, %c0_6, %c0_7] : memref<1x2x512xf32, #tpu.memory_space<vmem>>, vector<1x2x512xf32>
    tpu.vector_store %arg3[%c0_5, %c0_6, %c0_7], %9 {strides = array<i32>} : memref<1x2x512xf32, #tpu.memory_space<vmem>>, vector<1x2x512xf32>,
    return
  }
  func.func @transform_0(%arg0: i32) -> (i32, i32) {
    %c0_i32 = arith.constant 0 : i32
    %c0_i32_0 = arith.constant 0 : i32
    return %arg0, %c0_i32 : i32, i32
  }
  func.func @transform_1(%arg0: i32) -> (i32, i32) {
    %c0_i32 = arith.constant 0 : i32
    %c0_i32_0 = arith.constant 0 : i32
    %c0_i32_1 = arith.constant 0 : i32
    return %c0_i32, %c0_i32_0 : i32, i32
  }
  func.func @transform_2(%arg0: i32) -> (i32, i32, i32) {
    %c0_i32 = arith.constant 0 : i32
    %c0_i32_0 = arith.constant 0 : i32
    %c0_i32_1 = arith.constant 0 : i32
    return %arg0, %c0_i32, %c0_i32_0 : i32, i32, i32
  }
}

module attributes {stable_mosaic.version = 11 : i64} {
  func.func @_bn_relu_kernel(%arg0: i32, %arg1: memref<64x256xf32, #tpu.memory_space<vmem>>, %arg2: memref<256x512xf32, #tpu.memory_space<vmem>>, %arg3: memref<1x512xf32, #tpu.memory_space<vmem>>, %arg4: memref<1x512xf32, #tpu.memory_space<vmem>>, %arg5: memref<64x512xf32, #tpu.memory_space<vmem>>) attributes {dimension_semantics = [#tpu.dimension_semantics<parallel>], iteration_bounds = array<i64: 1>, scalar_prefetch = 0 : i64, scratch_operands = 0 : i64, tpu.core_type = #tpu.core_type<tc>, window_params = [{transform_indices = @transform_0, window_bounds = array<i64: 64, 256>}, {pipeline_mode = #tpu.pipeline_mode<synchronous>, transform_indices = @transform_1, window_bounds = array<i64: 256, 512>}, {pipeline_mode = #tpu.pipeline_mode<synchronous>, transform_indices = @transform_2, window_bounds = array<i64: 1, 512>}, {pipeline_mode = #tpu.pipeline_mode<synchronous>, transform_indices = @transform_3, window_bounds = array<i64: 1, 512>}, {transform_indices = @transform_4, window_bounds = array<i64: 64, 512>}]} {
    %c0 = arith.constant 0 : index
    %c0_0 = arith.constant 0 : index
    %0 = vector.load %arg1[%c0, %c0_0] : memref<64x256xf32, #tpu.memory_space<vmem>>, vector<64x256xf32>
    %c0_1 = arith.constant 0 : index
    %c0_2 = arith.constant 0 : index
    %1 = vector.load %arg2[%c0_1, %c0_2] : memref<256x512xf32, #tpu.memory_space<vmem>>, vector<256x512xf32>
    %cst = arith.constant dense<0.000000e+00> : vector<64x512xf32>
    %2 = tpu.matmul %0, %1, %cst {dimension_numbers = #tpu.dot_dimension_numbers<[1], [0], [0], [1], [0, 0, 1, 1], [], []>} : vector<64x256xf32>, vector<256x512xf32>, vector<64x512xf32> -> vector<64x512xf32>
    %c0_3 = arith.constant 0 : index
    %c0_4 = arith.constant 0 : index
    %3 = vector.load %arg3[%c0_3, %c0_4] : memref<1x512xf32, #tpu.memory_space<vmem>>, vector<1x512xf32>
    %4 = vector.broadcast %3 : vector<1x512xf32> to vector<64x512xf32>
    %5 = arith.mulf %2, %4 : vector<64x512xf32>
    %c0_5 = arith.constant 0 : index
    %c0_6 = arith.constant 0 : index
    %6 = vector.load %arg4[%c0_5, %c0_6] : memref<1x512xf32, #tpu.memory_space<vmem>>, vector<1x512xf32>
    %7 = vector.broadcast %6 : vector<1x512xf32> to vector<64x512xf32>
    %8 = arith.addf %5, %7 : vector<64x512xf32>
    %cst_7 = arith.constant 0.000000e+00 : f32
    %9 = vector.broadcast %cst_7 : f32 to vector<64x512xf32>
    %10 = arith.maximumf %8, %9 : vector<64x512xf32>
    %c0_8 = arith.constant 0 : index
    %c0_9 = arith.constant 0 : index
    %11 = vector.load %arg5[%c0_8, %c0_9] : memref<64x512xf32, #tpu.memory_space<vmem>>, vector<64x512xf32>
    tpu.vector_store %arg5[%c0_8, %c0_9], %10 {strides = array<i32>} : memref<64x512xf32, #tpu.memory_space<vmem>>, vector<64x512xf32>,
    return
  }
  func.func @transform_0(%arg0: i32) -> (i32, i32) {
    %c0_i32 = arith.constant 0 : i32
    %c0_i32_0 = arith.constant 0 : i32
    return %arg0, %c0_i32 : i32, i32
  }
  func.func @transform_1(%arg0: i32) -> (i32, i32) {
    %c0_i32 = arith.constant 0 : i32
    %c0_i32_0 = arith.constant 0 : i32
    %c0_i32_1 = arith.constant 0 : i32
    return %c0_i32, %c0_i32_0 : i32, i32
  }
  func.func @transform_2(%arg0: i32) -> (i32, i32) {
    %c0_i32 = arith.constant 0 : i32
    %c0_i32_0 = arith.constant 0 : i32
    %c0_i32_1 = arith.constant 0 : i32
    return %c0_i32, %c0_i32_0 : i32, i32
  }
  func.func @transform_3(%arg0: i32) -> (i32, i32) {
    %c0_i32 = arith.constant 0 : i32
    %c0_i32_0 = arith.constant 0 : i32
    %c0_i32_1 = arith.constant 0 : i32
    return %c0_i32, %c0_i32_0 : i32, i32
  }
  func.func @transform_4(%arg0: i32) -> (i32, i32) {
    %c0_i32 = arith.constant 0 : i32
    %c0_i32_0 = arith.constant 0 : i32
    return %arg0, %c0_i32 : i32, i32
  }
}

</mosaic_0001>

<llo_original>
// kernel: squeeze.4
$region0: #{squeeze.4}
  %s0 = inlined_call_operand.vmem [shape: f32[512], index: 0, kind: input, shape index: {}]
  %s1 = inlined_call_operand.vmem [shape: f32[2,16,2,8], index: 1, kind: output, shape index: {}]
  $region1: #{squeeze.4} parent=0
    #allocation0 [shape = 'u8[131072]{0}', space=vmem, size = 0x20000, scoped, tag = 'scoped mem for output reshape']
    #allocation1 [shape = 'u8[4096]{0}', space=vmem, size = 0x1000, scoped, tag = 'scoped mem for input reshape']
    %s3 = ssub.s32 16, 1
    %v4 = vld [vmem:[%s0] sm:%s3]
    %5 = vst [vmem:[#allocation1] sm:%s3] %v4
    %v6 = vld [vmem:[#allocation1] sm:$0xf]
    %vm7 = vcmask 64512
    %8 = vst.msk [vmem:[#allocation0] sm:$0x1] %vm7, %v6
    %s9 = scalar_lea.vmem [#allocation0], 63
    %10 = vst.msk [vmem:[%s9] sm:$0x2] %vm7, %v6
    %s11 = scalar_lea.vmem [#allocation0], 126
    %12 = vst.msk [vmem:[%s11] sm:$0x4] %vm7, %v6
    %s13 = scalar_lea.vmem [#allocation0], 189
    %14 = vst.msk [vmem:[%s13] sm:$0x8] %vm7, %v6
    %v15 = vld [vmem:[#allocation1] sm:$0xf]
    %16 = vrot.lane.b32.xlu0 %v15, 120
    %v17 = vpop.permute.xlu0 %16
    %vm18 = vcmask 64512
    %s19 = scalar_lea.vmem [#allocation0], 1
    %20 = vst.msk [vmem:[%s19] sm:$0x1] %vm18, %v17
    %s21 = scalar_lea.vmem [#allocation0], 64
    %22 = vst.msk [vmem:[%s21] sm:$0x2] %vm18, %v17
    %s23 = scalar_lea.vmem [#allocation0], 127
    %24 = vst.msk [vmem:[%s23] sm:$0x4] %vm18, %v17
    %s25 = scalar_lea.vmem [#allocation0], 190
    %26 = vst.msk [vmem:[%s25] sm:$0x8] %vm18, %v17
    %v27 = vld [vmem:[#allocation1] sm:$0xf]
    %28 = vrot.lane.b32.xlu0 %v27, 112
    %v29 = vpop.permute.xlu0 %28
    %vm30 = vcmask 64512
    %s31 = scalar_lea.vmem [#allocation0], 8
    %32 = vst.msk [vmem:[%s31] sm:$0x1] %vm30, %v29
    %s33 = scalar_lea.vmem [#allocation0], 71
    %34 = vst.msk [vmem:[%s33] sm:$0x2] %vm30, %v29
    %s35 = scalar_lea.vmem [#allocation0], 134
    %36 = vst.msk [vmem:[%s35] sm:$0x4] %vm30, %v29
    %s37 = scalar_lea.vmem [#allocation0], 197
    %38 = vst.msk [vmem:[%s37] sm:$0x8] %vm30, %v29
    %v39 = vld [vmem:[#allocation1] sm:$0xf]
    %40 = vrot.lane.b32.xlu0 %v39, 104
    %v41 = vpop.permute.xlu0 %40
    %vm42 = vcmask 64512
    %s43 = scalar_lea.vmem [#allocation0], 9
    %44 = vst.msk [vmem:[%s43] sm:$0x1] %vm42, %v41
    %s45 = scalar_lea.vmem [#allocation0], 72
    %46 = vst.msk [vmem:[%s45] sm:$0x2] %vm42, %v41
    %s47 = scalar_lea.vmem [#allocation0], 135
    %48 = vst.msk [vmem:[%s47] sm:$0x4] %vm42, %v41
    %s49 = scalar_lea.vmem [#allocation0], 198
    %50 = vst.msk [vmem:[%s49] sm:$0x8] %vm42, %v41
    %v51 = vld [vmem:[#allocation1] sm:$0xf]
    %52 = vrot.lane.b32.xlu0 %v51, 96
    %v53 = vpop.permute.xlu0 %52
    %vm54 = vcmask 64512
    %s55 = scalar_lea.vmem [#allocation0], 16
    %56 = vst.msk [vmem:[%s55] sm:$0x1] %vm54, %v53
    %s57 = scalar_lea.vmem [#allocation0], 79
    %58 = vst.msk [vmem:[%s57] sm:$0x2] %vm54, %v53
    %s59 = scalar_lea.vmem [#allocation0], 142
    %60 = vst.msk [vmem:[%s59] sm:$0x4] %vm54, %v53
    %s61 = scalar_lea.vmem [#allocation0], 205
    %62 = vst.msk [vmem:[%s61] sm:$0x8] %vm54, %v53
    %v63 = vld [vmem:[#allocation1] sm:$0xf]
    %64 = vrot.lane.b32.xlu0 %v63, 88
    %v65 = vpop.permute.xlu0 %64
    %vm66 = vcmask 64512
    %s67 = scalar_lea.vmem [#allocation0], 17
    %68 = vst.msk [vmem:[%s67] sm:$0x1] %vm66, %v65
    %s69 = scalar_lea.vmem [#allocation0], 80
    %70 = vst.msk [vmem:[%s69] sm:$0x2] %vm66, %v65
    %s71 = scalar_lea.vmem [#allocation0], 143
    %72 = vst.msk [vmem:[%s71] sm:$0x4] %vm66, %v65
    %s73 = scalar_lea.vmem [#allocation0], 206
    %74 = vst.msk [vmem:[%s73] sm:$0x8] %vm66, %v65
    %v75 = vld [vmem:[#allocation1] sm:$0xf]
    %76 = vrot.lane.b32.xlu0 %v75, 80
    %v77 = vpop.permute.xlu0 %76
    %vm78 = vcmask 64512
    %s79 = scalar_lea.vmem [#allocation0], 24
    %80 = vst.msk [vmem:[%s79] sm:$0x1] %vm78, %v77
    %s81 = scalar_lea.vmem [#allocation0], 87
    %82 = vst.msk [vmem:[%s81] sm:$0x2] %vm78, %v77
    %s83 = scalar_lea.vmem [#allocation0], 150
    %84 = vst.msk [vmem:[%s83] sm:$0x4] %vm78, %v77
    %s85 = scalar_lea.vmem [#allocation0], 213
    %86 = vst.msk [vmem:[%s85] sm:$0x8] %vm78, %v77
    %v87 = vld [vmem:[#allocation1] sm:$0xf]
    %88 = vrot.lane.b32.xlu0 %v87, 72
    %v89 = vpop.permute.xlu0 %88
    %vm90 = vcmask 64512
    %s91 = scalar_lea.vmem [#allocation0], 25
    %92 = vst.msk [vmem:[%s91] sm:$0x1] %vm90, %v89
    %s93 = scalar_lea.vmem [#allocation0], 88
    %94 = vst.msk [vmem:[%s93] sm:$0x2] %vm90, %v89
    %s95 = scalar_lea.vmem [#allocation0], 151
    %96 = vst.msk [vmem:[%s95] sm:$0x4] %vm90, %v89
    %s97 = scalar_lea.vmem [#allocation0], 214
    %98 = vst.msk [vmem:[%s97] sm:$0x8] %vm90, %v89
    %v99 = vld [vmem:[#allocation1] sm:$0xf]
    %100 = vrot.lane.b32.xlu0 %v99, 64
    %v101 = vpop.permute.xlu0 %100
    %vm102 = vcmask 64512
    %s103 = scalar_lea.vmem [#allocation0], 32
    %104 = vst.msk [vmem:[%s103] sm:$0x1] %vm102, %v101
    %s105 = scalar_lea.vmem [#allocation0], 95
    %106 = vst.msk [vmem:[%s105] sm:$0x2] %vm102, %v101
    %s107 = scalar_lea.vmem [#allocation0], 158
    %108 = vst.msk [vmem:[%s107] sm:$0x4] %vm102, %v101
    %s109 = scalar_lea.vmem [#allocation0], 221
    %110 = vst.msk [vmem:[%s109] sm:$0x8] %vm102, %v101
    %v111 = vld [vmem:[#allocation1] sm:$0xf]
    %112 = vrot.lane.b32.xlu0 %v111, 56
    %v113 = vpop.permute.xlu0 %112
    %vm114 = vcmask 64512
    %s115 = scalar_lea.vmem [#allocation0], 33
    %116 = vst.msk [vmem:[%s115] sm:$0x1] %vm114, %v113
    %s117 = scalar_lea.vmem [#allocation0], 96
    %118 = vst.msk [vmem:[%s117] sm:$0x2] %vm114, %v113
    %s119 = scalar_lea.vmem [#allocation0], 159
    %120 = vst.msk [vmem:[%s119] sm:$0x4] %vm114, %v113
    %s121 = scalar_lea.vmem [#allocation0], 222
    %122 = vst.msk [vmem:[%s121] sm:$0x8] %vm114, %v113
    %v123 = vld [vmem:[#allocation1] sm:$0xf]
    %124 = vrot.lane.b32.xlu0 %v123, 48
    %v125 = vpop.permute.xlu0 %124
    %vm126 = vcmask 64512
    %s127 = scalar_lea.vmem [#allocation0], 40
    %128 = vst.msk [vmem:[%s127] sm:$0x1] %vm126, %v125
    %s129 = scalar_lea.vmem [#allocation0], 103
    %130 = vst.msk [vmem:[%s129] sm:$0x2] %vm126, %v125
    %s131 = scalar_lea.vmem [#allocation0], 166
    %132 = vst.msk [vmem:[%s131] sm:$0x4] %vm126, %v125
    %s133 = scalar_lea.vmem [#allocation0], 229
    %134 = vst.msk [vmem:[%s133] sm:$0x8] %vm126, %v125
    %v135 = vld [vmem:[#allocation1] sm:$0xf]
    %136 = vrot.lane.b32.xlu0 %v135, 40
    %v137 = vpop.permute.xlu0 %136
    %vm138 = vcmask 64512
    %s139 = scalar_lea.vmem [#allocation0], 41
    %140 = vst.msk [vmem:[%s139] sm:$0x1] %vm138, %v137
    %s141 = scalar_lea.vmem [#allocation0], 104
    %142 = vst.msk [vmem:[%s141] sm:$0x2] %vm138, %v137
    %s143 = scalar_lea.vmem [#allocation0], 167
    %144 = vst.msk [vmem:[%s143] sm:$0x4] %vm138, %v137
    %s145 = scalar_lea.vmem [#allocation0], 230
    %146 = vst.msk [vmem:[%s145] sm:$0x8] %vm138, %v137
    %v147 = vld [vmem:[#allocation1] sm:$0xf]
    %148 = vrot.lane.b32.xlu0 %v147, 32
    %v149 = vpop.permute.xlu0 %148
    %vm150 = vcmask 64512
    %s151 = scalar_lea.vmem [#allocation0], 48
    %152 = vst.msk [vmem:[%s151] sm:$0x1] %vm150, %v149
    %s153 = scalar_lea.vmem [#allocation0], 111
    %154 = vst.msk [vmem:[%s153] sm:$0x2] %vm150, %v149
    %s155 = scalar_lea.vmem [#allocation0], 174
    %156 = vst.msk [vmem:[%s155] sm:$0x4] %vm150, %v149
    %s157 = scalar_lea.vmem [#allocation0], 237
    %158 = vst.msk [vmem:[%s157] sm:$0x8] %vm150, %v149
    %v159 = vld [vmem:[#allocation1] sm:$0xf]
    %160 = vrot.lane.b32.xlu0 %v159, 24
    %v161 = vpop.permute.xlu0 %160
    %vm162 = vcmask 64512
    %s163 = scalar_lea.vmem [#allocation0], 49
    %164 = vst.msk [vmem:[%s163] sm:$0x1] %vm162, %v161
    %s165 = scalar_lea.vmem [#allocation0], 112
    %166 = vst.msk [vmem:[%s165] sm:$0x2] %vm162, %v161
    %s167 = scalar_lea.vmem [#allocation0], 175
    %168 = vst.msk [vmem:[%s167] sm:$0x4] %vm162, %v161
    %s169 = scalar_lea.vmem [#allocation0], 238
    %170 = vst.msk [vmem:[%s169] sm:$0x8] %vm162, %v161
    %v171 = vld [vmem:[#allocation1] sm:$0xf]
    %172 = vrot.lane.b32.xlu0 %v171, 16
    %v173 = vpop.permute.xlu0 %172
    %vm174 = vcmask 64512
    %s175 = scalar_lea.vmem [#allocation0], 56
    %176 = vst.msk [vmem:[%s175] sm:$0x1] %vm174, %v173
    %s177 = scalar_lea.vmem [#allocation0], 119
    %178 = vst.msk [vmem:[%s177] sm:$0x2] %vm174, %v173
    %s179 = scalar_lea.vmem [#allocation0], 182
    %180 = vst.msk [vmem:[%s179] sm:$0x4] %vm174, %v173
    %s181 = scalar_lea.vmem [#allocation0], 245
    %182 = vst.msk [vmem:[%s181] sm:$0x8] %vm174, %v173
    %v183 = vld [vmem:[#allocation1] sm:$0xf]
    %184 = vrot.lane.b32.xlu0 %v183, 8
    %v185 = vpop.permute.xlu0 %184
    %vm186 = vcmask 64512
    %s187 = scalar_lea.vmem [#allocation0], 57
    %188 = vst.msk [vmem:[%s187] sm:$0x1] %vm186, %v185
    %s189 = scalar_lea.vmem [#allocation0], 120
    %190 = vst.msk [vmem:[%s189] sm:$0x2] %vm186, %v185
    %s191 = scalar_lea.vmem [#allocation0], 183
    %192 = vst.msk [vmem:[%s191] sm:$0x4] %vm186, %v185
    %s193 = scalar_lea.vmem [#allocation0], 246
    %194 = vst.msk [vmem:[%s193] sm:$0x8] %vm186, %v185
    %s196 = ssub.s32 4, 1
    %v197 = vld [vmem:[#allocation0] sm:%s196]
    %s199 = ssub.s32 4, 1
    %200 = vst [vmem:[%s1] sm:%s199] %v197
    %s201 = scalar_lea.vmem [#allocation0], 8
    %v202 = vld [vmem:[%s201] sm:%s196]
    %s204 = ssub.s32 4, 1
    %s205 = scalar_lea.vmem %s1, 2
    %206 = vst [vmem:[%s205] sm:%s204] %v202
    %s207 = scalar_lea.vmem [#allocation0], 16
    %v208 = vld [vmem:[%s207] sm:%s196]
    %s210 = ssub.s32 4, 1
    %s211 = scalar_lea.vmem %s1, 4
    %212 = vst [vmem:[%s211] sm:%s210] %v208
    %s213 = scalar_lea.vmem [#allocation0], 24
    %v214 = vld [vmem:[%s213] sm:%s196]
    %s216 = ssub.s32 4, 1
    %s217 = scalar_lea.vmem %s1, 6
    %218 = vst [vmem:[%s217] sm:%s216] %v214
    %s219 = scalar_lea.vmem [#allocation0], 32
    %v220 = vld [vmem:[%s219] sm:%s196]
    %s222 = ssub.s32 4, 1
    %s223 = scalar_lea.vmem %s1, 8
    %224 = vst [vmem:[%s223] sm:%s222] %v220
    %s225 = scalar_lea.vmem [#allocation0], 40
    %v226 = vld [vmem:[%s225] sm:%s196]
    %s228 = ssub.s32 4, 1
    %s229 = scalar_lea.vmem %s1, 10
    %230 = vst [vmem:[%s229] sm:%s228] %v226
    %s231 = scalar_lea.vmem [#allocation0], 48
    %v232 = vld [vmem:[%s231] sm:%s196]
    %s234 = ssub.s32 4, 1
    %s235 = scalar_lea.vmem %s1, 12
    %236 = vst [vmem:[%s235] sm:%s234] %v232
    %s237 = scalar_lea.vmem [#allocation0], 56
    %v238 = vld [vmem:[%s237] sm:%s196]
    %s240 = ssub.s32 4, 1
    %s241 = scalar_lea.vmem %s1, 14
    %242 = vst [vmem:[%s241] sm:%s240] %v238
    %s243 = scalar_lea.vmem [#allocation0], 64
    %v244 = vld [vmem:[%s243] sm:%s196]
    %s246 = ssub.s32 4, 1
    %s247 = scalar_lea.vmem %s1, 16
    %248 = vst [vmem:[%s247] sm:%s246] %v244
    %s249 = scalar_lea.vmem [#allocation0], 72
    %v250 = vld [vmem:[%s249] sm:%s196]
    %s252 = ssub.s32 4, 1
    %s253 = scalar_lea.vmem %s1, 18
    %254 = vst [vmem:[%s253] sm:%s252] %v250
    %s255 = scalar_lea.vmem [#allocation0], 80
    %v256 = vld [vmem:[%s255] sm:%s196]
    %s258 = ssub.s32 4, 1
    %s259 = scalar_lea.vmem %s1, 20
    %260 = vst [vmem:[%s259] sm:%s258] %v256
    %s261 = scalar_lea.vmem [#allocation0], 88
    %v262 = vld [vmem:[%s261] sm:%s196]
    %s264 = ssub.s32 4, 1
    %s265 = scalar_lea.vmem %s1, 22
    %266 = vst [vmem:[%s265] sm:%s264] %v262
    %s267 = scalar_lea.vmem [#allocation0], 96
    %v268 = vld [vmem:[%s267] sm:%s196]
    %s270 = ssub.s32 4, 1
    %s271 = scalar_lea.vmem %s1, 24
    %272 = vst [vmem:[%s271] sm:%s270] %v268
    %s273 = scalar_lea.vmem [#allocation0], 104
    %v274 = vld [vmem:[%s273] sm:%s196]
    %s276 = ssub.s32 4, 1
    %s277 = scalar_lea.vmem %s1, 26
    %278 = vst [vmem:[%s277] sm:%s276] %v274
    %s279 = scalar_lea.vmem [#allocation0], 112
    %v280 = vld [vmem:[%s279] sm:%s196]
    %s282 = ssub.s32 4, 1
    %s283 = scalar_lea.vmem %s1, 28
    %284 = vst [vmem:[%s283] sm:%s282] %v280
    %s285 = scalar_lea.vmem [#allocation0], 120
    %v286 = vld [vmem:[%s285] sm:%s196]
    %s288 = ssub.s32 4, 1
    %s289 = scalar_lea.vmem %s1, 30
    %290 = vst [vmem:[%s289] sm:%s288] %v286
    %s291 = scalar_lea.vmem [#allocation0], 128
    %v292 = vld [vmem:[%s291] sm:%s196]
    %s294 = ssub.s32 4, 1
    %s295 = scalar_lea.vmem %s1, 32
    %296 = vst [vmem:[%s295] sm:%s294] %v292
    %s297 = scalar_lea.vmem [#allocation0], 136
    %v298 = vld [vmem:[%s297] sm:%s196]
    %s300 = ssub.s32 4, 1
    %s301 = scalar_lea.vmem %s1, 34
    %302 = vst [vmem:[%s301] sm:%s300] %v298
    %s303 = scalar_lea.vmem [#allocation0], 144
    %v304 = vld [vmem:[%s303] sm:%s196]
    %s306 = ssub.s32 4, 1
    %s307 = scalar_lea.vmem %s1, 36
    %308 = vst [vmem:[%s307] sm:%s306] %v304
    %s309 = scalar_lea.vmem [#allocation0], 152
    %v310 = vld [vmem:[%s309] sm:%s196]
    %s312 = ssub.s32 4, 1
    %s313 = scalar_lea.vmem %s1, 38
    %314 = vst [vmem:[%s313] sm:%s312] %v310
    %s315 = scalar_lea.vmem [#allocation0], 160
    %v316 = vld [vmem:[%s315] sm:%s196]
    %s318 = ssub.s32 4, 1
    %s319 = scalar_lea.vmem %s1, 40
    %320 = vst [vmem:[%s319] sm:%s318] %v316
    %s321 = scalar_lea.vmem [#allocation0], 168
    %v322 = vld [vmem:[%s321] sm:%s196]
    %s324 = ssub.s32 4, 1
    %s325 = scalar_lea.vmem %s1, 42
    %326 = vst [vmem:[%s325] sm:%s324] %v322
    %s327 = scalar_lea.vmem [#allocation0], 176
    %v328 = vld [vmem:[%s327] sm:%s196]
    %s330 = ssub.s32 4, 1
    %s331 = scalar_lea.vmem %s1, 44
    %332 = vst [vmem:[%s331] sm:%s330] %v328
    %s333 = scalar_lea.vmem [#allocation0], 184
    %v334 = vld [vmem:[%s333] sm:%s196]
    %s336 = ssub.s32 4, 1
    %s337 = scalar_lea.vmem %s1, 46
    %338 = vst [vmem:[%s337] sm:%s336] %v334
    %s339 = scalar_lea.vmem [#allocation0], 192
    %v340 = vld [vmem:[%s339] sm:%s196]
    %s342 = ssub.s32 4, 1
    %s343 = scalar_lea.vmem %s1, 48
    %344 = vst [vmem:[%s343] sm:%s342] %v340
    %s345 = scalar_lea.vmem [#allocation0], 200
    %v346 = vld [vmem:[%s345] sm:%s196]
    %s348 = ssub.s32 4, 1
    %s349 = scalar_lea.vmem %s1, 50
    %350 = vst [vmem:[%s349] sm:%s348] %v346
    %s351 = scalar_lea.vmem [#allocation0], 208
    %v352 = vld [vmem:[%s351] sm:%s196]
    %s354 = ssub.s32 4, 1
    %s355 = scalar_lea.vmem %s1, 52
    %356 = vst [vmem:[%s355] sm:%s354] %v352
    %s357 = scalar_lea.vmem [#allocation0], 216
    %v358 = vld [vmem:[%s357] sm:%s196]
    %s360 = ssub.s32 4, 1
    %s361 = scalar_lea.vmem %s1, 54
    %362 = vst [vmem:[%s361] sm:%s360] %v358
    %s363 = scalar_lea.vmem [#allocation0], 224
    %v364 = vld [vmem:[%s363] sm:%s196]
    %s366 = ssub.s32 4, 1
    %s367 = scalar_lea.vmem %s1, 56
    %368 = vst [vmem:[%s367] sm:%s366] %v364
    %s369 = scalar_lea.vmem [#allocation0], 232
    %v370 = vld [vmem:[%s369] sm:%s196]
    %s372 = ssub.s32 4, 1
    %s373 = scalar_lea.vmem %s1, 58
    %374 = vst [vmem:[%s373] sm:%s372] %v370
    %s375 = scalar_lea.vmem [#allocation0], 240
    %v376 = vld [vmem:[%s375] sm:%s196]
    %s378 = ssub.s32 4, 1
    %s379 = scalar_lea.vmem %s1, 60
    %380 = vst [vmem:[%s379] sm:%s378] %v376
    %s381 = scalar_lea.vmem [#allocation0], 248
    %v382 = vld [vmem:[%s381] sm:%s196]
    %s384 = ssub.s32 4, 1
    %s385 = scalar_lea.vmem %s1, 62
    %386 = vst [vmem:[%s385] sm:%s384] %v382

// kernel: tile.28
$region0: #{tile.28}
  #allocation0 [shape = 's32[1]{0}', space=sflag, size = 0x4, scoped, tag = 'scoped memory for tile.28']
  %s0 = inlined_call_operand.vmem [shape: f32[8], index: 0, kind: input, shape index: {}]
  %s1 = inlined_call_operand.vmem [shape: f32[64,8], index: 1, kind: output, shape index: {}]
  // Predicated region
  $region2: #{tile.28} parent=0 // pred_check
    _
  $region3: #{tile.28} parent=0 // pred_check_branch
    %3 = sbr.rel (0) target = $region5
  $region4: #{tile.28} parent=0 // pred_region
    _
  $region5: #{tile.28} parent=0 // pred_fallthru
    _
  %v4 = vld [vmem:[%s0] ss:$0 sm:$0xff]
  %5 = vst [vmem:[%s1] sm:$0xff] %v4
  %s6 = scalar_lea.vmem %s1, 8
  %7 = vst [vmem:[%s6] sm:$0xff] %v4
  %s8 = scalar_lea.vmem %s1, 16
  %9 = vst [vmem:[%s8] sm:$0xff] %v4
  %s10 = scalar_lea.vmem %s1, 24
  %11 = vst [vmem:[%s10] sm:$0xff] %v4
  %s12 = scalar_lea.vmem %s1, 32
  %13 = vst [vmem:[%s12] sm:$0xff] %v4
  %s14 = scalar_lea.vmem %s1, 40
  %15 = vst [vmem:[%s14] sm:$0xff] %v4
  %s16 = scalar_lea.vmem %s1, 48
  %17 = vst [vmem:[%s16] sm:$0xff] %v4
  %s18 = scalar_lea.vmem %s1, 56
  %19 = vst [vmem:[%s18] sm:$0xff] %v4

// kernel: tile.29
$region0: #{tile.29}
  %s0 = inlined_call_operand.vmem [shape: f32[64,8], index: 0, kind: input, shape index: {}]
  %s1 = inlined_call_operand.vmem [shape: f32[1,512], index: 1, kind: output, shape index: {}]
  $region1: #{tile.29} parent=0
    #allocation0 [shape = 'u8[16384]{0}', space=vmem, size = 0x4000, scoped, tag = 'scoped mem for output reshape']
    %s2 = smov 3
    %v3 = vld [vmem:[%s0] ss:$16 sm:%s2]
    %s4 = smov 12
    %v5 = vld [vmem:[%s0] ss:$16 sm:%s4]
    %vm6 = vcmask 1043458
    %v7 = vsel %vm6, %v5, %v3
    %vm8 = vcmask 64512
    %9 = vst.msk [vmem:[#allocation0] ss:$8 sm:$0xf] %vm8, %v7
    %s10 = scalar_lea.vmem %s0, 15
    %s11 = smov 3
    %v12 = vld [vmem:[%s10] ss:$16 sm:%s11]
    %s13 = scalar_lea.vmem %s0, 15
    %s14 = smov 12
    %v15 = vld [vmem:[%s13] ss:$16 sm:%s14]
    %vm16 = vcmask 1043458
    %v17 = vsel %vm16, %v15, %v12
    %18 = vrot.lane.b32.xlu0 %v17, 120
    %v19 = vpop.permute.xlu0 %18
    %vm20 = vcmask 1048512
    %21 = vst.msk [vmem:[#allocation0] ss:$8 sm:$0xf] %vm20, %v19
    %s22 = scalar_lea.vmem %s0, 14
    %s23 = smov 3
    %v24 = vld [vmem:[%s22] ss:$16 sm:%s23]
    %s25 = scalar_lea.vmem %s0, 14
    %s26 = smov 12
    %v27 = vld [vmem:[%s25] ss:$16 sm:%s26]
    %vm28 = vcmask 1043458
    %v29 = vsel %vm28, %v27, %v24
    %30 = vrot.lane.b32.xlu0 %v29, 112
    %v31 = vpop.permute.xlu0 %30
    %vm32 = vcmask 982912
    %33 = vst.msk [vmem:[#allocation0] ss:$8 sm:$0xf] %vm32, %v31
    %s34 = scalar_lea.vmem %s0, 13
    %s35 = smov 3
    %v36 = vld [vmem:[%s34] ss:$16 sm:%s35]
    %s37 = scalar_lea.vmem %s0, 13
    %s38 = smov 12
    %v39 = vld [vmem:[%s37] ss:$16 sm:%s38]
    %vm40 = vcmask 1043458
    %v41 = vsel %vm40, %v39, %v36
    %42 = vrot.lane.b32.xlu0 %v41, 104
    %v43 = vpop.permute.xlu0 %42
    %vm44 = vcmask 917312
    %45 = vst.msk [vmem:[#allocation0] ss:$8 sm:$0xf] %vm44, %v43
    %s46 = scalar_lea.vmem %s0, 12
    %s47 = smov 3
    %v48 = vld [vmem:[%s46] ss:$16 sm:%s47]
    %s49 = scalar_lea.vmem %s0, 12
    %s50 = smov 12
    %v51 = vld [vmem:[%s49] ss:$16 sm:%s50]
    %vm52 = vcmask 1043458
    %v53 = vsel %vm52, %v51, %v48
    %54 = vrot.lane.b32.xlu0 %v53, 96
    %v55 = vpop.permute.xlu0 %54
    %vm56 = vcmask 851712
    %57 = vst.msk [vmem:[#allocation0] ss:$8 sm:$0xf] %vm56, %v55
    %s58 = scalar_lea.vmem %s0, 11
    %s59 = smov 3
    %v60 = vld [vmem:[%s58] ss:$16 sm:%s59]
    %s61 = scalar_lea.vmem %s0, 11
    %s62 = smov 12
    %v63 = vld [vmem:[%s61] ss:$16 sm:%s62]
    %vm64 = vcmask 1043458
    %v65 = vsel %vm64, %v63, %v60
    %66 = vrot.lane.b32.xlu0 %v65, 88
    %v67 = vpop.permute.xlu0 %66
    %vm68 = vcmask 786112
    %69 = vst.msk [vmem:[#allocation0] ss:$8 sm:$0xf] %vm68, %v67
    %s70 = scalar_lea.vmem %s0, 10
    %s71 = smov 3
    %v72 = vld [vmem:[%s70] ss:$16 sm:%s71]
    %s73 = scalar_lea.vmem %s0, 10
    %s74 = smov 12
    %v75 = vld [vmem:[%s73] ss:$16 sm:%s74]
    %vm76 = vcmask 1043458
    %v77 = vsel %vm76, %v75, %v72
    %78 = vrot.lane.b32.xlu0 %v77, 80
    %v79 = vpop.permute.xlu0 %78
    %vm80 = vcmask 720512
    %81 = vst.msk [vmem:[#allocation0] ss:$8 sm:$0xf] %vm80, %v79
    %s82 = scalar_lea.vmem %s0, 9
    %s83 = smov 3
    %v84 = vld [vmem:[%s82] ss:$16 sm:%s83]
    %s85 = scalar_lea.vmem %s0, 9
    %s86 = smov 12
    %v87 = vld [vmem:[%s85] ss:$16 sm:%s86]
    %vm88 = vcmask 1043458
    %v89 = vsel %vm88, %v87, %v84
    %90 = vrot.lane.b32.xlu0 %v89, 72
    %v91 = vpop.permute.xlu0 %90
    %vm92 = vcmask 654912
    %93 = vst.msk [vmem:[#allocation0] ss:$8 sm:$0xf] %vm92, %v91
    %s94 = scalar_lea.vmem %s0, 8
    %s95 = smov 3
    %v96 = vld [vmem:[%s94] ss:$16 sm:%s95]
    %s97 = scalar_lea.vmem %s0, 8
    %s98 = smov 12
    %v99 = vld [vmem:[%s97] ss:$16 sm:%s98]
    %vm100 = vcmask 1043458
    %v101 = vsel %vm100, %v99, %v96
    %102 = vrot.lane.b32.xlu0 %v101, 64
    %v103 = vpop.permute.xlu0 %102
    %vm104 = vcmask 589312
    %105 = vst.msk [vmem:[#allocation0] ss:$8 sm:$0xf] %vm104, %v103
    %s106 = scalar_lea.vmem %s0, 7
    %s107 = smov 3
    %v108 = vld [vmem:[%s106] ss:$16 sm:%s107]
    %s109 = scalar_lea.vmem %s0, 7
    %s110 = smov 12
    %v111 = vld [vmem:[%s109] ss:$16 sm:%s110]
    %vm112 = vcmask 1043458
    %v113 = vsel %vm112, %v111, %v108
    %114 = vrot.lane.b32.xlu0 %v113, 56
    %v115 = vpop.permute.xlu0 %114
    %vm116 = vcmask 523712
    %117 = vst.msk [vmem:[#allocation0] ss:$8 sm:$0xf] %vm116, %v115
    %s118 = scalar_lea.vmem %s0, 6
    %s119 = smov 3
    %v120 = vld [vmem:[%s118] ss:$16 sm:%s119]
    %s121 = scalar_lea.vmem %s0, 6
    %s122 = smov 12
    %v123 = vld [vmem:[%s121] ss:$16 sm:%s122]
    %vm124 = vcmask 1043458
    %v125 = vsel %vm124, %v123, %v120
    %126 = vrot.lane.b32.xlu0 %v125, 48
    %v127 = vpop.permute.xlu0 %126
    %vm128 = vcmask 458112
    %129 = vst.msk [vmem:[#allocation0] ss:$8 sm:$0xf] %vm128, %v127
    %s130 = scalar_lea.vmem %s0, 5
    %s131 = smov 3
    %v132 = vld [vmem:[%s130] ss:$16 sm:%s131]
    %s133 = scalar_lea.vmem %s0, 5
    %s134 = smov 12
    %v135 = vld [vmem:[%s133] ss:$16 sm:%s134]
    %vm136 = vcmask 1043458
    %v137 = vsel %vm136, %v135, %v132
    %138 = vrot.lane.b32.xlu0 %v137, 40
    %v139 = vpop.permute.xlu0 %138
    %vm140 = vcmask 392512
    %141 = vst.msk [vmem:[#allocation0] ss:$8 sm:$0xf] %vm140, %v139
    %s142 = scalar_lea.vmem %s0, 4
    %s143 = smov 3
    %v144 = vld [vmem:[%s142] ss:$16 sm:%s143]
    %s145 = scalar_lea.vmem %s0, 4
    %s146 = smov 12
    %v147 = vld [vmem:[%s145] ss:$16 sm:%s146]
    %vm148 = vcmask 1043458
    %v149 = vsel %vm148, %v147, %v144
    %150 = vrot.lane.b32.xlu0 %v149, 32
    %v151 = vpop.permute.xlu0 %150
    %vm152 = vcmask 326912
    %153 = vst.msk [vmem:[#allocation0] ss:$8 sm:$0xf] %vm152, %v151
    %s154 = scalar_lea.vmem %s0, 3
    %s155 = smov 3
    %v156 = vld [vmem:[%s154] ss:$16 sm:%s155]
    %s157 = scalar_lea.vmem %s0, 3
    %s158 = smov 12
    %v159 = vld [vmem:[%s157] ss:$16 sm:%s158]
    %vm160 = vcmask 1043458
    %v161 = vsel %vm160, %v159, %v156
    %162 = vrot.lane.b32.xlu0 %v161, 24
    %v163 = vpop.permute.xlu0 %162
    %vm164 = vcmask 261312
    %165 = vst.msk [vmem:[#allocation0] ss:$8 sm:$0xf] %vm164, %v163
    %s166 = scalar_lea.vmem %s0, 2
    %s167 = smov 3
    %v168 = vld [vmem:[%s166] ss:$16 sm:%s167]
    %s169 = scalar_lea.vmem %s0, 2
    %s170 = smov 12
    %v171 = vld [vmem:[%s169] ss:$16 sm:%s170]
    %vm172 = vcmask 1043458
    %v173 = vsel %vm172, %v171, %v168
    %174 = vrot.lane.b32.xlu0 %v173, 16
    %v175 = vpop.permute.xlu0 %174
    %vm176 = vcmask 195712
    %177 = vst.msk [vmem:[#allocation0] ss:$8 sm:$0xf] %vm176, %v175
    %s178 = scalar_lea.vmem %s0, 1
    %s179 = smov 3
    %v180 = vld [vmem:[%s178] ss:$16 sm:%s179]
    %s181 = scalar_lea.vmem %s0, 1
    %s182 = smov 12
    %v183 = vld [vmem:[%s181] ss:$16 sm:%s182]
    %vm184 = vcmask 1043458
    %v185 = vsel %vm184, %v183, %v180
    %186 = vrot.lane.b32.xlu0 %v185, 8
    %v187 = vpop.permute.xlu0 %186
    %vm188 = vcmask 130112
    %189 = vst.msk [vmem:[#allocation0] ss:$8 sm:$0xf] %vm188, %v187
    %s191 = ssub.s32 2, 1
    %v192 = vld [vmem:[#allocation0] sm:%s191]
    %s194 = ssub.s32 2, 1
    %195 = vst [vmem:[%s1] sm:%s194] %v192
    %s196 = scalar_lea.vmem [#allocation0], 8
    %v197 = vld [vmem:[%s196] sm:%s191]
    %s199 = ssub.s32 2, 1
    %s200 = scalar_lea.vmem %s1, 1
    %201 = vst [vmem:[%s200] sm:%s199] %v197
    %s202 = scalar_lea.vmem [#allocation0], 16
    %v203 = vld [vmem:[%s202] sm:%s191]
    %s205 = ssub.s32 2, 1
    %s206 = scalar_lea.vmem %s1, 2
    %207 = vst [vmem:[%s206] sm:%s205] %v203
    %s208 = scalar_lea.vmem [#allocation0], 24
    %v209 = vld [vmem:[%s208] sm:%s191]
    %s211 = ssub.s32 2, 1
    %s212 = scalar_lea.vmem %s1, 3
    %213 = vst [vmem:[%s212] sm:%s211] %v209

// kernel: _upsampler_forward.4
$region0: #{_upsampler_forward.4}
  #allocation0 [shape = 'u32[]', space=smem, size = 0x4, offset = 0x4, fixed_abs, tag = 'smem constant byte address 0x4 - core index']
  #allocation1 [shape = 'u32[72,128]{1,0:T(1,128)}', space=vmem, size = 0x9000, scoped, tag = 'internal scratch']
  %s0 = inlined_call_operand.vmem [shape: f32[32,64], index: 0, kind: input, shape index: {}]
  %s1 = inlined_call_operand.vmem [shape: f32[64,512], index: 1, kind: input, shape index: {}]
  %s2 = inlined_call_operand.vmem [shape: f32[1,2,512], index: 2, kind: output, shape index: {}]
  %s3 = sld [smem:[#allocation0]]
  $region18: #{_upsampler_forward.4} parent=0
    _
  %s5 = ssub.s32 1, %s3
  %s6 = scalar_select 0, %s5, %s3
  // Predicated region
  $region2: #{_upsampler_forward.4} parent=0 // pred_check
    _
  $region3: #{_upsampler_forward.4} parent=0 // pred_check_branch
    %8 = sbr.rel (0) target = $region5
  $region4: #{_upsampler_forward.4} parent=0 // pred_region
    _
  $region5: #{_upsampler_forward.4} parent=0 // pred_fallthru
    _
  // Predicated region
  $region6: #{_upsampler_forward.4} parent=0 // pred_check
    _
  $region7: #{_upsampler_forward.4} parent=0 // pred_check_branch
    %10 = sbr.rel (0) target = $region9
  $region8: #{_upsampler_forward.4} parent=0 // pred_region
    _
  $region9: #{_upsampler_forward.4} parent=0 // pred_fallthru
    _
  %v11 = vld [vmem:[%s0] sm:$0xff]
  %v12 = vld [vmem:[%s0 + $0x8] sm:$0xff]
  %v13 = vld [vmem:[%s0 + $0x10] sm:$0xff]
  %v14 = vld [vmem:[%s0 + $0x18] sm:$0xff]
  %v15 = vld [vmem:[%s1] sm:$0xff]
  %v16 = vld [vmem:[%s1 + $0x8] sm:$0xff]
  %v17 = vld [vmem:[%s1 + $0x10] sm:$0xff]
  %v18 = vld [vmem:[%s1 + $0x18] sm:$0xff]
  %v19 = vld [vmem:[%s1 + $0x20] sm:$0xff]
  %v20 = vld [vmem:[%s1 + $0x28] sm:$0xff]
  %v21 = vld [vmem:[%s1 + $0x30] sm:$0xff]
  %v22 = vld [vmem:[%s1 + $0x38] sm:$0xff]
  %v23 = vld [vmem:[%s1 + $0x40] sm:$0xff]
  %v24 = vld [vmem:[%s1 + $0x48] sm:$0xff]
  %v25 = vld [vmem:[%s1 + $0x50] sm:$0xff]
  %v26 = vld [vmem:[%s1 + $0x58] sm:$0xff]
  %v27 = vld [vmem:[%s1 + $0x60] sm:$0xff]
  %v28 = vld [vmem:[%s1 + $0x68] sm:$0xff]
  %v29 = vld [vmem:[%s1 + $0x70] sm:$0xff]
  %v30 = vld [vmem:[%s1 + $0x78] sm:$0xff]
  %v31 = vld [vmem:[%s1 + $0x80] sm:$0xff]
  %v32 = vld [vmem:[%s1 + $0x88] sm:$0xff]
  %v33 = vld [vmem:[%s1 + $0x90] sm:$0xff]
  %v34 = vld [vmem:[%s1 + $0x98] sm:$0xff]
  %v35 = vld [vmem:[%s1 + $0xa0] sm:$0xff]
  %v36 = vld [vmem:[%s1 + $0xa8] sm:$0xff]
  %v37 = vld [vmem:[%s1 + $0xb0] sm:$0xff]
  %v38 = vld [vmem:[%s1 + $0xb8] sm:$0xff]
  %v39 = vld [vmem:[%s1 + $0xc0] sm:$0xff]
  %v40 = vld [vmem:[%s1 + $0xc8] sm:$0xff]
  %v41 = vld [vmem:[%s1 + $0xd0] sm:$0xff]
  %v42 = vld [vmem:[%s1 + $0xd8] sm:$0xff]
  %v43 = vld [vmem:[%s1 + $0xe0] sm:$0xff]
  %v44 = vld [vmem:[%s1 + $0xe8] sm:$0xff]
  %v45 = vld [vmem:[%s1 + $0xf0] sm:$0xff]
  %v46 = vld [vmem:[%s1 + $0xf8] sm:$0xff]
  %vm47 = vcmask 523264
  %v49 = vsel %vm47, %v11, 0
  %v52 = vsel %vm47, %v12, 0
  %v55 = vsel %vm47, %v13, 0
  %v58 = vsel %vm47, %v14, 0
  %60 = vmatpush.msra.mxu0 0.0
  %61 = vmatpush.msra.mxu0 0.0
  %62 = vmatpush.msra.mxu0 0.0
  %63 = vmatpush.msra.mxu0 0.0
  %64 = vmatpush.msra.mxu0 0.0
  %65 = vmatpush.msra.mxu0 0.0
  %66 = vmatpush.msra.mxu0 0.0
  %67 = vmatpush.msra.mxu0 0.0
  %68 = vmatpush.msra.mxu0 %v43
  %69 = vmatpush.msra.mxu0 %v39
  %70 = vmatpush.msra.mxu0 %v35
  %71 = vmatpush.msra.mxu0 %v31
  %72 = vmatpush.msra.mxu0 %v27
  %73 = vmatpush.msra.mxu0 %v23
  %74 = vmatpush.msra.mxu0 %v19
  %75 = vmatpush.msra.mxu0 %v15
  %76 = vmatmul.f32.gmra.mxu0 %v49
  %v77 = vpop.f32.mrf.mxu0
  %v78 = vadd.f32 0.0, %v77
  %79 = vmatmul.f32.gmra.mxu0 %v52
  %v80 = vpop.f32.mrf.mxu0
  %v81 = vadd.f32 0.0, %v80
  %82 = vmatmul.f32.gmra.mxu0 %v55
  %v83 = vpop.f32.mrf.mxu0
  %v84 = vadd.f32 0.0, %v83
  %85 = vmatmul.f32.gmra.mxu0 %v58
  %v86 = vpop.f32.mrf.mxu0
  %v87 = vadd.f32 0.0, %v86
  %88 = vdwg.mxu0
  %89 = vmatpush.msra.mxu0 0.0
  %90 = vmatpush.msra.mxu0 0.0
  %91 = vmatpush.msra.mxu0 0.0
  %92 = vmatpush.msra.mxu0 0.0
  %93 = vmatpush.msra.mxu0 0.0
  %94 = vmatpush.msra.mxu0 0.0
  %95 = vmatpush.msra.mxu0 0.0
  %96 = vmatpush.msra.mxu0 0.0
  %97 = vmatpush.msra.mxu0 %v44
  %98 = vmatpush.msra.mxu0 %v40
  %99 = vmatpush.msra.mxu0 %v36
  %100 = vmatpush.msra.mxu0 %v32
  %101 = vmatpush.msra.mxu0 %v28
  %102 = vmatpush.msra.mxu0 %v24
  %103 = vmatpush.msra.mxu0 %v20
  %104 = vmatpush.msra.mxu0 %v16
  %105 = vmatmul.f32.gmra.mxu0 %v49
  %v106 = vpop.f32.mrf.mxu0
  %v107 = vadd.f32 0.0, %v106
  %108 = vmatmul.f32.gmra.mxu0 %v52
  %v109 = vpop.f32.mrf.mxu0
  %v110 = vadd.f32 0.0, %v109
  %111 = vmatmul.f32.gmra.mxu0 %v55
  %v112 = vpop.f32.mrf.mxu0
  %v113 = vadd.f32 0.0, %v112
  %114 = vmatmul.f32.gmra.mxu0 %v58
  %v115 = vpop.f32.mrf.mxu0
  %v116 = vadd.f32 0.0, %v115
  %117 = vdwg.mxu0
  %118 = vmatpush.msra.mxu0 0.0
  %119 = vmatpush.msra.mxu0 0.0
  %120 = vmatpush.msra.mxu0 0.0
  %121 = vmatpush.msra.mxu0 0.0
  %122 = vmatpush.msra.mxu0 0.0
  %123 = vmatpush.msra.mxu0 0.0
  %124 = vmatpush.msra.mxu0 0.0
  %125 = vmatpush.msra.mxu0 0.0
  %126 = vmatpush.msra.mxu0 %v45
  %127 = vmatpush.msra.mxu0 %v41
  %128 = vmatpush.msra.mxu0 %v37
  %129 = vmatpush.msra.mxu0 %v33
  %130 = vmatpush.msra.mxu0 %v29
  %131 = vmatpush.msra.mxu0 %v25
  %132 = vmatpush.msra.mxu0 %v21
  %133 = vmatpush.msra.mxu0 %v17
  %134 = vmatmul.f32.gmra.mxu0 %v49
  %v135 = vpop.f32.mrf.mxu0
  %v136 = vadd.f32 0.0, %v135
  %137 = vmatmul.f32.gmra.mxu0 %v52
  %v138 = vpop.f32.mrf.mxu0
  %v139 = vadd.f32 0.0, %v138
  %140 = vmatmul.f32.gmra.mxu0 %v55
  %v141 = vpop.f32.mrf.mxu0
  %v142 = vadd.f32 0.0, %v141
  %143 = vmatmul.f32.gmra.mxu0 %v58
  %v144 = vpop.f32.mrf.mxu0
  %v145 = vadd.f32 0.0, %v144
  %146 = vdwg.mxu0
  %147 = vmatpush.msra.mxu0 0.0
  %148 = vmatpush.msra.mxu0 0.0
  %149 = vmatpush.msra.mxu0 0.0
  %150 = vmatpush.msra.mxu0 0.0
  %151 = vmatpush.msra.mxu0 0.0
  %152 = vmatpush.msra.mxu0 0.0
  %153 = vmatpush.msra.mxu0 0.0
  %154 = vmatpush.msra.mxu0 0.0
  %155 = vmatpush.msra.mxu0 %v46
  %156 = vmatpush.msra.mxu0 %v42
  %157 = vmatpush.msra.mxu0 %v38
  %158 = vmatpush.msra.mxu0 %v34
  %159 = vmatpush.msra.mxu0 %v30
  %160 = vmatpush.msra.mxu0 %v26
  %161 = vmatpush.msra.mxu0 %v22
  %162 = vmatpush.msra.mxu0 %v18
  %163 = vmatmul.f32.gmra.mxu0 %v49
  %v164 = vpop.f32.mrf.mxu0
  %v165 = vadd.f32 0.0, %v164
  %166 = vmatmul.f32.gmra.mxu0 %v52
  %v167 = vpop.f32.mrf.mxu0
  %v168 = vadd.f32 0.0, %v167
  %169 = vmatmul.f32.gmra.mxu0 %v55
  %v170 = vpop.f32.mrf.mxu0
  %v171 = vadd.f32 0.0, %v170
  %172 = vmatmul.f32.gmra.mxu0 %v58
  %v173 = vpop.f32.mrf.mxu0
  %v174 = vadd.f32 0.0, %v173
  %175 = vdwg.mxu0
  %v176 = vadd.f32 %v78, %v81
  %v177 = vadd.f32 %v176, %v84
  %v178 = vadd.f32 %v177, %v87
  %v179 = vrot.slane %v178, 4
  %v180 = vadd.f32 %v178, %v179
  %v181 = vrot.slane %v180, 2
  %v182 = vadd.f32 %v180, %v181
  %v183 = vrot.slane %v182, 1
  %v184 = vadd.f32 %v182, %v183
  %v185 = vadd.f32 %v107, %v110
  %v186 = vadd.f32 %v185, %v113
  %v187 = vadd.f32 %v186, %v116
  %v188 = vrot.slane %v187, 4
  %v189 = vadd.f32 %v187, %v188
  %v190 = vrot.slane %v189, 2
  %v191 = vadd.f32 %v189, %v190
  %v192 = vrot.slane %v191, 1
  %v193 = vadd.f32 %v191, %v192
  %v194 = vadd.f32 %v136, %v139
  %v195 = vadd.f32 %v194, %v142
  %v196 = vadd.f32 %v195, %v145
  %v197 = vrot.slane %v196, 4
  %v198 = vadd.f32 %v196, %v197
  %v199 = vrot.slane %v198, 2
  %v200 = vadd.f32 %v198, %v199
  %v201 = vrot.slane %v200, 1
  %v202 = vadd.f32 %v200, %v201
  %v203 = vadd.f32 %v165, %v168
  %v204 = vadd.f32 %v203, %v171
  %v205 = vadd.f32 %v204, %v174
  %v206 = vrot.slane %v205, 4
  %v207 = vadd.f32 %v205, %v206
  %v208 = vrot.slane %v207, 2
  %v209 = vadd.f32 %v207, %v208
  %v210 = vrot.slane %v209, 1
  %v211 = vadd.f32 %v209, %v210
  %v212 = vmul.f32 %v78, %v78
  %v213 = vmul.f32 %v107, %v107
  %v214 = vmul.f32 %v136, %v136
  %v215 = vmul.f32 %v165, %v165
  %v216 = vmul.f32 %v81, %v81
  %v217 = vmul.f32 %v110, %v110
  %v218 = vmul.f32 %v139, %v139
  %v219 = vmul.f32 %v168, %v168
  %v220 = vmul.f32 %v84, %v84
  %v221 = vmul.f32 %v113, %v113
  %v222 = vmul.f32 %v142, %v142
  %v223 = vmul.f32 %v171, %v171
  %v224 = vmul.f32 %v87, %v87
  %v225 = vmul.f32 %v116, %v116
  %v226 = vmul.f32 %v145, %v145
  %v227 = vmul.f32 %v174, %v174
  %v228 = vadd.f32 %v212, %v216
  %v229 = vadd.f32 %v228, %v220
  %v230 = vadd.f32 %v229, %v224
  %v231 = vrot.slane %v230, 4
  %v232 = vadd.f32 %v230, %v231
  %v233 = vrot.slane %v232, 2
  %v234 = vadd.f32 %v232, %v233
  %v235 = vrot.slane %v234, 1
  %v236 = vadd.f32 %v234, %v235
  %v237 = vadd.f32 %v213, %v217
  %v238 = vadd.f32 %v237, %v221
  %v239 = vadd.f32 %v238, %v225
  %v240 = vrot.slane %v239, 4
  %v241 = vadd.f32 %v239, %v240
  %v242 = vrot.slane %v241, 2
  %v243 = vadd.f32 %v241, %v242
  %v244 = vrot.slane %v243, 1
  %v245 = vadd.f32 %v243, %v244
  %v246 = vadd.f32 %v214, %v218
  %v247 = vadd.f32 %v246, %v222
  %v248 = vadd.f32 %v247, %v226
  %v249 = vrot.slane %v248, 4
  %v250 = vadd.f32 %v248, %v249
  %v251 = vrot.slane %v250, 2
  %v252 = vadd.f32 %v250, %v251
  %v253 = vrot.slane %v252, 1
  %v254 = vadd.f32 %v252, %v253
  %v255 = vadd.f32 %v215, %v219
  %v256 = vadd.f32 %v255, %v223
  %v257 = vadd.f32 %v256, %v227
  %v258 = vrot.slane %v257, 4
  %v259 = vadd.f32 %v257, %v258
  %v260 = vrot.slane %v259, 2
  %v261 = vadd.f32 %v259, %v260
  %v262 = vrot.slane %v261, 1
  %v263 = vadd.f32 %v261, %v262
  %vm264 = vcmask 1040384
  %v265 = vsel %vm264, %v184, %v236
  %v266 = vsel %vm264, %v193, %v245
  %v267 = vsel %vm264, %v202, %v254
  %v268 = vsel %vm264, %v211, %v263
  %v273 = vrot.slane %v266, 6
  %v274 = vrot.slane %v267, 4
  %v275 = vrot.slane %v268, 2
  %vm276 = vcmask 1041408
  %v277 = vsel %vm276, %v265, %v273
  %vm278 = vcmask 1045508
  %v279 = vsel %vm278, %v274, %v275
  %vm280 = vcmask 1043456
  %v281 = vsel %vm280, %v277, %v279
  %283 = vst [vmem:[%s2] sm:$0xff] %v281
  // Predicated region
  $region10: #{_upsampler_forward.4} parent=0 // pred_check
    _
  $region11: #{_upsampler_forward.4} parent=0 // pred_check_branch
    %285 = sbr.rel (0) target = $region13
  $region12: #{_upsampler_forward.4} parent=0 // pred_region
    _
  $region13: #{_upsampler_forward.4} parent=0 // pred_fallthru
    _
  // Predicated region
  $region14: #{_upsampler_forward.4} parent=0 // pred_check
    _
  $region15: #{_upsampler_forward.4} parent=0 // pred_check_branch
    %287 = sbr.rel (0) target = $region17
  $region16: #{_upsampler_forward.4} parent=0 // pred_region
    _
  $region17: #{_upsampler_forward.4} parent=0 // pred_fallthru
    _

// kernel: _upsampler_forward.5
$region0: #{_upsampler_forward.5}
  #allocation0 [shape = 'u32[]', space=smem, size = 0x4, offset = 0x4, fixed_abs, tag = 'smem constant byte address 0x4 - core index']
  #allocation1 [shape = 'u32[72,128]{1,0:T(1,128)}', space=vmem, size = 0x9000, scoped, tag = 'internal scratch']
  %s0 = inlined_call_operand.vmem [shape: f32[32,64], index: 0, kind: input, shape index: {}]
  %s1 = inlined_call_operand.vmem [shape: f32[64,512], index: 1, kind: input, shape index: {}]
  %s2 = inlined_call_operand.vmem [shape: f32[1,512], index: 2, kind: input, shape index: {}]
  %s3 = inlined_call_operand.vmem [shape: f32[1,512], index: 3, kind: input, shape index: {}]
  %s4 = inlined_call_operand.vmem [shape: f32[32,512], index: 4, kind: output, shape index: {}]
  %s5 = sld [smem:[#allocation0]]
  $region26: #{_upsampler_forward.5} parent=0
    _
  %s7 = ssub.s32 1, %s5
  %s8 = scalar_select 0, %s7, %s5
  // Predicated region
  $region2: #{_upsampler_forward.5} parent=0 // pred_check
    _
  $region3: #{_upsampler_forward.5} parent=0 // pred_check_branch
    %10 = sbr.rel (0) target = $region5
  $region4: #{_upsampler_forward.5} parent=0 // pred_region
    _
  $region5: #{_upsampler_forward.5} parent=0 // pred_fallthru
    _
  // Predicated region
  $region6: #{_upsampler_forward.5} parent=0 // pred_check
    _
  $region7: #{_upsampler_forward.5} parent=0 // pred_check_branch
    %12 = sbr.rel (0) target = $region9
  $region8: #{_upsampler_forward.5} parent=0 // pred_region
    _
  $region9: #{_upsampler_forward.5} parent=0 // pred_fallthru
    _
  // Predicated region
  $region10: #{_upsampler_forward.5} parent=0 // pred_check
    _
  $region11: #{_upsampler_forward.5} parent=0 // pred_check_branch
    %14 = sbr.rel (0) target = $region13
  $region12: #{_upsampler_forward.5} parent=0 // pred_region
    _
  $region13: #{_upsampler_forward.5} parent=0 // pred_fallthru
    _
  // Predicated region
  $region14: #{_upsampler_forward.5} parent=0 // pred_check
    _
  $region15: #{_upsampler_forward.5} parent=0 // pred_check_branch
    %16 = sbr.rel (0) target = $region17
  $region16: #{_upsampler_forward.5} parent=0 // pred_region
    _
  $region17: #{_upsampler_forward.5} parent=0 // pred_fallthru
    _
  %v17 = vld [vmem:[%s0] sm:$0xff]
  %v18 = vld [vmem:[%s0 + $0x8] sm:$0xff]
  %v19 = vld [vmem:[%s0 + $0x10] sm:$0xff]
  %v20 = vld [vmem:[%s0 + $0x18] sm:$0xff]
  %v21 = vld [vmem:[%s1] sm:$0xff]
  %v22 = vld [vmem:[%s1 + $0x8] sm:$0xff]
  %v23 = vld [vmem:[%s1 + $0x10] sm:$0xff]
  %v24 = vld [vmem:[%s1 + $0x18] sm:$0xff]
  %v25 = vld [vmem:[%s1 + $0x20] sm:$0xff]
  %v26 = vld [vmem:[%s1 + $0x28] sm:$0xff]
  %v27 = vld [vmem:[%s1 + $0x30] sm:$0xff]
  %v28 = vld [vmem:[%s1 + $0x38] sm:$0xff]
  %v29 = vld [vmem:[%s1 + $0x40] sm:$0xff]
  %v30 = vld [vmem:[%s1 + $0x48] sm:$0xff]
  %v31 = vld [vmem:[%s1 + $0x50] sm:$0xff]
  %v32 = vld [vmem:[%s1 + $0x58] sm:$0xff]
  %v33 = vld [vmem:[%s1 + $0x60] sm:$0xff]
  %v34 = vld [vmem:[%s1 + $0x68] sm:$0xff]
  %v35 = vld [vmem:[%s1 + $0x70] sm:$0xff]
  %v36 = vld [vmem:[%s1 + $0x78] sm:$0xff]
  %v37 = vld [vmem:[%s1 + $0x80] sm:$0xff]
  %v38 = vld [vmem:[%s1 + $0x88] sm:$0xff]
  %v39 = vld [vmem:[%s1 + $0x90] sm:$0xff]
  %v40 = vld [vmem:[%s1 + $0x98] sm:$0xff]
  %v41 = vld [vmem:[%s1 + $0xa0] sm:$0xff]
  %v42 = vld [vmem:[%s1 + $0xa8] sm:$0xff]
  %v43 = vld [vmem:[%s1 + $0xb0] sm:$0xff]
  %v44 = vld [vmem:[%s1 + $0xb8] sm:$0xff]
  %v45 = vld [vmem:[%s1 + $0xc0] sm:$0xff]
  %v46 = vld [vmem:[%s1 + $0xc8] sm:$0xff]
  %v47 = vld [vmem:[%s1 + $0xd0] sm:$0xff]
  %v48 = vld [vmem:[%s1 + $0xd8] sm:$0xff]
  %v49 = vld [vmem:[%s1 + $0xe0] sm:$0xff]
  %v50 = vld [vmem:[%s1 + $0xe8] sm:$0xff]
  %v51 = vld [vmem:[%s1 + $0xf0] sm:$0xff]
  %v52 = vld [vmem:[%s1 + $0xf8] sm:$0xff]
  %vm53 = vcmask 523264
  %v55 = vsel %vm53, %v17, 0
  %v58 = vsel %vm53, %v18, 0
  %v61 = vsel %vm53, %v19, 0
  %v64 = vsel %vm53, %v20, 0
  %66 = vmatpush.msra.mxu0 0.0
  %67 = vmatpush.msra.mxu0 0.0
  %68 = vmatpush.msra.mxu0 0.0
  %69 = vmatpush.msra.mxu0 0.0
  %70 = vmatpush.msra.mxu0 0.0
  %71 = vmatpush.msra.mxu0 0.0
  %72 = vmatpush.msra.mxu0 0.0
  %73 = vmatpush.msra.mxu0 0.0
  %74 = vmatpush.msra.mxu0 %v49
  %75 = vmatpush.msra.mxu0 %v45
  %76 = vmatpush.msra.mxu0 %v41
  %77 = vmatpush.msra.mxu0 %v37
  %78 = vmatpush.msra.mxu0 %v33
  %79 = vmatpush.msra.mxu0 %v29
  %80 = vmatpush.msra.mxu0 %v25
  %81 = vmatpush.msra.mxu0 %v21
  %82 = vmatmul.f32.gmra.mxu0 %v55
  %v83 = vpop.f32.mrf.mxu0
  %v84 = vadd.f32 0.0, %v83
  %85 = vmatmul.f32.gmra.mxu0 %v58
  %v86 = vpop.f32.mrf.mxu0
  %v87 = vadd.f32 0.0, %v86
  %88 = vmatmul.f32.gmra.mxu0 %v61
  %v89 = vpop.f32.mrf.mxu0
  %v90 = vadd.f32 0.0, %v89
  %91 = vmatmul.f32.gmra.mxu0 %v64
  %v92 = vpop.f32.mrf.mxu0
  %v93 = vadd.f32 0.0, %v92
  %94 = vdwg.mxu0
  %95 = vmatpush.msra.mxu0 0.0
  %96 = vmatpush.msra.mxu0 0.0
  %97 = vmatpush.msra.mxu0 0.0
  %98 = vmatpush.msra.mxu0 0.0
  %99 = vmatpush.msra.mxu0 0.0
  %100 = vmatpush.msra.mxu0 0.0
  %101 = vmatpush.msra.mxu0 0.0
  %102 = vmatpush.msra.mxu0 0.0
  %103 = vmatpush.msra.mxu0 %v50
  %104 = vmatpush.msra.mxu0 %v46
  %105 = vmatpush.msra.mxu0 %v42
  %106 = vmatpush.msra.mxu0 %v38
  %107 = vmatpush.msra.mxu0 %v34
  %108 = vmatpush.msra.mxu0 %v30
  %109 = vmatpush.msra.mxu0 %v26
  %110 = vmatpush.msra.mxu0 %v22
  %111 = vmatmul.f32.gmra.mxu0 %v55
  %v112 = vpop.f32.mrf.mxu0
  %v113 = vadd.f32 0.0, %v112
  %114 = vmatmul.f32.gmra.mxu0 %v58
  %v115 = vpop.f32.mrf.mxu0
  %v116 = vadd.f32 0.0, %v115
  %117 = vmatmul.f32.gmra.mxu0 %v61
  %v118 = vpop.f32.mrf.mxu0
  %v119 = vadd.f32 0.0, %v118
  %120 = vmatmul.f32.gmra.mxu0 %v64
  %v121 = vpop.f32.mrf.mxu0
  %v122 = vadd.f32 0.0, %v121
  %123 = vdwg.mxu0
  %124 = vmatpush.msra.mxu0 0.0
  %125 = vmatpush.msra.mxu0 0.0
  %126 = vmatpush.msra.mxu0 0.0
  %127 = vmatpush.msra.mxu0 0.0
  %128 = vmatpush.msra.mxu0 0.0
  %129 = vmatpush.msra.mxu0 0.0
  %130 = vmatpush.msra.mxu0 0.0
  %131 = vmatpush.msra.mxu0 0.0
  %132 = vmatpush.msra.mxu0 %v51
  %133 = vmatpush.msra.mxu0 %v47
  %134 = vmatpush.msra.mxu0 %v43
  %135 = vmatpush.msra.mxu0 %v39
  %136 = vmatpush.msra.mxu0 %v35
  %137 = vmatpush.msra.mxu0 %v31
  %138 = vmatpush.msra.mxu0 %v27
  %139 = vmatpush.msra.mxu0 %v23
  %140 = vmatmul.f32.gmra.mxu0 %v55
  %v141 = vpop.f32.mrf.mxu0
  %v142 = vadd.f32 0.0, %v141
  %143 = vmatmul.f32.gmra.mxu0 %v58
  %v144 = vpop.f32.mrf.mxu0
  %v145 = vadd.f32 0.0, %v144
  %146 = vmatmul.f32.gmra.mxu0 %v61
  %v147 = vpop.f32.mrf.mxu0
  %v148 = vadd.f32 0.0, %v147
  %149 = vmatmul.f32.gmra.mxu0 %v64
  %v150 = vpop.f32.mrf.mxu0
  %v151 = vadd.f32 0.0, %v150
  %152 = vdwg.mxu0
  %153 = vmatpush.msra.mxu0 0.0
  %154 = vmatpush.msra.mxu0 0.0
  %155 = vmatpush.msra.mxu0 0.0
  %156 = vmatpush.msra.mxu0 0.0
  %157 = vmatpush.msra.mxu0 0.0
  %158 = vmatpush.msra.mxu0 0.0
  %159 = vmatpush.msra.mxu0 0.0
  %160 = vmatpush.msra.mxu0 0.0
  %161 = vmatpush.msra.mxu0 %v52
  %162 = vmatpush.msra.mxu0 %v48
  %163 = vmatpush.msra.mxu0 %v44
  %164 = vmatpush.msra.mxu0 %v40
  %165 = vmatpush.msra.mxu0 %v36
  %166 = vmatpush.msra.mxu0 %v32
  %167 = vmatpush.msra.mxu0 %v28
  %168 = vmatpush.msra.mxu0 %v24
  %169 = vmatmul.f32.gmra.mxu0 %v55
  %v170 = vpop.f32.mrf.mxu0
  %v171 = vadd.f32 0.0, %v170
  %172 = vmatmul.f32.gmra.mxu0 %v58
  %v173 = vpop.f32.mrf.mxu0
  %v174 = vadd.f32 0.0, %v173
  %175 = vmatmul.f32.gmra.mxu0 %v61
  %v176 = vpop.f32.mrf.mxu0
  %v177 = vadd.f32 0.0, %v176
  %178 = vmatmul.f32.gmra.mxu0 %v64
  %v179 = vpop.f32.mrf.mxu0
  %v180 = vadd.f32 0.0, %v179
  %181 = vdwg.mxu0
  %v182 = vld [vmem:[%s2] sm:$0xf]
  %v184 = vperm.slane %v182, 0
  %v185 = vperm.slane %v182, 1
  %v186 = vperm.slane %v182, 2
  %v187 = vperm.slane %v182, 3
  %v192 = vmul.f32 %v84, %v184
  %v193 = vmul.f32 %v113, %v185
  %v194 = vmul.f32 %v142, %v186
  %v195 = vmul.f32 %v171, %v187
  %v196 = vmul.f32 %v87, %v184
  %v197 = vmul.f32 %v116, %v185
  %v198 = vmul.f32 %v145, %v186
  %v199 = vmul.f32 %v174, %v187
  %v200 = vmul.f32 %v90, %v184
  %v201 = vmul.f32 %v119, %v185
  %v202 = vmul.f32 %v148, %v186
  %v203 = vmul.f32 %v177, %v187
  %v204 = vmul.f32 %v93, %v184
  %v205 = vmul.f32 %v122, %v185
  %v206 = vmul.f32 %v151, %v186
  %v207 = vmul.f32 %v180, %v187
  %v208 = vld [vmem:[%s3] sm:$0xf]
  %v210 = vperm.slane %v208, 0
  %v211 = vperm.slane %v208, 1
  %v212 = vperm.slane %v208, 2
  %v213 = vperm.slane %v208, 3
  %v218 = vadd.f32 %v192, %v210
  %v219 = vadd.f32 %v193, %v211
  %v220 = vadd.f32 %v194, %v212
  %v221 = vadd.f32 %v195, %v213
  %v222 = vadd.f32 %v196, %v210
  %v223 = vadd.f32 %v197, %v211
  %v224 = vadd.f32 %v198, %v212
  %v225 = vadd.f32 %v199, %v213
  %v226 = vadd.f32 %v200, %v210
  %v227 = vadd.f32 %v201, %v211
  %v228 = vadd.f32 %v202, %v212
  %v229 = vadd.f32 %v203, %v213
  %v230 = vadd.f32 %v204, %v210
  %v231 = vadd.f32 %v205, %v211
  %v232 = vadd.f32 %v206, %v212
  %v233 = vadd.f32 %v207, %v213
  %v234 = vmax.f32 %v218, 0.0
  %v235 = vmax.f32 %v219, 0.0
  %v236 = vmax.f32 %v220, 0.0
  %v237 = vmax.f32 %v221, 0.0
  %v238 = vmax.f32 %v222, 0.0
  %v239 = vmax.f32 %v223, 0.0
  %v240 = vmax.f32 %v224, 0.0
  %v241 = vmax.f32 %v225, 0.0
  %v242 = vmax.f32 %v226, 0.0
  %v243 = vmax.f32 %v227, 0.0
  %v244 = vmax.f32 %v228, 0.0
  %v245 = vmax.f32 %v229, 0.0
  %v246 = vmax.f32 %v230, 0.0
  %v247 = vmax.f32 %v231, 0.0
  %v248 = vmax.f32 %v232, 0.0
  %v249 = vmax.f32 %v233, 0.0
  %250 = vst [vmem:[%s4] sm:$0xff] %v234
  %251 = vst [vmem:[%s4 + $0x8] sm:$0xff] %v235
  %252 = vst [vmem:[%s4 + $0x10] sm:$0xff] %v236
  %253 = vst [vmem:[%s4 + $0x18] sm:$0xff] %v237
  %254 = vst [vmem:[%s4 + $0x20] sm:$0xff] %v238
  %255 = vst [vmem:[%s4 + $0x28] sm:$0xff] %v239
  %256 = vst [vmem:[%s4 + $0x30] sm:$0xff] %v240
  %257 = vst [vmem:[%s4 + $0x38] sm:$0xff] %v241
  %258 = vst [vmem:[%s4 + $0x40] sm:$0xff] %v242
  %259 = vst [vmem:[%s4 + $0x48] sm:$0xff] %v243
  %260 = vst [vmem:[%s4 + $0x50] sm:$0xff] %v244
  %261 = vst [vmem:[%s4 + $0x58] sm:$0xff] %v245
  %262 = vst [vmem:[%s4 + $0x60] sm:$0xff] %v246
  %263 = vst [vmem:[%s4 + $0x68] sm:$0xff] %v247
  %264 = vst [vmem:[%s4 + $0x70] sm:$0xff] %v248
  %265 = vst [vmem:[%s4 + $0x78] sm:$0xff] %v249
  // Predicated region
  $region18: #{_upsampler_forward.5} parent=0 // pred_check
    _
  $region19: #{_upsampler_forward.5} parent=0 // pred_check_branch
    %267 = sbr.rel (0) target = $region21
  $region20: #{_upsampler_forward.5} parent=0 // pred_region
    _
  $region21: #{_upsampler_forward.5} parent=0 // pred_fallthru
    _
  // Predicated region
  $region22: #{_upsampler_forward.5} parent=0 // pred_check
    _
  $region23: #{_upsampler_forward.5} parent=0 // pred_check_branch
    %269 = sbr.rel (0) target = $region25
  $region24: #{_upsampler_forward.5} parent=0 // pred_region
    _
  $region25: #{_upsampler_forward.5} parent=0 // pred_fallthru
    _

// kernel: squeeze.6
$region0: #{squeeze.6}
  %s0 = inlined_call_operand.vmem [shape: f32[512], index: 0, kind: input, shape index: {}]
  %s1 = inlined_call_operand.vmem [shape: f32[2,32,2,4], index: 1, kind: output, shape index: {}]
  $region1: #{squeeze.6} parent=0
    #allocation0 [shape = 'u8[262144]{0}', space=vmem, size = 0x40000, scoped, tag = 'scoped mem for output reshape']
    #allocation1 [shape = 'u8[4096]{0}', space=vmem, size = 0x1000, scoped, tag = 'scoped mem for input reshape']
    %s3 = ssub.s32 16, 1
    %v4 = vld [vmem:[%s0] sm:%s3]
    %5 = vst [vmem:[#allocation1] sm:%s3] %v4
    %v6 = vld [vmem:[#allocation1] sm:$0xf]
    %vm7 = vcmask 31744
    %8 = vst.msk [vmem:[#allocation0] sm:$0x1] %vm7, %v6
    %s9 = scalar_lea.vmem [#allocation0], 127
    %10 = vst.msk [vmem:[%s9] sm:$0x2] %vm7, %v6
    %s11 = scalar_lea.vmem [#allocation0], 254
    %12 = vst.msk [vmem:[%s11] sm:$0x4] %vm7, %v6
    %s13 = scalar_lea.vmem [#allocation0], 381
    %14 = vst.msk [vmem:[%s13] sm:$0x8] %vm7, %v6
    %v15 = vld [vmem:[#allocation1] sm:$0xf]
    %16 = vrot.lane.b32.xlu0 %v15, 124
    %v17 = vpop.permute.xlu0 %16
    %vm18 = vcmask 31744
    %s19 = scalar_lea.vmem [#allocation0], 1
    %20 = vst.msk [vmem:[%s19] sm:$0x1] %vm18, %v17
    %s21 = scalar_lea.vmem [#allocation0], 128
    %22 = vst.msk [vmem:[%s21] sm:$0x2] %vm18, %v17
    %s23 = scalar_lea.vmem [#allocation0], 255
    %24 = vst.msk [vmem:[%s23] sm:$0x4] %vm18, %v17
    %s25 = scalar_lea.vmem [#allocation0], 382
    %26 = vst.msk [vmem:[%s25] sm:$0x8] %vm18, %v17
    %v27 = vld [vmem:[#allocation1] sm:$0xf]
    %28 = vrot.lane.b32.xlu0 %v27, 120
    %v29 = vpop.permute.xlu0 %28
    %vm30 = vcmask 31744
    %s31 = scalar_lea.vmem [#allocation0], 8
    %32 = vst.msk [vmem:[%s31] sm:$0x1] %vm30, %v29
    %s33 = scalar_lea.vmem [#allocation0], 135
    %34 = vst.msk [vmem:[%s33] sm:$0x2] %vm30, %v29
    %s35 = scalar_lea.vmem [#allocation0], 262
    %36 = vst.msk [vmem:[%s35] sm:$0x4] %vm30, %v29
    %s37 = scalar_lea.vmem [#allocation0], 389
    %38 = vst.msk [vmem:[%s37] sm:$0x8] %vm30, %v29
    %v39 = vld [vmem:[#allocation1] sm:$0xf]
    %40 = vrot.lane.b32.xlu0 %v39, 116
    %v41 = vpop.permute.xlu0 %40
    %vm42 = vcmask 31744
    %s43 = scalar_lea.vmem [#allocation0], 9
    %44 = vst.msk [vmem:[%s43] sm:$0x1] %vm42, %v41
    %s45 = scalar_lea.vmem [#allocation0], 136
    %46 = vst.msk [vmem:[%s45] sm:$0x2] %vm42, %v41
    %s47 = scalar_lea.vmem [#allocation0], 263
    %48 = vst.msk [vmem:[%s47] sm:$0x4] %vm42, %v41
    %s49 = scalar_lea.vmem [#allocation0], 390
    %50 = vst.msk [vmem:[%s49] sm:$0x8] %vm42, %v41
    %v51 = vld [vmem:[#allocation1] sm:$0xf]
    %52 = vrot.lane.b32.xlu0 %v51, 112
    %v53 = vpop.permute.xlu0 %52
    %vm54 = vcmask 31744
    %s55 = scalar_lea.vmem [#allocation0], 16
    %56 = vst.msk [vmem:[%s55] sm:$0x1] %vm54, %v53
    %s57 = scalar_lea.vmem [#allocation0], 143
    %58 = vst.msk [vmem:[%s57] sm:$0x2] %vm54, %v53
    %s59 = scalar_lea.vmem [#allocation0], 270
    %60 = vst.msk [vmem:[%s59] sm:$0x4] %vm54, %v53
    %s61 = scalar_lea.vmem [#allocation0], 397
    %62 = vst.msk [vmem:[%s61] sm:$0x8] %vm54, %v53
    %v63 = vld [vmem:[#allocation1] sm:$0xf]
    %64 = vrot.lane.b32.xlu0 %v63, 108
    %v65 = vpop.permute.xlu0 %64
    %vm66 = vcmask 31744
    %s67 = scalar_lea.vmem [#allocation0], 17
    %68 = vst.msk [vmem:[%s67] sm:$0x1] %vm66, %v65
    %s69 = scalar_lea.vmem [#allocation0], 144
    %70 = vst.msk [vmem:[%s69] sm:$0x2] %vm66, %v65
    %s71 = scalar_lea.vmem [#allocation0], 271
    %72 = vst.msk [vmem:[%s71] sm:$0x4] %vm66, %v65
    %s73 = scalar_lea.vmem [#allocation0], 398
    %74 = vst.msk [vmem:[%s73] sm:$0x8] %vm66, %v65
    %v75 = vld [vmem:[#allocation1] sm:$0xf]
    %76 = vrot.lane.b32.xlu0 %v75, 104
    %v77 = vpop.permute.xlu0 %76
    %vm78 = vcmask 31744
    %s79 = scalar_lea.vmem [#allocation0], 24
    %80 = vst.msk [vmem:[%s79] sm:$0x1] %vm78, %v77
    %s81 = scalar_lea.vmem [#allocation0], 151
    %82 = vst.msk [vmem:[%s81] sm:$0x2] %vm78, %v77
    %s83 = scalar_lea.vmem [#allocation0], 278
    %84 = vst.msk [vmem:[%s83] sm:$0x4] %vm78, %v77
    %s85 = scalar_lea.vmem [#allocation0], 405
    %86 = vst.msk [vmem:[%s85] sm:$0x8] %vm78, %v77
    %v87 = vld [vmem:[#allocation1] sm:$0xf]
    %88 = vrot.lane.b32.xlu0 %v87, 100
    %v89 = vpop.permute.xlu0 %88
    %vm90 = vcmask 31744
    %s91 = scalar_lea.vmem [#allocation0], 25
    %92 = vst.msk [vmem:[%s91] sm:$0x1] %vm90, %v89
    %s93 = scalar_lea.vmem [#allocation0], 152
    %94 = vst.msk [vmem:[%s93] sm:$0x2] %vm90, %v89
    %s95 = scalar_lea.vmem [#allocation0], 279
    %96 = vst.msk [vmem:[%s95] sm:$0x4] %vm90, %v89
    %s97 = scalar_lea.vmem [#allocation0], 406
    %98 = vst.msk [vmem:[%s97] sm:$0x8] %vm90, %v89
    %v99 = vld [vmem:[#allocation1] sm:$0xf]
    %100 = vrot.lane.b32.xlu0 %v99, 96
    %v101 = vpop.permute.xlu0 %100
    %vm102 = vcmask 31744
    %s103 = scalar_lea.vmem [#allocation0], 32
    %104 = vst.msk [vmem:[%s103] sm:$0x1] %vm102, %v101
    %s105 = scalar_lea.vmem [#allocation0], 159
    %106 = vst.msk [vmem:[%s105] sm:$0x2] %vm102, %v101
    %s107 = scalar_lea.vmem [#allocation0], 286
    %108 = vst.msk [vmem:[%s107] sm:$0x4] %vm102, %v101
    %s109 = scalar_lea.vmem [#allocation0], 413
    %110 = vst.msk [vmem:[%s109] sm:$0x8] %vm102, %v101
    %v111 = vld [vmem:[#allocation1] sm:$0xf]
    %112 = vrot.lane.b32.xlu0 %v111, 92
    %v113 = vpop.permute.xlu0 %112
    %vm114 = vcmask 31744
    %s115 = scalar_lea.vmem [#allocation0], 33
    %116 = vst.msk [vmem:[%s115] sm:$0x1] %vm114, %v113
    %s117 = scalar_lea.vmem [#allocation0], 160
    %118 = vst.msk [vmem:[%s117] sm:$0x2] %vm114, %v113
    %s119 = scalar_lea.vmem [#allocation0], 287
    %120 = vst.msk [vmem:[%s119] sm:$0x4] %vm114, %v113
    %s121 = scalar_lea.vmem [#allocation0], 414
    %122 = vst.msk [vmem:[%s121] sm:$0x8] %vm114, %v113
    %v123 = vld [vmem:[#allocation1] sm:$0xf]
    %124 = vrot.lane.b32.xlu0 %v123, 88
    %v125 = vpop.permute.xlu0 %124
    %vm126 = vcmask 31744
    %s127 = scalar_lea.vmem [#allocation0], 40
    %128 = vst.msk [vmem:[%s127] sm:$0x1] %vm126, %v125
    %s129 = scalar_lea.vmem [#allocation0], 167
    %130 = vst.msk [vmem:[%s129] sm:$0x2] %vm126, %v125
    %s131 = scalar_lea.vmem [#allocation0], 294
    %132 = vst.msk [vmem:[%s131] sm:$0x4] %vm126, %v125
    %s133 = scalar_lea.vmem [#allocation0], 421
    %134 = vst.msk [vmem:[%s133] sm:$0x8] %vm126, %v125
    %v135 = vld [vmem:[#allocation1] sm:$0xf]
    %136 = vrot.lane.b32.xlu0 %v135, 84
    %v137 = vpop.permute.xlu0 %136
    %vm138 = vcmask 31744
    %s139 = scalar_lea.vmem [#allocation0], 41
    %140 = vst.msk [vmem:[%s139] sm:$0x1] %vm138, %v137
    %s141 = scalar_lea.vmem [#allocation0], 168
    %142 = vst.msk [vmem:[%s141] sm:$0x2] %vm138, %v137
    %s143 = scalar_lea.vmem [#allocation0], 295
    %144 = vst.msk [vmem:[%s143] sm:$0x4] %vm138, %v137
    %s145 = scalar_lea.vmem [#allocation0], 422
    %146 = vst.msk [vmem:[%s145] sm:$0x8] %vm138, %v137
    %v147 = vld [vmem:[#allocation1] sm:$0xf]
    %148 = vrot.lane.b32.xlu0 %v147, 80
    %v149 = vpop.permute.xlu0 %148
    %vm150 = vcmask 31744
    %s151 = scalar_lea.vmem [#allocation0], 48
    %152 = vst.msk [vmem:[%s151] sm:$0x1] %vm150, %v149
    %s153 = scalar_lea.vmem [#allocation0], 175
    %154 = vst.msk [vmem:[%s153] sm:$0x2] %vm150, %v149
    %s155 = scalar_lea.vmem [#allocation0], 302
    %156 = vst.msk [vmem:[%s155] sm:$0x4] %vm150, %v149
    %s157 = scalar_lea.vmem [#allocation0], 429
    %158 = vst.msk [vmem:[%s157] sm:$0x8] %vm150, %v149
    %v159 = vld [vmem:[#allocation1] sm:$0xf]
    %160 = vrot.lane.b32.xlu0 %v159, 76
    %v161 = vpop.permute.xlu0 %160
    %vm162 = vcmask 31744
    %s163 = scalar_lea.vmem [#allocation0], 49
    %164 = vst.msk [vmem:[%s163] sm:$0x1] %vm162, %v161
    %s165 = scalar_lea.vmem [#allocation0], 176
    %166 = vst.msk [vmem:[%s165] sm:$0x2] %vm162, %v161
    %s167 = scalar_lea.vmem [#allocation0], 303
    %168 = vst.msk [vmem:[%s167] sm:$0x4] %vm162, %v161
    %s169 = scalar_lea.vmem [#allocation0], 430
    %170 = vst.msk [vmem:[%s169] sm:$0x8] %vm162, %v161
    %v171 = vld [vmem:[#allocation1] sm:$0xf]
    %172 = vrot.lane.b32.xlu0 %v171, 72
    %v173 = vpop.permute.xlu0 %172
    %vm174 = vcmask 31744
    %s175 = scalar_lea.vmem [#allocation0], 56
    %176 = vst.msk [vmem:[%s175] sm:$0x1] %vm174, %v173
    %s177 = scalar_lea.vmem [#allocation0], 183
    %178 = vst.msk [vmem:[%s177] sm:$0x2] %vm174, %v173
    %s179 = scalar_lea.vmem [#allocation0], 310
    %180 = vst.msk [vmem:[%s179] sm:$0x4] %vm174, %v173
    %s181 = scalar_lea.vmem [#allocation0], 437
    %182 = vst.msk [vmem:[%s181] sm:$0x8] %vm174, %v173
    %v183 = vld [vmem:[#allocation1] sm:$0xf]
    %184 = vrot.lane.b32.xlu0 %v183, 68
    %v185 = vpop.permute.xlu0 %184
    %vm186 = vcmask 31744
    %s187 = scalar_lea.vmem [#allocation0], 57
    %188 = vst.msk [vmem:[%s187] sm:$0x1] %vm186, %v185
    %s189 = scalar_lea.vmem [#allocation0], 184
    %190 = vst.msk [vmem:[%s189] sm:$0x2] %vm186, %v185
    %s191 = scalar_lea.vmem [#allocation0], 311
    %192 = vst.msk [vmem:[%s191] sm:$0x4] %vm186, %v185
    %s193 = scalar_lea.vmem [#allocation0], 438
    %194 = vst.msk [vmem:[%s193] sm:$0x8] %vm186, %v185
    %v195 = vld [vmem:[#allocation1] sm:$0xf]
    %196 = vrot.lane.b32.xlu0 %v195, 64
    %v197 = vpop.permute.xlu0 %196
    %vm198 = vcmask 31744
    %s199 = scalar_lea.vmem [#allocation0], 64
    %200 = vst.msk [vmem:[%s199] sm:$0x1] %vm198, %v197
    %s201 = scalar_lea.vmem [#allocation0], 191
    %202 = vst.msk [vmem:[%s201] sm:$0x2] %vm198, %v197
    %s203 = scalar_lea.vmem [#allocation0], 318
    %204 = vst.msk [vmem:[%s203] sm:$0x4] %vm198, %v197
    %s205 = scalar_lea.vmem [#allocation0], 445
    %206 = vst.msk [vmem:[%s205] sm:$0x8] %vm198, %v197
    %v207 = vld [vmem:[#allocation1] sm:$0xf]
    %208 = vrot.lane.b32.xlu0 %v207, 60
    %v209 = vpop.permute.xlu0 %208
    %vm210 = vcmask 31744
    %s211 = scalar_lea.vmem [#allocation0], 65
    %212 = vst.msk [vmem:[%s211] sm:$0x1] %vm210, %v209
    %s213 = scalar_lea.vmem [#allocation0], 192
    %214 = vst.msk [vmem:[%s213] sm:$0x2] %vm210, %v209
    %s215 = scalar_lea.vmem [#allocation0], 319
    %216 = vst.msk [vmem:[%s215] sm:$0x4] %vm210, %v209
    %s217 = scalar_lea.vmem [#allocation0], 446
    %218 = vst.msk [vmem:[%s217] sm:$0x8] %vm210, %v209
    %v219 = vld [vmem:[#allocation1] sm:$0xf]
    %220 = vrot.lane.b32.xlu0 %v219, 56
    %v221 = vpop.permute.xlu0 %220
    %vm222 = vcmask 31744
    %s223 = scalar_lea.vmem [#allocation0], 72
    %224 = vst.msk [vmem:[%s223] sm:$0x1] %vm222, %v221
    %s225 = scalar_lea.vmem [#allocation0], 199
    %226 = vst.msk [vmem:[%s225] sm:$0x2] %vm222, %v221
    %s227 = scalar_lea.vmem [#allocation0], 326
    %228 = vst.msk [vmem:[%s227] sm:$0x4] %vm222, %v221
    %s229 = scalar_lea.vmem [#allocation0], 453
    %230 = vst.msk [vmem:[%s229] sm:$0x8] %vm222, %v221
    %v231 = vld [vmem:[#allocation1] sm:$0xf]
    %232 = vrot.lane.b32.xlu0 %v231, 52
    %v233 = vpop.permute.xlu0 %232
    %vm234 = vcmask 31744
    %s235 = scalar_lea.vmem [#allocation0], 73
    %236 = vst.msk [vmem:[%s235] sm:$0x1] %vm234, %v233
    %s237 = scalar_lea.vmem [#allocation0], 200
    %238 = vst.msk [vmem:[%s237] sm:$0x2] %vm234, %v233
    %s239 = scalar_lea.vmem [#allocation0], 327
    %240 = vst.msk [vmem:[%s239] sm:$0x4] %vm234, %v233
    %s241 = scalar_lea.vmem [#allocation0], 454
    %242 = vst.msk [vmem:[%s241] sm:$0x8] %vm234, %v233
    %v243 = vld [vmem:[#allocation1] sm:$0xf]
    %244 = vrot.lane.b32.xlu0 %v243, 48
    %v245 = vpop.permute.xlu0 %244
    %vm246 = vcmask 31744
    %s247 = scalar_lea.vmem [#allocation0], 80
    %248 = vst.msk [vmem:[%s247] sm:$0x1] %vm246, %v245
    %s249 = scalar_lea.vmem [#allocation0], 207
    %250 = vst.msk [vmem:[%s249] sm:$0x2] %vm246, %v245
    %s251 = scalar_lea.vmem [#allocation0], 334
    %252 = vst.msk [vmem:[%s251] sm:$0x4] %vm246, %v245
    %s253 = scalar_lea.vmem [#allocation0], 461
    %254 = vst.msk [vmem:[%s253] sm:$0x8] %vm246, %v245
    %v255 = vld [vmem:[#allocation1] sm:$0xf]
    %256 = vrot.lane.b32.xlu0 %v255, 44
    %v257 = vpop.permute.xlu0 %256
    %vm258 = vcmask 31744
    %s259 = scalar_lea.vmem [#allocation0], 81
    %260 = vst.msk [vmem:[%s259] sm:$0x1] %vm258, %v257
    %s261 = scalar_lea.vmem [#allocation0], 208
    %262 = vst.msk [vmem:[%s261] sm:$0x2] %vm258, %v257
    %s263 = scalar_lea.vmem [#allocation0], 335
    %264 = vst.msk [vmem:[%s263] sm:$0x4] %vm258, %v257
    %s265 = scalar_lea.vmem [#allocation0], 462
    %266 = vst.msk [vmem:[%s265] sm:$0x8] %vm258, %v257
    %v267 = vld [vmem:[#allocation1] sm:$0xf]
    %268 = vrot.lane.b32.xlu0 %v267, 40
    %v269 = vpop.permute.xlu0 %268
    %vm270 = vcmask 31744
    %s271 = scalar_lea.vmem [#allocation0], 88
    %272 = vst.msk [vmem:[%s271] sm:$0x1] %vm270, %v269
    %s273 = scalar_lea.vmem [#allocation0], 215
    %274 = vst.msk [vmem:[%s273] sm:$0x2] %vm270, %v269
    %s275 = scalar_lea.vmem [#allocation0], 342
    %276 = vst.msk [vmem:[%s275] sm:$0x4] %vm270, %v269
    %s277 = scalar_lea.vmem [#allocation0], 469
    %278 = vst.msk [vmem:[%s277] sm:$0x8] %vm270, %v269
    %v279 = vld [vmem:[#allocation1] sm:$0xf]
    %280 = vrot.lane.b32.xlu0 %v279, 36
    %v281 = vpop.permute.xlu0 %280
    %vm282 = vcmask 31744
    %s283 = scalar_lea.vmem [#allocation0], 89
    %284 = vst.msk [vmem:[%s283] sm:$0x1] %vm282, %v281
    %s285 = scalar_lea.vmem [#allocation0], 216
    %286 = vst.msk [vmem:[%s285] sm:$0x2] %vm282, %v281
    %s287 = scalar_lea.vmem [#allocation0], 343
    %288 = vst.msk [vmem:[%s287] sm:$0x4] %vm282, %v281
    %s289 = scalar_lea.vmem [#allocation0], 470
    %290 = vst.msk [vmem:[%s289] sm:$0x8] %vm282, %v281
    %v291 = vld [vmem:[#allocation1] sm:$0xf]
    %292 = vrot.lane.b32.xlu0 %v291, 32
    %v293 = vpop.permute.xlu0 %292
    %vm294 = vcmask 31744
    %s295 = scalar_lea.vmem [#allocation0], 96
    %296 = vst.msk [vmem:[%s295] sm:$0x1] %vm294, %v293
    %s297 = scalar_lea.vmem [#allocation0], 223
    %298 = vst.msk [vmem:[%s297] sm:$0x2] %vm294, %v293
    %s299 = scalar_lea.vmem [#allocation0], 350
    %300 = vst.msk [vmem:[%s299] sm:$0x4] %vm294, %v293
    %s301 = scalar_lea.vmem [#allocation0], 477
    %302 = vst.msk [vmem:[%s301] sm:$0x8] %vm294, %v293
    %v303 = vld [vmem:[#allocation1] sm:$0xf]
    %304 = vrot.lane.b32.xlu0 %v303, 28
    %v305 = vpop.permute.xlu0 %304
    %vm306 = vcmask 31744
    %s307 = scalar_lea.vmem [#allocation0], 97
    %308 = vst.msk [vmem:[%s307] sm:$0x1] %vm306, %v305
    %s309 = scalar_lea.vmem [#allocation0], 224
    %310 = vst.msk [vmem:[%s309] sm:$0x2] %vm306, %v305
    %s311 = scalar_lea.vmem [#allocation0], 351
    %312 = vst.msk [vmem:[%s311] sm:$0x4] %vm306, %v305
    %s313 = scalar_lea.vmem [#allocation0], 478
    %314 = vst.msk [vmem:[%s313] sm:$0x8] %vm306, %v305
    %v315 = vld [vmem:[#allocation1] sm:$0xf]
    %316 = vrot.lane.b32.xlu0 %v315, 24
    %v317 = vpop.permute.xlu0 %316
    %vm318 = vcmask 31744
    %s319 = scalar_lea.vmem [#allocation0], 104
    %320 = vst.msk [vmem:[%s319] sm:$0x1] %vm318, %v317
    %s321 = scalar_lea.vmem [#allocation0], 231
    %322 = vst.msk [vmem:[%s321] sm:$0x2] %vm318, %v317
    %s323 = scalar_lea.vmem [#allocation0], 358
    %324 = vst.msk [vmem:[%s323] sm:$0x4] %vm318, %v317
    %s325 = scalar_lea.vmem [#allocation0], 485
    %326 = vst.msk [vmem:[%s325] sm:$0x8] %vm318, %v317
    %v327 = vld [vmem:[#allocation1] sm:$0xf]
    %328 = vrot.lane.b32.xlu0 %v327, 20
    %v329 = vpop.permute.xlu0 %328
    %vm330 = vcmask 31744
    %s331 = scalar_lea.vmem [#allocation0], 105
    %332 = vst.msk [vmem:[%s331] sm:$0x1] %vm330, %v329
    %s333 = scalar_lea.vmem [#allocation0], 232
    %334 = vst.msk [vmem:[%s333] sm:$0x2] %vm330, %v329
    %s335 = scalar_lea.vmem [#allocation0], 359
    %336 = vst.msk [vmem:[%s335] sm:$0x4] %vm330, %v329
    %s337 = scalar_lea.vmem [#allocation0], 486
    %338 = vst.msk [vmem:[%s337] sm:$0x8] %vm330, %v329
    %v339 = vld [vmem:[#allocation1] sm:$0xf]
    %340 = vrot.lane.b32.xlu0 %v339, 16
    %v341 = vpop.permute.xlu0 %340
    %vm342 = vcmask 31744
    %s343 = scalar_lea.vmem [#allocation0], 112
    %344 = vst.msk [vmem:[%s343] sm:$0x1] %vm342, %v341
    %s345 = scalar_lea.vmem [#allocation0], 239
    %346 = vst.msk [vmem:[%s345] sm:$0x2] %vm342, %v341
    %s347 = scalar_lea.vmem [#allocation0], 366
    %348 = vst.msk [vmem:[%s347] sm:$0x4] %vm342, %v341
    %s349 = scalar_lea.vmem [#allocation0], 493
    %350 = vst.msk [vmem:[%s349] sm:$0x8] %vm342, %v341
    %v351 = vld [vmem:[#allocation1] sm:$0xf]
    %352 = vrot.lane.b32.xlu0 %v351, 12
    %v353 = vpop.permute.xlu0 %352
    %vm354 = vcmask 31744
    %s355 = scalar_lea.vmem [#allocation0], 113
    %356 = vst.msk [vmem:[%s355] sm:$0x1] %vm354, %v353
    %s357 = scalar_lea.vmem [#allocation0], 240
    %358 = vst.msk [vmem:[%s357] sm:$0x2] %vm354, %v353
    %s359 = scalar_lea.vmem [#allocation0], 367
    %360 = vst.msk [vmem:[%s359] sm:$0x4] %vm354, %v353
    %s361 = scalar_lea.vmem [#allocation0], 494
    %362 = vst.msk [vmem:[%s361] sm:$0x8] %vm354, %v353
    %v363 = vld [vmem:[#allocation1] sm:$0xf]
    %364 = vrot.lane.b32.xlu0 %v363, 8
    %v365 = vpop.permute.xlu0 %364
    %vm366 = vcmask 31744
    %s367 = scalar_lea.vmem [#allocation0], 120
    %368 = vst.msk [vmem:[%s367] sm:$0x1] %vm366, %v365
    %s369 = scalar_lea.vmem [#allocation0], 247
    %370 = vst.msk [vmem:[%s369] sm:$0x2] %vm366, %v365
    %s371 = scalar_lea.vmem [#allocation0], 374
    %372 = vst.msk [vmem:[%s371] sm:$0x4] %vm366, %v365
    %s373 = scalar_lea.vmem [#allocation0], 501
    %374 = vst.msk [vmem:[%s373] sm:$0x8] %vm366, %v365
    %v375 = vld [vmem:[#allocation1] sm:$0xf]
    %376 = vrot.lane.b32.xlu0 %v375, 4
    %v377 = vpop.permute.xlu0 %376
    %vm378 = vcmask 31744
    %s379 = scalar_lea.vmem [#allocation0], 121
    %380 = vst.msk [vmem:[%s379] sm:$0x1] %vm378, %v377
    %s381 = scalar_lea.vmem [#allocation0], 248
    %382 = vst.msk [vmem:[%s381] sm:$0x2] %vm378, %v377
    %s383 = scalar_lea.vmem [#allocation0], 375
    %384 = vst.msk [vmem:[%s383] sm:$0x4] %vm378, %v377
    %s385 = scalar_lea.vmem [#allocation0], 502
    %386 = vst.msk [vmem:[%s385] sm:$0x8] %vm378, %v377
    %s388 = ssub.s32 4, 1
    %v389 = vld [vmem:[#allocation0] sm:%s388]
    %s391 = ssub.s32 4, 1
    %392 = vst [vmem:[%s1] sm:%s391] %v389
    %s393 = scalar_lea.vmem [#allocation0], 8
    %v394 = vld [vmem:[%s393] sm:%s388]
    %s396 = ssub.s32 4, 1
    %s397 = scalar_lea.vmem %s1, 2
    %398 = vst [vmem:[%s397] sm:%s396] %v394
    %s399 = scalar_lea.vmem [#allocation0], 16
    %v400 = vld [vmem:[%s399] sm:%s388]
    %s402 = ssub.s32 4, 1
    %s403 = scalar_lea.vmem %s1, 4
    %404 = vst [vmem:[%s403] sm:%s402] %v400
    %s405 = scalar_lea.vmem [#allocation0], 24
    %v406 = vld [vmem:[%s405] sm:%s388]
    %s408 = ssub.s32 4, 1
    %s409 = scalar_lea.vmem %s1, 6
    %410 = vst [vmem:[%s409] sm:%s408] %v406
    %s411 = scalar_lea.vmem [#allocation0], 32
    %v412 = vld [vmem:[%s411] sm:%s388]
    %s414 = ssub.s32 4, 1
    %s415 = scalar_lea.vmem %s1, 8
    %416 = vst [vmem:[%s415] sm:%s414] %v412
    %s417 = scalar_lea.vmem [#allocation0], 40
    %v418 = vld [vmem:[%s417] sm:%s388]
    %s420 = ssub.s32 4, 1
    %s421 = scalar_lea.vmem %s1, 10
    %422 = vst [vmem:[%s421] sm:%s420] %v418
    %s423 = scalar_lea.vmem [#allocation0], 48
    %v424 = vld [vmem:[%s423] sm:%s388]
    %s426 = ssub.s32 4, 1
    %s427 = scalar_lea.vmem %s1, 12
    %428 = vst [vmem:[%s427] sm:%s426] %v424
    %s429 = scalar_lea.vmem [#allocation0], 56
    %v430 = vld [vmem:[%s429] sm:%s388]
    %s432 = ssub.s32 4, 1
    %s433 = scalar_lea.vmem %s1, 14
    %434 = vst [vmem:[%s433] sm:%s432] %v430
    %s435 = scalar_lea.vmem [#allocation0], 64
    %v436 = vld [vmem:[%s435] sm:%s388]
    %s438 = ssub.s32 4, 1
    %s439 = scalar_lea.vmem %s1, 16
    %440 = vst [vmem:[%s439] sm:%s438] %v436
    %s441 = scalar_lea.vmem [#allocation0], 72
    %v442 = vld [vmem:[%s441] sm:%s388]
    %s444 = ssub.s32 4, 1
    %s445 = scalar_lea.vmem %s1, 18
    %446 = vst [vmem:[%s445] sm:%s444] %v442
    %s447 = scalar_lea.vmem [#allocation0], 80
    %v448 = vld [vmem:[%s447] sm:%s388]
    %s450 = ssub.s32 4, 1
    %s451 = scalar_lea.vmem %s1, 20
    %452 = vst [vmem:[%s451] sm:%s450] %v448
    %s453 = scalar_lea.vmem [#allocation0], 88
    %v454 = vld [vmem:[%s453] sm:%s388]
    %s456 = ssub.s32 4, 1
    %s457 = scalar_lea.vmem %s1, 22
    %458 = vst [vmem:[%s457] sm:%s456] %v454
    %s459 = scalar_lea.vmem [#allocation0], 96
    %v460 = vld [vmem:[%s459] sm:%s388]
    %s462 = ssub.s32 4, 1
    %s463 = scalar_lea.vmem %s1, 24
    %464 = vst [vmem:[%s463] sm:%s462] %v460
    %s465 = scalar_lea.vmem [#allocation0], 104
    %v466 = vld [vmem:[%s465] sm:%s388]
    %s468 = ssub.s32 4, 1
    %s469 = scalar_lea.vmem %s1, 26
    %470 = vst [vmem:[%s469] sm:%s468] %v466
    %s471 = scalar_lea.vmem [#allocation0], 112
    %v472 = vld [vmem:[%s471] sm:%s388]
    %s474 = ssub.s32 4, 1
    %s475 = scalar_lea.vmem %s1, 28
    %476 = vst [vmem:[%s475] sm:%s474] %v472
    %s477 = scalar_lea.vmem [#allocation0], 120
    %v478 = vld [vmem:[%s477] sm:%s388]
    %s480 = ssub.s32 4, 1
    %s481 = scalar_lea.vmem %s1, 30
    %482 = vst [vmem:[%s481] sm:%s480] %v478
    %s483 = scalar_lea.vmem [#allocation0], 128
    %v484 = vld [vmem:[%s483] sm:%s388]
    %s486 = ssub.s32 4, 1
    %s487 = scalar_lea.vmem %s1, 32
    %488 = vst [vmem:[%s487] sm:%s486] %v484
    %s489 = scalar_lea.vmem [#allocation0], 136
    %v490 = vld [vmem:[%s489] sm:%s388]
    %s492 = ssub.s32 4, 1
    %s493 = scalar_lea.vmem %s1, 34
    %494 = vst [vmem:[%s493] sm:%s492] %v490
    %s495 = scalar_lea.vmem [#allocation0], 144
    %v496 = vld [vmem:[%s495] sm:%s388]
    %s498 = ssub.s32 4, 1
    %s499 = scalar_lea.vmem %s1, 36
    %500 = vst [vmem:[%s499] sm:%s498] %v496
    %s501 = scalar_lea.vmem [#allocation0], 152
    %v502 = vld [vmem:[%s501] sm:%s388]
    %s504 = ssub.s32 4, 1
    %s505 = scalar_lea.vmem %s1, 38
    %506 = vst [vmem:[%s505] sm:%s504] %v502
    %s507 = scalar_lea.vmem [#allocation0], 160
    %v508 = vld [vmem:[%s507] sm:%s388]
    %s510 = ssub.s32 4, 1
    %s511 = scalar_lea.vmem %s1, 40
    %512 = vst [vmem:[%s511] sm:%s510] %v508
    %s513 = scalar_lea.vmem [#allocation0], 168
    %v514 = vld [vmem:[%s513] sm:%s388]
    %s516 = ssub.s32 4, 1
    %s517 = scalar_lea.vmem %s1, 42
    %518 = vst [vmem:[%s517] sm:%s516] %v514
    %s519 = scalar_lea.vmem [#allocation0], 176
    %v520 = vld [vmem:[%s519] sm:%s388]
    %s522 = ssub.s32 4, 1
    %s523 = scalar_lea.vmem %s1, 44
    %524 = vst [vmem:[%s523] sm:%s522] %v520
    %s525 = scalar_lea.vmem [#allocation0], 184
    %v526 = vld [vmem:[%s525] sm:%s388]
    %s528 = ssub.s32 4, 1
    %s529 = scalar_lea.vmem %s1, 46
    %530 = vst [vmem:[%s529] sm:%s528] %v526
    %s531 = scalar_lea.vmem [#allocation0], 192
    %v532 = vld [vmem:[%s531] sm:%s388]
    %s534 = ssub.s32 4, 1
    %s535 = scalar_lea.vmem %s1, 48
    %536 = vst [vmem:[%s535] sm:%s534] %v532
    %s537 = scalar_lea.vmem [#allocation0], 200
    %v538 = vld [vmem:[%s537] sm:%s388]
    %s540 = ssub.s32 4, 1
    %s541 = scalar_lea.vmem %s1, 50
    %542 = vst [vmem:[%s541] sm:%s540] %v538
    %s543 = scalar_lea.vmem [#allocation0], 208
    %v544 = vld [vmem:[%s543] sm:%s388]
    %s546 = ssub.s32 4, 1
    %s547 = scalar_lea.vmem %s1, 52
    %548 = vst [vmem:[%s547] sm:%s546] %v544
    %s549 = scalar_lea.vmem [#allocation0], 216
    %v550 = vld [vmem:[%s549] sm:%s388]
    %s552 = ssub.s32 4, 1
    %s553 = scalar_lea.vmem %s1, 54
    %554 = vst [vmem:[%s553] sm:%s552] %v550
    %s555 = scalar_lea.vmem [#allocation0], 224
    %v556 = vld [vmem:[%s555] sm:%s388]
    %s558 = ssub.s32 4, 1
    %s559 = scalar_lea.vmem %s1, 56
    %560 = vst [vmem:[%s559] sm:%s558] %v556
    %s561 = scalar_lea.vmem [#allocation0], 232
    %v562 = vld [vmem:[%s561] sm:%s388]
    %s564 = ssub.s32 4, 1
    %s565 = scalar_lea.vmem %s1, 58
    %566 = vst [vmem:[%s565] sm:%s564] %v562
    %s567 = scalar_lea.vmem [#allocation0], 240
    %v568 = vld [vmem:[%s567] sm:%s388]
    %s570 = ssub.s32 4, 1
    %s571 = scalar_lea.vmem %s1, 60
    %572 = vst [vmem:[%s571] sm:%s570] %v568
    %s573 = scalar_lea.vmem [#allocation0], 248
    %v574 = vld [vmem:[%s573] sm:%s388]
    %s576 = ssub.s32 4, 1
    %s577 = scalar_lea.vmem %s1, 62
    %578 = vst [vmem:[%s577] sm:%s576] %v574
    %s579 = scalar_lea.vmem [#allocation0], 256
    %v580 = vld [vmem:[%s579] sm:%s388]
    %s582 = ssub.s32 4, 1
    %s583 = scalar_lea.vmem %s1, 64
    %584 = vst [vmem:[%s583] sm:%s582] %v580
    %s585 = scalar_lea.vmem [#allocation0], 264
    %v586 = vld [vmem:[%s585] sm:%s388]
    %s588 = ssub.s32 4, 1
    %s589 = scalar_lea.vmem %s1, 66
    %590 = vst [vmem:[%s589] sm:%s588] %v586
    %s591 = scalar_lea.vmem [#allocation0], 272
    %v592 = vld [vmem:[%s591] sm:%s388]
    %s594 = ssub.s32 4, 1
    %s595 = scalar_lea.vmem %s1, 68
    %596 = vst [vmem:[%s595] sm:%s594] %v592
    %s597 = scalar_lea.vmem [#allocation0], 280
    %v598 = vld [vmem:[%s597] sm:%s388]
    %s600 = ssub.s32 4, 1
    %s601 = scalar_lea.vmem %s1, 70
    %602 = vst [vmem:[%s601] sm:%s600] %v598
    %s603 = scalar_lea.vmem [#allocation0], 288
    %v604 = vld [vmem:[%s603] sm:%s388]
    %s606 = ssub.s32 4, 1
    %s607 = scalar_lea.vmem %s1, 72
    %608 = vst [vmem:[%s607] sm:%s606] %v604
    %s609 = scalar_lea.vmem [#allocation0], 296
    %v610 = vld [vmem:[%s609] sm:%s388]
    %s612 = ssub.s32 4, 1
    %s613 = scalar_lea.vmem %s1, 74
    %614 = vst [vmem:[%s613] sm:%s612] %v610
    %s615 = scalar_lea.vmem [#allocation0], 304
    %v616 = vld [vmem:[%s615] sm:%s388]
    %s618 = ssub.s32 4, 1
    %s619 = scalar_lea.vmem %s1, 76
    %620 = vst [vmem:[%s619] sm:%s618] %v616
    %s621 = scalar_lea.vmem [#allocation0], 312
    %v622 = vld [vmem:[%s621] sm:%s388]
    %s624 = ssub.s32 4, 1
    %s625 = scalar_lea.vmem %s1, 78
    %626 = vst [vmem:[%s625] sm:%s624] %v622
    %s627 = scalar_lea.vmem [#allocation0], 320
    %v628 = vld [vmem:[%s627] sm:%s388]
    %s630 = ssub.s32 4, 1
    %s631 = scalar_lea.vmem %s1, 80
    %632 = vst [vmem:[%s631] sm:%s630] %v628
    %s633 = scalar_lea.vmem [#allocation0], 328
    %v634 = vld [vmem:[%s633] sm:%s388]
    %s636 = ssub.s32 4, 1
    %s637 = scalar_lea.vmem %s1, 82
    %638 = vst [vmem:[%s637] sm:%s636] %v634
    %s639 = scalar_lea.vmem [#allocation0], 336
    %v640 = vld [vmem:[%s639] sm:%s388]
    %s642 = ssub.s32 4, 1
    %s643 = scalar_lea.vmem %s1, 84
    %644 = vst [vmem:[%s643] sm:%s642] %v640
    %s645 = scalar_lea.vmem [#allocation0], 344
    %v646 = vld [vmem:[%s645] sm:%s388]
    %s648 = ssub.s32 4, 1
    %s649 = scalar_lea.vmem %s1, 86
    %650 = vst [vmem:[%s649] sm:%s648] %v646
    %s651 = scalar_lea.vmem [#allocation0], 352
    %v652 = vld [vmem:[%s651] sm:%s388]
    %s654 = ssub.s32 4, 1
    %s655 = scalar_lea.vmem %s1, 88
    %656 = vst [vmem:[%s655] sm:%s654] %v652
    %s657 = scalar_lea.vmem [#allocation0], 360
    %v658 = vld [vmem:[%s657] sm:%s388]
    %s660 = ssub.s32 4, 1
    %s661 = scalar_lea.vmem %s1, 90
    %662 = vst [vmem:[%s661] sm:%s660] %v658
    %s663 = scalar_lea.vmem [#allocation0], 368
    %v664 = vld [vmem:[%s663] sm:%s388]
    %s666 = ssub.s32 4, 1
    %s667 = scalar_lea.vmem %s1, 92
    %668 = vst [vmem:[%s667] sm:%s666] %v664
    %s669 = scalar_lea.vmem [#allocation0], 376
    %v670 = vld [vmem:[%s669] sm:%s388]
    %s672 = ssub.s32 4, 1
    %s673 = scalar_lea.vmem %s1, 94
    %674 = vst [vmem:[%s673] sm:%s672] %v670
    %s675 = scalar_lea.vmem [#allocation0], 384
    %v676 = vld [vmem:[%s675] sm:%s388]
    %s678 = ssub.s32 4, 1
    %s679 = scalar_lea.vmem %s1, 96
    %680 = vst [vmem:[%s679] sm:%s678] %v676
    %s681 = scalar_lea.vmem [#allocation0], 392
    %v682 = vld [vmem:[%s681] sm:%s388]
    %s684 = ssub.s32 4, 1
    %s685 = scalar_lea.vmem %s1, 98
    %686 = vst [vmem:[%s685] sm:%s684] %v682
    %s687 = scalar_lea.vmem [#allocation0], 400
    %v688 = vld [vmem:[%s687] sm:%s388]
    %s690 = ssub.s32 4, 1
    %s691 = scalar_lea.vmem %s1, 100
    %692 = vst [vmem:[%s691] sm:%s690] %v688
    %s693 = scalar_lea.vmem [#allocation0], 408
    %v694 = vld [vmem:[%s693] sm:%s388]
    %s696 = ssub.s32 4, 1
    %s697 = scalar_lea.vmem %s1, 102
    %698 = vst [vmem:[%s697] sm:%s696] %v694
    %s699 = scalar_lea.vmem [#allocation0], 416
    %v700 = vld [vmem:[%s699] sm:%s388]
    %s702 = ssub.s32 4, 1
    %s703 = scalar_lea.vmem %s1, 104
    %704 = vst [vmem:[%s703] sm:%s702] %v700
    %s705 = scalar_lea.vmem [#allocation0], 424
    %v706 = vld [vmem:[%s705] sm:%s388]
    %s708 = ssub.s32 4, 1
    %s709 = scalar_lea.vmem %s1, 106
    %710 = vst [vmem:[%s709] sm:%s708] %v706
    %s711 = scalar_lea.vmem [#allocation0], 432
    %v712 = vld [vmem:[%s711] sm:%s388]
    %s714 = ssub.s32 4, 1
    %s715 = scalar_lea.vmem %s1, 108
    %716 = vst [vmem:[%s715] sm:%s714] %v712
    %s717 = scalar_lea.vmem [#allocation0], 440
    %v718 = vld [vmem:[%s717] sm:%s388]
    %s720 = ssub.s32 4, 1
    %s721 = scalar_lea.vmem %s1, 110
    %722 = vst [vmem:[%s721] sm:%s720] %v718
    %s723 = scalar_lea.vmem [#allocation0], 448
    %v724 = vld [vmem:[%s723] sm:%s388]
    %s726 = ssub.s32 4, 1
    %s727 = scalar_lea.vmem %s1, 112
    %728 = vst [vmem:[%s727] sm:%s726] %v724
    %s729 = scalar_lea.vmem [#allocation0], 456
    %v730 = vld [vmem:[%s729] sm:%s388]
    %s732 = ssub.s32 4, 1
    %s733 = scalar_lea.vmem %s1, 114
    %734 = vst [vmem:[%s733] sm:%s732] %v730
    %s735 = scalar_lea.vmem [#allocation0], 464
    %v736 = vld [vmem:[%s735] sm:%s388]
    %s738 = ssub.s32 4, 1
    %s739 = scalar_lea.vmem %s1, 116
    %740 = vst [vmem:[%s739] sm:%s738] %v736
    %s741 = scalar_lea.vmem [#allocation0], 472
    %v742 = vld [vmem:[%s741] sm:%s388]
    %s744 = ssub.s32 4, 1
    %s745 = scalar_lea.vmem %s1, 118
    %746 = vst [vmem:[%s745] sm:%s744] %v742
    %s747 = scalar_lea.vmem [#allocation0], 480
    %v748 = vld [vmem:[%s747] sm:%s388]
    %s750 = ssub.s32 4, 1
    %s751 = scalar_lea.vmem %s1, 120
    %752 = vst [vmem:[%s751] sm:%s750] %v748
    %s753 = scalar_lea.vmem [#allocation0], 488
    %v754 = vld [vmem:[%s753] sm:%s388]
    %s756 = ssub.s32 4, 1
    %s757 = scalar_lea.vmem %s1, 122
    %758 = vst [vmem:[%s757] sm:%s756] %v754
    %s759 = scalar_lea.vmem [#allocation0], 496
    %v760 = vld [vmem:[%s759] sm:%s388]
    %s762 = ssub.s32 4, 1
    %s763 = scalar_lea.vmem %s1, 124
    %764 = vst [vmem:[%s763] sm:%s762] %v760
    %s765 = scalar_lea.vmem [#allocation0], 504
    %v766 = vld [vmem:[%s765] sm:%s388]
    %s768 = ssub.s32 4, 1
    %s769 = scalar_lea.vmem %s1, 126
    %770 = vst [vmem:[%s769] sm:%s768] %v766

// kernel: tile.38
$region0: #{tile.38}
  #allocation0 [shape = 's32[1]{0}', space=sflag, size = 0x4, scoped, tag = 'scoped memory for tile.38']
  %s0 = inlined_call_operand.vmem [shape: f32[4], index: 0, kind: input, shape index: {}]
  %s1 = inlined_call_operand.vmem [shape: f32[128,4], index: 1, kind: output, shape index: {}]
  // Predicated region
  $region2: #{tile.38} parent=0 // pred_check
    _
  $region3: #{tile.38} parent=0 // pred_check_branch
    %3 = sbr.rel (0) target = $region5
  $region4: #{tile.38} parent=0 // pred_region
    _
  $region5: #{tile.38} parent=0 // pred_fallthru
    _
  %v4 = vld [vmem:[%s0] ss:$0 sm:$0xff]
  %5 = vst [vmem:[%s1] sm:$0xff] %v4
  %s6 = scalar_lea.vmem %s1, 8
  %7 = vst [vmem:[%s6] sm:$0xff] %v4
  %s8 = scalar_lea.vmem %s1, 16
  %9 = vst [vmem:[%s8] sm:$0xff] %v4
  %s10 = scalar_lea.vmem %s1, 24
  %11 = vst [vmem:[%s10] sm:$0xff] %v4
  %s12 = scalar_lea.vmem %s1, 32
  %13 = vst [vmem:[%s12] sm:$0xff] %v4
  %s14 = scalar_lea.vmem %s1, 40
  %15 = vst [vmem:[%s14] sm:$0xff] %v4
  %s16 = scalar_lea.vmem %s1, 48
  %17 = vst [vmem:[%s16] sm:$0xff] %v4
  %s18 = scalar_lea.vmem %s1, 56
  %19 = vst [vmem:[%s18] sm:$0xff] %v4
  %s20 = scalar_lea.vmem %s1, 64
  %21 = vst [vmem:[%s20] sm:$0xff] %v4
  %s22 = scalar_lea.vmem %s1, 72
  %23 = vst [vmem:[%s22] sm:$0xff] %v4
  %s24 = scalar_lea.vmem %s1, 80
  %25 = vst [vmem:[%s24] sm:$0xff] %v4
  %s26 = scalar_lea.vmem %s1, 88
  %27 = vst [vmem:[%s26] sm:$0xff] %v4
  %s28 = scalar_lea.vmem %s1, 96
  %29 = vst [vmem:[%s28] sm:$0xff] %v4
  %s30 = scalar_lea.vmem %s1, 104
  %31 = vst [vmem:[%s30] sm:$0xff] %v4
  %s32 = scalar_lea.vmem %s1, 112
  %33 = vst [vmem:[%s32] sm:$0xff] %v4
  %s34 = scalar_lea.vmem %s1, 120
  %35 = vst [vmem:[%s34] sm:$0xff] %v4

// kernel: tile.39
$region0: #{tile.39}
  %s0 = inlined_call_operand.vmem [shape: f32[128,4], index: 0, kind: input, shape index: {}]
  %s1 = inlined_call_operand.vmem [shape: f32[1,512], index: 1, kind: output, shape index: {}]
  $region1: #{tile.39} parent=0
    #allocation0 [shape = 'u8[16384]{0}', space=vmem, size = 0x4000, scoped, tag = 'scoped mem for output reshape']
    %v2 = vld [vmem:[%s0] sm:$0x1]
    %s3 = scalar_lea.vmem %s0, 31
    %v4 = vld [vmem:[%s3] sm:$0x2]
    %vm5 = vcmask 1041409
    %v6 = vsel %vm5, %v4, %v2
    %s7 = scalar_lea.vmem %s0, 62
    %v8 = vld [vmem:[%s7] sm:$0x4]
    %vm9 = vcmask 1042434
    %v10 = vsel %vm9, %v8, %v6
    %s11 = scalar_lea.vmem %s0, 93
    %v12 = vld [vmem:[%s11] sm:$0x8]
    %vm13 = vcmask 1043459
    %v14 = vsel %vm13, %v12, %v10
    %vm15 = vcmask 31744
    %16 = vst.msk [vmem:[#allocation0] ss:$8 sm:$0xf] %vm15, %v14
    %s17 = scalar_lea.vmem %s0, 31
    %v18 = vld [vmem:[%s17] sm:$0x1]
    %s19 = scalar_lea.vmem %s0, 62
    %v20 = vld [vmem:[%s19] sm:$0x2]
    %vm21 = vcmask 1041409
    %v22 = vsel %vm21, %v20, %v18
    %s23 = scalar_lea.vmem %s0, 93
    %v24 = vld [vmem:[%s23] sm:$0x4]
    %vm25 = vcmask 1042434
    %v26 = vsel %vm25, %v24, %v22
    %s27 = scalar_lea.vmem %s0, 124
    %v28 = vld [vmem:[%s27] sm:$0x8]
    %vm29 = vcmask 1043459
    %v30 = vsel %vm29, %v28, %v26
    %31 = vrot.lane.b32.xlu0 %v30, 124
    %v32 = vpop.permute.xlu0 %31
    %vm33 = vcmask 1048544
    %34 = vst.msk [vmem:[#allocation0] ss:$8 sm:$0xf] %vm33, %v32
    %s35 = scalar_lea.vmem %s0, 30
    %v36 = vld [vmem:[%s35] sm:$0x1]
    %s37 = scalar_lea.vmem %s0, 61
    %v38 = vld [vmem:[%s37] sm:$0x2]
    %vm39 = vcmask 1041409
    %v40 = vsel %vm39, %v38, %v36
    %s41 = scalar_lea.vmem %s0, 92
    %v42 = vld [vmem:[%s41] sm:$0x4]
    %vm43 = vcmask 1042434
    %v44 = vsel %vm43, %v42, %v40
    %s45 = scalar_lea.vmem %s0, 123
    %v46 = vld [vmem:[%s45] sm:$0x8]
    %vm47 = vcmask 1043459
    %v48 = vsel %vm47, %v46, %v44
    %49 = vrot.lane.b32.xlu0 %v48, 120
    %v50 = vpop.permute.xlu0 %49
    %vm51 = vcmask 1015744
    %52 = vst.msk [vmem:[#allocation0] ss:$8 sm:$0xf] %vm51, %v50
    %s53 = scalar_lea.vmem %s0, 29
    %v54 = vld [vmem:[%s53] sm:$0x1]
    %s55 = scalar_lea.vmem %s0, 60
    %v56 = vld [vmem:[%s55] sm:$0x2]
    %vm57 = vcmask 1041409
    %v58 = vsel %vm57, %v56, %v54
    %s59 = scalar_lea.vmem %s0, 91
    %v60 = vld [vmem:[%s59] sm:$0x4]
    %vm61 = vcmask 1042434
    %v62 = vsel %vm61, %v60, %v58
    %s63 = scalar_lea.vmem %s0, 122
    %v64 = vld [vmem:[%s63] sm:$0x8]
    %vm65 = vcmask 1043459
    %v66 = vsel %vm65, %v64, %v62
    %67 = vrot.lane.b32.xlu0 %v66, 116
    %v68 = vpop.permute.xlu0 %67
    %vm69 = vcmask 982944
    %70 = vst.msk [vmem:[#allocation0] ss:$8 sm:$0xf] %vm69, %v68
    %s71 = scalar_lea.vmem %s0, 28
    %v72 = vld [vmem:[%s71] sm:$0x1]
    %s73 = scalar_lea.vmem %s0, 59
    %v74 = vld [vmem:[%s73] sm:$0x2]
    %vm75 = vcmask 1041409
    %v76 = vsel %vm75, %v74, %v72
    %s77 = scalar_lea.vmem %s0, 90
    %v78 = vld [vmem:[%s77] sm:$0x4]
    %vm79 = vcmask 1042434
    %v80 = vsel %vm79, %v78, %v76
    %s81 = scalar_lea.vmem %s0, 121
    %v82 = vld [vmem:[%s81] sm:$0x8]
    %vm83 = vcmask 1043459
    %v84 = vsel %vm83, %v82, %v80
    %85 = vrot.lane.b32.xlu0 %v84, 112
    %v86 = vpop.permute.xlu0 %85
    %vm87 = vcmask 950144
    %88 = vst.msk [vmem:[#allocation0] ss:$8 sm:$0xf] %vm87, %v86
    %s89 = scalar_lea.vmem %s0, 27
    %v90 = vld [vmem:[%s89] sm:$0x1]
    %s91 = scalar_lea.vmem %s0, 58
    %v92 = vld [vmem:[%s91] sm:$0x2]
    %vm93 = vcmask 1041409
    %v94 = vsel %vm93, %v92, %v90
    %s95 = scalar_lea.vmem %s0, 89
    %v96 = vld [vmem:[%s95] sm:$0x4]
    %vm97 = vcmask 1042434
    %v98 = vsel %vm97, %v96, %v94
    %s99 = scalar_lea.vmem %s0, 120
    %v100 = vld [vmem:[%s99] sm:$0x8]
    %vm101 = vcmask 1043459
    %v102 = vsel %vm101, %v100, %v98
    %103 = vrot.lane.b32.xlu0 %v102, 108
    %v104 = vpop.permute.xlu0 %103
    %vm105 = vcmask 917344
    %106 = vst.msk [vmem:[#allocation0] ss:$8 sm:$0xf] %vm105, %v104
    %s107 = scalar_lea.vmem %s0, 26
    %v108 = vld [vmem:[%s107] sm:$0x1]
    %s109 = scalar_lea.vmem %s0, 57
    %v110 = vld [vmem:[%s109] sm:$0x2]
    %vm111 = vcmask 1041409
    %v112 = vsel %vm111, %v110, %v108
    %s113 = scalar_lea.vmem %s0, 88
    %v114 = vld [vmem:[%s113] sm:$0x4]
    %vm115 = vcmask 1042434
    %v116 = vsel %vm115, %v114, %v112
    %s117 = scalar_lea.vmem %s0, 119
    %v118 = vld [vmem:[%s117] sm:$0x8]
    %vm119 = vcmask 1043459
    %v120 = vsel %vm119, %v118, %v116
    %121 = vrot.lane.b32.xlu0 %v120, 104
    %v122 = vpop.permute.xlu0 %121
    %vm123 = vcmask 884544
    %124 = vst.msk [vmem:[#allocation0] ss:$8 sm:$0xf] %vm123, %v122
    %s125 = scalar_lea.vmem %s0, 25
    %v126 = vld [vmem:[%s125] sm:$0x1]
    %s127 = scalar_lea.vmem %s0, 56
    %v128 = vld [vmem:[%s127] sm:$0x2]
    %vm129 = vcmask 1041409
    %v130 = vsel %vm129, %v128, %v126
    %s131 = scalar_lea.vmem %s0, 87
    %v132 = vld [vmem:[%s131] sm:$0x4]
    %vm133 = vcmask 1042434
    %v134 = vsel %vm133, %v132, %v130
    %s135 = scalar_lea.vmem %s0, 118
    %v136 = vld [vmem:[%s135] sm:$0x8]
    %vm137 = vcmask 1043459
    %v138 = vsel %vm137, %v136, %v134
    %139 = vrot.lane.b32.xlu0 %v138, 100
    %v140 = vpop.permute.xlu0 %139
    %vm141 = vcmask 851744
    %142 = vst.msk [vmem:[#allocation0] ss:$8 sm:$0xf] %vm141, %v140
    %s143 = scalar_lea.vmem %s0, 24
    %v144 = vld [vmem:[%s143] sm:$0x1]
    %s145 = scalar_lea.vmem %s0, 55
    %v146 = vld [vmem:[%s145] sm:$0x2]
    %vm147 = vcmask 1041409
    %v148 = vsel %vm147, %v146, %v144
    %s149 = scalar_lea.vmem %s0, 86
    %v150 = vld [vmem:[%s149] sm:$0x4]
    %vm151 = vcmask 1042434
    %v152 = vsel %vm151, %v150, %v148
    %s153 = scalar_lea.vmem %s0, 117
    %v154 = vld [vmem:[%s153] sm:$0x8]
    %vm155 = vcmask 1043459
    %v156 = vsel %vm155, %v154, %v152
    %157 = vrot.lane.b32.xlu0 %v156, 96
    %v158 = vpop.permute.xlu0 %157
    %vm159 = vcmask 818944
    %160 = vst.msk [vmem:[#allocation0] ss:$8 sm:$0xf] %vm159, %v158
    %s161 = scalar_lea.vmem %s0, 23
    %v162 = vld [vmem:[%s161] sm:$0x1]
    %s163 = scalar_lea.vmem %s0, 54
    %v164 = vld [vmem:[%s163] sm:$0x2]
    %vm165 = vcmask 1041409
    %v166 = vsel %vm165, %v164, %v162
    %s167 = scalar_lea.vmem %s0, 85
    %v168 = vld [vmem:[%s167] sm:$0x4]
    %vm169 = vcmask 1042434
    %v170 = vsel %vm169, %v168, %v166
    %s171 = scalar_lea.vmem %s0, 116
    %v172 = vld [vmem:[%s171] sm:$0x8]
    %vm173 = vcmask 1043459
    %v174 = vsel %vm173, %v172, %v170
    %175 = vrot.lane.b32.xlu0 %v174, 92
    %v176 = vpop.permute.xlu0 %175
    %vm177 = vcmask 786144
    %178 = vst.msk [vmem:[#allocation0] ss:$8 sm:$0xf] %vm177, %v176
    %s179 = scalar_lea.vmem %s0, 22
    %v180 = vld [vmem:[%s179] sm:$0x1]
    %s181 = scalar_lea.vmem %s0, 53
    %v182 = vld [vmem:[%s181] sm:$0x2]
    %vm183 = vcmask 1041409
    %v184 = vsel %vm183, %v182, %v180
    %s185 = scalar_lea.vmem %s0, 84
    %v186 = vld [vmem:[%s185] sm:$0x4]
    %vm187 = vcmask 1042434
    %v188 = vsel %vm187, %v186, %v184
    %s189 = scalar_lea.vmem %s0, 115
    %v190 = vld [vmem:[%s189] sm:$0x8]
    %vm191 = vcmask 1043459
    %v192 = vsel %vm191, %v190, %v188
    %193 = vrot.lane.b32.xlu0 %v192, 88
    %v194 = vpop.permute.xlu0 %193
    %vm195 = vcmask 753344
    %196 = vst.msk [vmem:[#allocation0] ss:$8 sm:$0xf] %vm195, %v194
    %s197 = scalar_lea.vmem %s0, 21
    %v198 = vld [vmem:[%s197] sm:$0x1]
    %s199 = scalar_lea.vmem %s0, 52
    %v200 = vld [vmem:[%s199] sm:$0x2]
    %vm201 = vcmask 1041409
    %v202 = vsel %vm201, %v200, %v198
    %s203 = scalar_lea.vmem %s0, 83
    %v204 = vld [vmem:[%s203] sm:$0x4]
    %vm205 = vcmask 1042434
    %v206 = vsel %vm205, %v204, %v202
    %s207 = scalar_lea.vmem %s0, 114
    %v208 = vld [vmem:[%s207] sm:$0x8]
    %vm209 = vcmask 1043459
    %v210 = vsel %vm209, %v208, %v206
    %211 = vrot.lane.b32.xlu0 %v210, 84
    %v212 = vpop.permute.xlu0 %211
    %vm213 = vcmask 720544
    %214 = vst.msk [vmem:[#allocation0] ss:$8 sm:$0xf] %vm213, %v212
    %s215 = scalar_lea.vmem %s0, 20
    %v216 = vld [vmem:[%s215] sm:$0x1]
    %s217 = scalar_lea.vmem %s0, 51
    %v218 = vld [vmem:[%s217] sm:$0x2]
    %vm219 = vcmask 1041409
    %v220 = vsel %vm219, %v218, %v216
    %s221 = scalar_lea.vmem %s0, 82
    %v222 = vld [vmem:[%s221] sm:$0x4]
    %vm223 = vcmask 1042434
    %v224 = vsel %vm223, %v222, %v220
    %s225 = scalar_lea.vmem %s0, 113
    %v226 = vld [vmem:[%s225] sm:$0x8]
    %vm227 = vcmask 1043459
    %v228 = vsel %vm227, %v226, %v224
    %229 = vrot.lane.b32.xlu0 %v228, 80
    %v230 = vpop.permute.xlu0 %229
    %vm231 = vcmask 687744
    %232 = vst.msk [vmem:[#allocation0] ss:$8 sm:$0xf] %vm231, %v230
    %s233 = scalar_lea.vmem %s0, 19
    %v234 = vld [vmem:[%s233] sm:$0x1]
    %s235 = scalar_lea.vmem %s0, 50
    %v236 = vld [vmem:[%s235] sm:$0x2]
    %vm237 = vcmask 1041409
    %v238 = vsel %vm237, %v236, %v234
    %s239 = scalar_lea.vmem %s0, 81
    %v240 = vld [vmem:[%s239] sm:$0x4]
    %vm241 = vcmask 1042434
    %v242 = vsel %vm241, %v240, %v238
    %s243 = scalar_lea.vmem %s0, 112
    %v244 = vld [vmem:[%s243] sm:$0x8]
    %vm245 = vcmask 1043459
    %v246 = vsel %vm245, %v244, %v242
    %247 = vrot.lane.b32.xlu0 %v246, 76
    %v248 = vpop.permute.xlu0 %247
    %vm249 = vcmask 654944
    %250 = vst.msk [vmem:[#allocation0] ss:$8 sm:$0xf] %vm249, %v248
    %s251 = scalar_lea.vmem %s0, 18
    %v252 = vld [vmem:[%s251] sm:$0x1]
    %s253 = scalar_lea.vmem %s0, 49
    %v254 = vld [vmem:[%s253] sm:$0x2]
    %vm255 = vcmask 1041409
    %v256 = vsel %vm255, %v254, %v252
    %s257 = scalar_lea.vmem %s0, 80
    %v258 = vld [vmem:[%s257] sm:$0x4]
    %vm259 = vcmask 1042434
    %v260 = vsel %vm259, %v258, %v256
    %s261 = scalar_lea.vmem %s0, 111
    %v262 = vld [vmem:[%s261] sm:$0x8]
    %vm263 = vcmask 1043459
    %v264 = vsel %vm263, %v262, %v260
    %265 = vrot.lane.b32.xlu0 %v264, 72
    %v266 = vpop.permute.xlu0 %265
    %vm267 = vcmask 622144
    %268 = vst.msk [vmem:[#allocation0] ss:$8 sm:$0xf] %vm267, %v266
    %s269 = scalar_lea.vmem %s0, 17
    %v270 = vld [vmem:[%s269] sm:$0x1]
    %s271 = scalar_lea.vmem %s0, 48
    %v272 = vld [vmem:[%s271] sm:$0x2]
    %vm273 = vcmask 1041409
    %v274 = vsel %vm273, %v272, %v270
    %s275 = scalar_lea.vmem %s0, 79
    %v276 = vld [vmem:[%s275] sm:$0x4]
    %vm277 = vcmask 1042434
    %v278 = vsel %vm277, %v276, %v274
    %s279 = scalar_lea.vmem %s0, 110
    %v280 = vld [vmem:[%s279] sm:$0x8]
    %vm281 = vcmask 1043459
    %v282 = vsel %vm281, %v280, %v278
    %283 = vrot.lane.b32.xlu0 %v282, 68
    %v284 = vpop.permute.xlu0 %283
    %vm285 = vcmask 589344
    %286 = vst.msk [vmem:[#allocation0] ss:$8 sm:$0xf] %vm285, %v284
    %s287 = scalar_lea.vmem %s0, 16
    %v288 = vld [vmem:[%s287] sm:$0x1]
    %s289 = scalar_lea.vmem %s0, 47
    %v290 = vld [vmem:[%s289] sm:$0x2]
    %vm291 = vcmask 1041409
    %v292 = vsel %vm291, %v290, %v288
    %s293 = scalar_lea.vmem %s0, 78
    %v294 = vld [vmem:[%s293] sm:$0x4]
    %vm295 = vcmask 1042434
    %v296 = vsel %vm295, %v294, %v292
    %s297 = scalar_lea.vmem %s0, 109
    %v298 = vld [vmem:[%s297] sm:$0x8]
    %vm299 = vcmask 1043459
    %v300 = vsel %vm299, %v298, %v296
    %301 = vrot.lane.b32.xlu0 %v300, 64
    %v302 = vpop.permute.xlu0 %301
    %vm303 = vcmask 556544
    %304 = vst.msk [vmem:[#allocation0] ss:$8 sm:$0xf] %vm303, %v302
    %s305 = scalar_lea.vmem %s0, 15
    %v306 = vld [vmem:[%s305] sm:$0x1]
    %s307 = scalar_lea.vmem %s0, 46
    %v308 = vld [vmem:[%s307] sm:$0x2]
    %vm309 = vcmask 1041409
    %v310 = vsel %vm309, %v308, %v306
    %s311 = scalar_lea.vmem %s0, 77
    %v312 = vld [vmem:[%s311] sm:$0x4]
    %vm313 = vcmask 1042434
    %v314 = vsel %vm313, %v312, %v310
    %s315 = scalar_lea.vmem %s0, 108
    %v316 = vld [vmem:[%s315] sm:$0x8]
    %vm317 = vcmask 1043459
    %v318 = vsel %vm317, %v316, %v314
    %319 = vrot.lane.b32.xlu0 %v318, 60
    %v320 = vpop.permute.xlu0 %319
    %vm321 = vcmask 523744
    %322 = vst.msk [vmem:[#allocation0] ss:$8 sm:$0xf] %vm321, %v320
    %s323 = scalar_lea.vmem %s0, 14
    %v324 = vld [vmem:[%s323] sm:$0x1]
    %s325 = scalar_lea.vmem %s0, 45
    %v326 = vld [vmem:[%s325] sm:$0x2]
    %vm327 = vcmask 1041409
    %v328 = vsel %vm327, %v326, %v324
    %s329 = scalar_lea.vmem %s0, 76
    %v330 = vld [vmem:[%s329] sm:$0x4]
    %vm331 = vcmask 1042434
    %v332 = vsel %vm331, %v330, %v328
    %s333 = scalar_lea.vmem %s0, 107
    %v334 = vld [vmem:[%s333] sm:$0x8]
    %vm335 = vcmask 1043459
    %v336 = vsel %vm335, %v334, %v332
    %337 = vrot.lane.b32.xlu0 %v336, 56
    %v338 = vpop.permute.xlu0 %337
    %vm339 = vcmask 490944
    %340 = vst.msk [vmem:[#allocation0] ss:$8 sm:$0xf] %vm339, %v338
    %s341 = scalar_lea.vmem %s0, 13
    %v342 = vld [vmem:[%s341] sm:$0x1]
    %s343 = scalar_lea.vmem %s0, 44
    %v344 = vld [vmem:[%s343] sm:$0x2]
    %vm345 = vcmask 1041409
    %v346 = vsel %vm345, %v344, %v342
    %s347 = scalar_lea.vmem %s0, 75
    %v348 = vld [vmem:[%s347] sm:$0x4]
    %vm349 = vcmask 1042434
    %v350 = vsel %vm349, %v348, %v346
    %s351 = scalar_lea.vmem %s0, 106
    %v352 = vld [vmem:[%s351] sm:$0x8]
    %vm353 = vcmask 1043459
    %v354 = vsel %vm353, %v352, %v350
    %355 = vrot.lane.b32.xlu0 %v354, 52
    %v356 = vpop.permute.xlu0 %355
    %vm357 = vcmask 458144
    %358 = vst.msk [vmem:[#allocation0] ss:$8 sm:$0xf] %vm357, %v356
    %s359 = scalar_lea.vmem %s0, 12
    %v360 = vld [vmem:[%s359] sm:$0x1]
    %s361 = scalar_lea.vmem %s0, 43
    %v362 = vld [vmem:[%s361] sm:$0x2]
    %vm363 = vcmask 1041409
    %v364 = vsel %vm363, %v362, %v360
    %s365 = scalar_lea.vmem %s0, 74
    %v366 = vld [vmem:[%s365] sm:$0x4]
    %vm367 = vcmask 1042434
    %v368 = vsel %vm367, %v366, %v364
    %s369 = scalar_lea.vmem %s0, 105
    %v370 = vld [vmem:[%s369] sm:$0x8]
    %vm371 = vcmask 1043459
    %v372 = vsel %vm371, %v370, %v368
    %373 = vrot.lane.b32.xlu0 %v372, 48
    %v374 = vpop.permute.xlu0 %373
    %vm375 = vcmask 425344
    %376 = vst.msk [vmem:[#allocation0] ss:$8 sm:$0xf] %vm375, %v374
    %s377 = scalar_lea.vmem %s0, 11
    %v378 = vld [vmem:[%s377] sm:$0x1]
    %s379 = scalar_lea.vmem %s0, 42
    %v380 = vld [vmem:[%s379] sm:$0x2]
    %vm381 = vcmask 1041409
    %v382 = vsel %vm381, %v380, %v378
    %s383 = scalar_lea.vmem %s0, 73
    %v384 = vld [vmem:[%s383] sm:$0x4]
    %vm385 = vcmask 1042434
    %v386 = vsel %vm385, %v384, %v382
    %s387 = scalar_lea.vmem %s0, 104
    %v388 = vld [vmem:[%s387] sm:$0x8]
    %vm389 = vcmask 1043459
    %v390 = vsel %vm389, %v388, %v386
    %391 = vrot.lane.b32.xlu0 %v390, 44
    %v392 = vpop.permute.xlu0 %391
    %vm393 = vcmask 392544
    %394 = vst.msk [vmem:[#allocation0] ss:$8 sm:$0xf] %vm393, %v392
    %s395 = scalar_lea.vmem %s0, 10
    %v396 = vld [vmem:[%s395] sm:$0x1]
    %s397 = scalar_lea.vmem %s0, 41
    %v398 = vld [vmem:[%s397] sm:$0x2]
    %vm399 = vcmask 1041409
    %v400 = vsel %vm399, %v398, %v396
    %s401 = scalar_lea.vmem %s0, 72
    %v402 = vld [vmem:[%s401] sm:$0x4]
    %vm403 = vcmask 1042434
    %v404 = vsel %vm403, %v402, %v400
    %s405 = scalar_lea.vmem %s0, 103
    %v406 = vld [vmem:[%s405] sm:$0x8]
    %vm407 = vcmask 1043459
    %v408 = vsel %vm407, %v406, %v404
    %409 = vrot.lane.b32.xlu0 %v408, 40
    %v410 = vpop.permute.xlu0 %409
    %vm411 = vcmask 359744
    %412 = vst.msk [vmem:[#allocation0] ss:$8 sm:$0xf] %vm411, %v410
    %s413 = scalar_lea.vmem %s0, 9
    %v414 = vld [vmem:[%s413] sm:$0x1]
    %s415 = scalar_lea.vmem %s0, 40
    %v416 = vld [vmem:[%s415] sm:$0x2]
    %vm417 = vcmask 1041409
    %v418 = vsel %vm417, %v416, %v414
    %s419 = scalar_lea.vmem %s0, 71
    %v420 = vld [vmem:[%s419] sm:$0x4]
    %vm421 = vcmask 1042434
    %v422 = vsel %vm421, %v420, %v418
    %s423 = scalar_lea.vmem %s0, 102
    %v424 = vld [vmem:[%s423] sm:$0x8]
    %vm425 = vcmask 1043459
    %v426 = vsel %vm425, %v424, %v422
    %427 = vrot.lane.b32.xlu0 %v426, 36
    %v428 = vpop.permute.xlu0 %427
    %vm429 = vcmask 326944
    %430 = vst.msk [vmem:[#allocation0] ss:$8 sm:$0xf] %vm429, %v428
    %s431 = scalar_lea.vmem %s0, 8
    %v432 = vld [vmem:[%s431] sm:$0x1]
    %s433 = scalar_lea.vmem %s0, 39
    %v434 = vld [vmem:[%s433] sm:$0x2]
    %vm435 = vcmask 1041409
    %v436 = vsel %vm435, %v434, %v432
    %s437 = scalar_lea.vmem %s0, 70
    %v438 = vld [vmem:[%s437] sm:$0x4]
    %vm439 = vcmask 1042434
    %v440 = vsel %vm439, %v438, %v436
    %s441 = scalar_lea.vmem %s0, 101
    %v442 = vld [vmem:[%s441] sm:$0x8]
    %vm443 = vcmask 1043459
    %v444 = vsel %vm443, %v442, %v440
    %445 = vrot.lane.b32.xlu0 %v444, 32
    %v446 = vpop.permute.xlu0 %445
    %vm447 = vcmask 294144
    %448 = vst.msk [vmem:[#allocation0] ss:$8 sm:$0xf] %vm447, %v446
    %s449 = scalar_lea.vmem %s0, 7
    %v450 = vld [vmem:[%s449] sm:$0x1]
    %s451 = scalar_lea.vmem %s0, 38
    %v452 = vld [vmem:[%s451] sm:$0x2]
    %vm453 = vcmask 1041409
    %v454 = vsel %vm453, %v452, %v450
    %s455 = scalar_lea.vmem %s0, 69
    %v456 = vld [vmem:[%s455] sm:$0x4]
    %vm457 = vcmask 1042434
    %v458 = vsel %vm457, %v456, %v454
    %s459 = scalar_lea.vmem %s0, 100
    %v460 = vld [vmem:[%s459] sm:$0x8]
    %vm461 = vcmask 1043459
    %v462 = vsel %vm461, %v460, %v458
    %463 = vrot.lane.b32.xlu0 %v462, 28
    %v464 = vpop.permute.xlu0 %463
    %vm465 = vcmask 261344
    %466 = vst.msk [vmem:[#allocation0] ss:$8 sm:$0xf] %vm465, %v464
    %s467 = scalar_lea.vmem %s0, 6
    %v468 = vld [vmem:[%s467] sm:$0x1]
    %s469 = scalar_lea.vmem %s0, 37
    %v470 = vld [vmem:[%s469] sm:$0x2]
    %vm471 = vcmask 1041409
    %v472 = vsel %vm471, %v470, %v468
    %s473 = scalar_lea.vmem %s0, 68
    %v474 = vld [vmem:[%s473] sm:$0x4]
    %vm475 = vcmask 1042434
    %v476 = vsel %vm475, %v474, %v472
    %s477 = scalar_lea.vmem %s0, 99
    %v478 = vld [vmem:[%s477] sm:$0x8]
    %vm479 = vcmask 1043459
    %v480 = vsel %vm479, %v478, %v476
    %481 = vrot.lane.b32.xlu0 %v480, 24
    %v482 = vpop.permute.xlu0 %481
    %vm483 = vcmask 228544
    %484 = vst.msk [vmem:[#allocation0] ss:$8 sm:$0xf] %vm483, %v482
    %s485 = scalar_lea.vmem %s0, 5
    %v486 = vld [vmem:[%s485] sm:$0x1]
    %s487 = scalar_lea.vmem %s0, 36
    %v488 = vld [vmem:[%s487] sm:$0x2]
    %vm489 = vcmask 1041409
    %v490 = vsel %vm489, %v488, %v486
    %s491 = scalar_lea.vmem %s0, 67
    %v492 = vld [vmem:[%s491] sm:$0x4]
    %vm493 = vcmask 1042434
    %v494 = vsel %vm493, %v492, %v490
    %s495 = scalar_lea.vmem %s0, 98
    %v496 = vld [vmem:[%s495] sm:$0x8]
    %vm497 = vcmask 1043459
    %v498 = vsel %vm497, %v496, %v494
    %499 = vrot.lane.b32.xlu0 %v498, 20
    %v500 = vpop.permute.xlu0 %499
    %vm501 = vcmask 195744
    %502 = vst.msk [vmem:[#allocation0] ss:$8 sm:$0xf] %vm501, %v500
    %s503 = scalar_lea.vmem %s0, 4
    %v504 = vld [vmem:[%s503] sm:$0x1]
    %s505 = scalar_lea.vmem %s0, 35
    %v506 = vld [vmem:[%s505] sm:$0x2]
    %vm507 = vcmask 1041409
    %v508 = vsel %vm507, %v506, %v504
    %s509 = scalar_lea.vmem %s0, 66
    %v510 = vld [vmem:[%s509] sm:$0x4]
    %vm511 = vcmask 1042434
    %v512 = vsel %vm511, %v510, %v508
    %s513 = scalar_lea.vmem %s0, 97
    %v514 = vld [vmem:[%s513] sm:$0x8]
    %vm515 = vcmask 1043459
    %v516 = vsel %vm515, %v514, %v512
    %517 = vrot.lane.b32.xlu0 %v516, 16
    %v518 = vpop.permute.xlu0 %517
    %vm519 = vcmask 162944
    %520 = vst.msk [vmem:[#allocation0] ss:$8 sm:$0xf] %vm519, %v518
    %s521 = scalar_lea.vmem %s0, 3
    %v522 = vld [vmem:[%s521] sm:$0x1]
    %s523 = scalar_lea.vmem %s0, 34
    %v524 = vld [vmem:[%s523] sm:$0x2]
    %vm525 = vcmask 1041409
    %v526 = vsel %vm525, %v524, %v522
    %s527 = scalar_lea.vmem %s0, 65
    %v528 = vld [vmem:[%s527] sm:$0x4]
    %vm529 = vcmask 1042434
    %v530 = vsel %vm529, %v528, %v526
    %s531 = scalar_lea.vmem %s0, 96
    %v532 = vld [vmem:[%s531] sm:$0x8]
    %vm533 = vcmask 1043459
    %v534 = vsel %vm533, %v532, %v530
    %535 = vrot.lane.b32.xlu0 %v534, 12
    %v536 = vpop.permute.xlu0 %535
    %vm537 = vcmask 130144
    %538 = vst.msk [vmem:[#allocation0] ss:$8 sm:$0xf] %vm537, %v536
    %s539 = scalar_lea.vmem %s0, 2
    %v540 = vld [vmem:[%s539] sm:$0x1]
    %s541 = scalar_lea.vmem %s0, 33
    %v542 = vld [vmem:[%s541] sm:$0x2]
    %vm543 = vcmask 1041409
    %v544 = vsel %vm543, %v542, %v540
    %s545 = scalar_lea.vmem %s0, 64
    %v546 = vld [vmem:[%s545] sm:$0x4]
    %vm547 = vcmask 1042434
    %v548 = vsel %vm547, %v546, %v544
    %s549 = scalar_lea.vmem %s0, 95
    %v550 = vld [vmem:[%s549] sm:$0x8]
    %vm551 = vcmask 1043459
    %v552 = vsel %vm551, %v550, %v548
    %553 = vrot.lane.b32.xlu0 %v552, 8
    %v554 = vpop.permute.xlu0 %553
    %vm555 = vcmask 97344
    %556 = vst.msk [vmem:[#allocation0] ss:$8 sm:$0xf] %vm555, %v554
    %s557 = scalar_lea.vmem %s0, 1
    %v558 = vld [vmem:[%s557] sm:$0x1]
    %s559 = scalar_lea.vmem %s0, 32
    %v560 = vld [vmem:[%s559] sm:$0x2]
    %vm561 = vcmask 1041409
    %v562 = vsel %vm561, %v560, %v558
    %s563 = scalar_lea.vmem %s0, 63
    %v564 = vld [vmem:[%s563] sm:$0x4]
    %vm565 = vcmask 1042434
    %v566 = vsel %vm565, %v564, %v562
    %s567 = scalar_lea.vmem %s0, 94
    %v568 = vld [vmem:[%s567] sm:$0x8]
    %vm569 = vcmask 1043459
    %v570 = vsel %vm569, %v568, %v566
    %571 = vrot.lane.b32.xlu0 %v570, 4
    %v572 = vpop.permute.xlu0 %571
    %vm573 = vcmask 64544
    %574 = vst.msk [vmem:[#allocation0] ss:$8 sm:$0xf] %vm573, %v572
    %s576 = ssub.s32 2, 1
    %v577 = vld [vmem:[#allocation0] sm:%s576]
    %s579 = ssub.s32 2, 1
    %580 = vst [vmem:[%s1] sm:%s579] %v577
    %s581 = scalar_lea.vmem [#allocation0], 8
    %v582 = vld [vmem:[%s581] sm:%s576]
    %s584 = ssub.s32 2, 1
    %s585 = scalar_lea.vmem %s1, 1
    %586 = vst [vmem:[%s585] sm:%s584] %v582
    %s587 = scalar_lea.vmem [#allocation0], 16
    %v588 = vld [vmem:[%s587] sm:%s576]
    %s590 = ssub.s32 2, 1
    %s591 = scalar_lea.vmem %s1, 2
    %592 = vst [vmem:[%s591] sm:%s590] %v588
    %s593 = scalar_lea.vmem [#allocation0], 24
    %v594 = vld [vmem:[%s593] sm:%s576]
    %s596 = ssub.s32 2, 1
    %s597 = scalar_lea.vmem %s1, 3
    %598 = vst [vmem:[%s597] sm:%s596] %v594

// kernel: _upsampler_forward.6
$region0: #{_upsampler_forward.6}
  #allocation0 [shape = 'u32[]', space=smem, size = 0x4, offset = 0x4, fixed_abs, tag = 'smem constant byte address 0x4 - core index']
  #allocation1 [shape = 'u32[72,128]{1,0:T(1,128)}', space=vmem, size = 0x9000, scoped, tag = 'internal scratch']
  %s0 = inlined_call_operand.vmem [shape: f32[64,256], index: 0, kind: input, shape index: {}]
  %s1 = inlined_call_operand.vmem [shape: f32[256,512], index: 1, kind: input, shape index: {}]
  %s2 = inlined_call_operand.vmem [shape: f32[1,2,512], index: 2, kind: output, shape index: {}]
  %s3 = sld [smem:[#allocation0]]
  $region18: #{_upsampler_forward.6} parent=0
    _
  %s5 = ssub.s32 1, %s3
  %s6 = scalar_select 0, %s5, %s3
  // Predicated region
  $region2: #{_upsampler_forward.6} parent=0 // pred_check
    _
  $region3: #{_upsampler_forward.6} parent=0 // pred_check_branch
    %8 = sbr.rel (0) target = $region5
  $region4: #{_upsampler_forward.6} parent=0 // pred_region
    _
  $region5: #{_upsampler_forward.6} parent=0 // pred_fallthru
    _
  // Predicated region
  $region6: #{_upsampler_forward.6} parent=0 // pred_check
    _
  $region7: #{_upsampler_forward.6} parent=0 // pred_check_branch
    %10 = sbr.rel (0) target = $region9
  $region8: #{_upsampler_forward.6} parent=0 // pred_region
    _
  $region9: #{_upsampler_forward.6} parent=0 // pred_fallthru
    _
  %v11 = vld [vmem:[%s0] sm:$0xff]
  %v12 = vld [vmem:[%s0 + $0x8] sm:$0xff]
  %v13 = vld [vmem:[%s0 + $0x10] sm:$0xff]
  %v14 = vld [vmem:[%s0 + $0x18] sm:$0xff]
  %v15 = vld [vmem:[%s0 + $0x20] sm:$0xff]
  %v16 = vld [vmem:[%s0 + $0x28] sm:$0xff]
  %v17 = vld [vmem:[%s0 + $0x30] sm:$0xff]
  %v18 = vld [vmem:[%s0 + $0x38] sm:$0xff]
  %v19 = vld [vmem:[%s0 + $0x40] sm:$0xff]
  %v20 = vld [vmem:[%s0 + $0x48] sm:$0xff]
  %v21 = vld [vmem:[%s0 + $0x50] sm:$0xff]
  %v22 = vld [vmem:[%s0 + $0x58] sm:$0xff]
  %v23 = vld [vmem:[%s0 + $0x60] sm:$0xff]
  %v24 = vld [vmem:[%s0 + $0x68] sm:$0xff]
  %v25 = vld [vmem:[%s0 + $0x70] sm:$0xff]
  %v26 = vld [vmem:[%s0 + $0x78] sm:$0xff]
  %v27 = vld [vmem:[%s1] sm:$0xff]
  %v28 = vld [vmem:[%s1 + $0x8] sm:$0xff]
  %v29 = vld [vmem:[%s1 + $0x10] sm:$0xff]
  %v30 = vld [vmem:[%s1 + $0x18] sm:$0xff]
  %v31 = vld [vmem:[%s1 + $0x20] sm:$0xff]
  %v32 = vld [vmem:[%s1 + $0x28] sm:$0xff]
  %v33 = vld [vmem:[%s1 + $0x30] sm:$0xff]
  %v34 = vld [vmem:[%s1 + $0x38] sm:$0xff]
  %v35 = vld [vmem:[%s1 + $0x40] sm:$0xff]
  %v36 = vld [vmem:[%s1 + $0x48] sm:$0xff]
  %v37 = vld [vmem:[%s1 + $0x50] sm:$0xff]
  %v38 = vld [vmem:[%s1 + $0x58] sm:$0xff]
  %v39 = vld [vmem:[%s1 + $0x60] sm:$0xff]
  %v40 = vld [vmem:[%s1 + $0x68] sm:$0xff]
  %v41 = vld [vmem:[%s1 + $0x70] sm:$0xff]
  %v42 = vld [vmem:[%s1 + $0x78] sm:$0xff]
  %v43 = vld [vmem:[%s1 + $0x80] sm:$0xff]
  %v44 = vld [vmem:[%s1 + $0x88] sm:$0xff]
  %v45 = vld [vmem:[%s1 + $0x90] sm:$0xff]
  %v46 = vld [vmem:[%s1 + $0x98] sm:$0xff]
  %v47 = vld [vmem:[%s1 + $0xa0] sm:$0xff]
  %v48 = vld [vmem:[%s1 + $0xa8] sm:$0xff]
  %v49 = vld [vmem:[%s1 + $0xb0] sm:$0xff]
  %v50 = vld [vmem:[%s1 + $0xb8] sm:$0xff]
  %v51 = vld [vmem:[%s1 + $0xc0] sm:$0xff]
  %v52 = vld [vmem:[%s1 + $0xc8] sm:$0xff]
  %v53 = vld [vmem:[%s1 + $0xd0] sm:$0xff]
  %v54 = vld [vmem:[%s1 + $0xd8] sm:$0xff]
  %v55 = vld [vmem:[%s1 + $0xe0] sm:$0xff]
  %v56 = vld [vmem:[%s1 + $0xe8] sm:$0xff]
  %v57 = vld [vmem:[%s1 + $0xf0] sm:$0xff]
  %v58 = vld [vmem:[%s1 + $0xf8] sm:$0xff]
  %v59 = vld [vmem:[%s1 + $0x100] sm:$0xff]
  %v60 = vld [vmem:[%s1 + $0x108] sm:$0xff]
  %v61 = vld [vmem:[%s1 + $0x110] sm:$0xff]
  %v62 = vld [vmem:[%s1 + $0x118] sm:$0xff]
  %v63 = vld [vmem:[%s1 + $0x120] sm:$0xff]
  %v64 = vld [vmem:[%s1 + $0x128] sm:$0xff]
  %v65 = vld [vmem:[%s1 + $0x130] sm:$0xff]
  %v66 = vld [vmem:[%s1 + $0x138] sm:$0xff]
  %v67 = vld [vmem:[%s1 + $0x140] sm:$0xff]
  %v68 = vld [vmem:[%s1 + $0x148] sm:$0xff]
  %v69 = vld [vmem:[%s1 + $0x150] sm:$0xff]
  %v70 = vld [vmem:[%s1 + $0x158] sm:$0xff]
  %v71 = vld [vmem:[%s1 + $0x160] sm:$0xff]
  %v72 = vld [vmem:[%s1 + $0x168] sm:$0xff]
  %v73 = vld [vmem:[%s1 + $0x170] sm:$0xff]
  %v74 = vld [vmem:[%s1 + $0x178] sm:$0xff]
  %v75 = vld [vmem:[%s1 + $0x180] sm:$0xff]
  %v76 = vld [vmem:[%s1 + $0x188] sm:$0xff]
  %v77 = vld [vmem:[%s1 + $0x190] sm:$0xff]
  %v78 = vld [vmem:[%s1 + $0x198] sm:$0xff]
  %v79 = vld [vmem:[%s1 + $0x1a0] sm:$0xff]
  %v80 = vld [vmem:[%s1 + $0x1a8] sm:$0xff]
  %v81 = vld [vmem:[%s1 + $0x1b0] sm:$0xff]
  %v82 = vld [vmem:[%s1 + $0x1b8] sm:$0xff]
  %v83 = vld [vmem:[%s1 + $0x1c0] sm:$0xff]
  %v84 = vld [vmem:[%s1 + $0x1c8] sm:$0xff]
  %v85 = vld [vmem:[%s1 + $0x1d0] sm:$0xff]
  %v86 = vld [vmem:[%s1 + $0x1d8] sm:$0xff]
  %v87 = vld [vmem:[%s1 + $0x1e0] sm:$0xff]
  %v88 = vld [vmem:[%s1 + $0x1e8] sm:$0xff]
  %v89 = vld [vmem:[%s1 + $0x1f0] sm:$0xff]
  %v90 = vld [vmem:[%s1 + $0x1f8] sm:$0xff]
  %v91 = vld [vmem:[%s1 + $0x200] sm:$0xff]
  %v92 = vld [vmem:[%s1 + $0x208] sm:$0xff]
  %v93 = vld [vmem:[%s1 + $0x210] sm:$0xff]
  %v94 = vld [vmem:[%s1 + $0x218] sm:$0xff]
  %v95 = vld [vmem:[%s1 + $0x220] sm:$0xff]
  %v96 = vld [vmem:[%s1 + $0x228] sm:$0xff]
  %v97 = vld [vmem:[%s1 + $0x230] sm:$0xff]
  %v98 = vld [vmem:[%s1 + $0x238] sm:$0xff]
  %v99 = vld [vmem:[%s1 + $0x240] sm:$0xff]
  %v100 = vld [vmem:[%s1 + $0x248] sm:$0xff]
  %v101 = vld [vmem:[%s1 + $0x250] sm:$0xff]
  %v102 = vld [vmem:[%s1 + $0x258] sm:$0xff]
  %v103 = vld [vmem:[%s1 + $0x260] sm:$0xff]
  %v104 = vld [vmem:[%s1 + $0x268] sm:$0xff]
  %v105 = vld [vmem:[%s1 + $0x270] sm:$0xff]
  %v106 = vld [vmem:[%s1 + $0x278] sm:$0xff]
  %v107 = vld [vmem:[%s1 + $0x280] sm:$0xff]
  %v108 = vld [vmem:[%s1 + $0x288] sm:$0xff]
  %v109 = vld [vmem:[%s1 + $0x290] sm:$0xff]
  %v110 = vld [vmem:[%s1 + $0x298] sm:$0xff]
  %v111 = vld [vmem:[%s1 + $0x2a0] sm:$0xff]
  %v112 = vld [vmem:[%s1 + $0x2a8] sm:$0xff]
  %v113 = vld [vmem:[%s1 + $0x2b0] sm:$0xff]
  %v114 = vld [vmem:[%s1 + $0x2b8] sm:$0xff]
  %v115 = vld [vmem:[%s1 + $0x2c0] sm:$0xff]
  %v116 = vld [vmem:[%s1 + $0x2c8] sm:$0xff]
  %v117 = vld [vmem:[%s1 + $0x2d0] sm:$0xff]
  %v118 = vld [vmem:[%s1 + $0x2d8] sm:$0xff]
  %v119 = vld [vmem:[%s1 + $0x2e0] sm:$0xff]
  %v120 = vld [vmem:[%s1 + $0x2e8] sm:$0xff]
  %v121 = vld [vmem:[%s1 + $0x2f0] sm:$0xff]
  %v122 = vld [vmem:[%s1 + $0x2f8] sm:$0xff]
  %v123 = vld [vmem:[%s1 + $0x300] sm:$0xff]
  %v124 = vld [vmem:[%s1 + $0x308] sm:$0xff]
  %v125 = vld [vmem:[%s1 + $0x310] sm:$0xff]
  %v126 = vld [vmem:[%s1 + $0x318] sm:$0xff]
  %v127 = vld [vmem:[%s1 + $0x320] sm:$0xff]
  %v128 = vld [vmem:[%s1 + $0x328] sm:$0xff]
  %v129 = vld [vmem:[%s1 + $0x330] sm:$0xff]
  %v130 = vld [vmem:[%s1 + $0x338] sm:$0xff]
  %v131 = vld [vmem:[%s1 + $0x340] sm:$0xff]
  %v132 = vld [vmem:[%s1 + $0x348] sm:$0xff]
  %v133 = vld [vmem:[%s1 + $0x350] sm:$0xff]
  %v134 = vld [vmem:[%s1 + $0x358] sm:$0xff]
  %v135 = vld [vmem:[%s1 + $0x360] sm:$0xff]
  %v136 = vld [vmem:[%s1 + $0x368] sm:$0xff]
  %v137 = vld [vmem:[%s1 + $0x370] sm:$0xff]
  %v138 = vld [vmem:[%s1 + $0x378] sm:$0xff]
  %v139 = vld [vmem:[%s1 + $0x380] sm:$0xff]
  %v140 = vld [vmem:[%s1 + $0x388] sm:$0xff]
  %v141 = vld [vmem:[%s1 + $0x390] sm:$0xff]
  %v142 = vld [vmem:[%s1 + $0x398] sm:$0xff]
  %v143 = vld [vmem:[%s1 + $0x3a0] sm:$0xff]
  %v144 = vld [vmem:[%s1 + $0x3a8] sm:$0xff]
  %v145 = vld [vmem:[%s1 + $0x3b0] sm:$0xff]
  %v146 = vld [vmem:[%s1 + $0x3b8] sm:$0xff]
  %v147 = vld [vmem:[%s1 + $0x3c0] sm:$0xff]
  %v148 = vld [vmem:[%s1 + $0x3c8] sm:$0xff]
  %v149 = vld [vmem:[%s1 + $0x3d0] sm:$0xff]
  %v150 = vld [vmem:[%s1 + $0x3d8] sm:$0xff]
  %v151 = vld [vmem:[%s1 + $0x3e0] sm:$0xff]
  %v152 = vld [vmem:[%s1 + $0x3e8] sm:$0xff]
  %v153 = vld [vmem:[%s1 + $0x3f0] sm:$0xff]
  %v154 = vld [vmem:[%s1 + $0x3f8] sm:$0xff]
  %155 = vmatpush.msra.mxu0 %v87
  %156 = vmatpush.msra.mxu0 %v83
  %157 = vmatpush.msra.mxu0 %v79
  %158 = vmatpush.msra.mxu0 %v75
  %159 = vmatpush.msra.mxu0 %v71
  %160 = vmatpush.msra.mxu0 %v67
  %161 = vmatpush.msra.mxu0 %v63
  %162 = vmatpush.msra.mxu0 %v59
  %163 = vmatpush.msra.mxu0 %v55
  %164 = vmatpush.msra.mxu0 %v51
  %165 = vmatpush.msra.mxu0 %v47
  %166 = vmatpush.msra.mxu0 %v43
  %167 = vmatpush.msra.mxu0 %v39
  %168 = vmatpush.msra.mxu0 %v35
  %169 = vmatpush.msra.mxu0 %v31
  %170 = vmatpush.msra.mxu0 %v27
  %171 = vmatmul.f32.gmra.mxu0 %v11
  %v172 = vpop.f32.mrf.mxu0
  %v173 = vadd.f32 0.0, %v172
  %174 = vmatmul.f32.gmra.mxu0 %v13
  %v175 = vpop.f32.mrf.mxu0
  %v176 = vadd.f32 0.0, %v175
  %177 = vmatmul.f32.gmra.mxu0 %v15
  %v178 = vpop.f32.mrf.mxu0
  %v179 = vadd.f32 0.0, %v178
  %180 = vmatmul.f32.gmra.mxu0 %v17
  %v181 = vpop.f32.mrf.mxu0
  %v182 = vadd.f32 0.0, %v181
  %183 = vmatmul.f32.gmra.mxu0 %v19
  %v184 = vpop.f32.mrf.mxu0
  %v185 = vadd.f32 0.0, %v184
  %186 = vmatmul.f32.gmra.mxu0 %v21
  %v187 = vpop.f32.mrf.mxu0
  %v188 = vadd.f32 0.0, %v187
  %189 = vmatmul.f32.gmra.mxu0 %v23
  %v190 = vpop.f32.mrf.mxu0
  %v191 = vadd.f32 0.0, %v190
  %192 = vmatmul.f32.gmra.mxu0 %v25
  %v193 = vpop.f32.mrf.mxu0
  %v194 = vadd.f32 0.0, %v193
  %195 = vdwg.mxu0
  %196 = vmatpush.msra.mxu0 %v151
  %197 = vmatpush.msra.mxu0 %v147
  %198 = vmatpush.msra.mxu0 %v143
  %199 = vmatpush.msra.mxu0 %v139
  %200 = vmatpush.msra.mxu0 %v135
  %201 = vmatpush.msra.mxu0 %v131
  %202 = vmatpush.msra.mxu0 %v127
  %203 = vmatpush.msra.mxu0 %v123
  %204 = vmatpush.msra.mxu0 %v119
  %205 = vmatpush.msra.mxu0 %v115
  %206 = vmatpush.msra.mxu0 %v111
  %207 = vmatpush.msra.mxu0 %v107
  %208 = vmatpush.msra.mxu0 %v103
  %209 = vmatpush.msra.mxu0 %v99
  %210 = vmatpush.msra.mxu0 %v95
  %211 = vmatpush.msra.mxu0 %v91
  %212 = vmatmul.f32.gmra.mxu0 %v12
  %v213 = vpop.f32.mrf.mxu0
  %v214 = vadd.f32 %v173, %v213
  %215 = vmatmul.f32.gmra.mxu0 %v14
  %v216 = vpop.f32.mrf.mxu0
  %v217 = vadd.f32 %v176, %v216
  %218 = vmatmul.f32.gmra.mxu0 %v16
  %v219 = vpop.f32.mrf.mxu0
  %v220 = vadd.f32 %v179, %v219
  %221 = vmatmul.f32.gmra.mxu0 %v18
  %v222 = vpop.f32.mrf.mxu0
  %v223 = vadd.f32 %v182, %v222
  %224 = vmatmul.f32.gmra.mxu0 %v20
  %v225 = vpop.f32.mrf.mxu0
  %v226 = vadd.f32 %v185, %v225
  %227 = vmatmul.f32.gmra.mxu0 %v22
  %v228 = vpop.f32.mrf.mxu0
  %v229 = vadd.f32 %v188, %v228
  %230 = vmatmul.f32.gmra.mxu0 %v24
  %v231 = vpop.f32.mrf.mxu0
  %v232 = vadd.f32 %v191, %v231
  %233 = vmatmul.f32.gmra.mxu0 %v26
  %v234 = vpop.f32.mrf.mxu0
  %v235 = vadd.f32 %v194, %v234
  %236 = vdwg.mxu0
  %237 = vmatpush.msra.mxu0 %v88
  %238 = vmatpush.msra.mxu0 %v84
  %239 = vmatpush.msra.mxu0 %v80
  %240 = vmatpush.msra.mxu0 %v76
  %241 = vmatpush.msra.mxu0 %v72
  %242 = vmatpush.msra.mxu0 %v68
  %243 = vmatpush.msra.mxu0 %v64
  %244 = vmatpush.msra.mxu0 %v60
  %245 = vmatpush.msra.mxu0 %v56
  %246 = vmatpush.msra.mxu0 %v52
  %247 = vmatpush.msra.mxu0 %v48
  %248 = vmatpush.msra.mxu0 %v44
  %249 = vmatpush.msra.mxu0 %v40
  %250 = vmatpush.msra.mxu0 %v36
  %251 = vmatpush.msra.mxu0 %v32
  %252 = vmatpush.msra.mxu0 %v28
  %253 = vmatmul.f32.gmra.mxu0 %v11
  %v254 = vpop.f32.mrf.mxu0
  %v255 = vadd.f32 0.0, %v254
  %256 = vmatmul.f32.gmra.mxu0 %v13
  %v257 = vpop.f32.mrf.mxu0
  %v258 = vadd.f32 0.0, %v257
  %259 = vmatmul.f32.gmra.mxu0 %v15
  %v260 = vpop.f32.mrf.mxu0
  %v261 = vadd.f32 0.0, %v260
  %262 = vmatmul.f32.gmra.mxu0 %v17
  %v263 = vpop.f32.mrf.mxu0
  %v264 = vadd.f32 0.0, %v263
  %265 = vmatmul.f32.gmra.mxu0 %v19
  %v266 = vpop.f32.mrf.mxu0
  %v267 = vadd.f32 0.0, %v266
  %268 = vmatmul.f32.gmra.mxu0 %v21
  %v269 = vpop.f32.mrf.mxu0
  %v270 = vadd.f32 0.0, %v269
  %271 = vmatmul.f32.gmra.mxu0 %v23
  %v272 = vpop.f32.mrf.mxu0
  %v273 = vadd.f32 0.0, %v272
  %274 = vmatmul.f32.gmra.mxu0 %v25
  %v275 = vpop.f32.mrf.mxu0
  %v276 = vadd.f32 0.0, %v275
  %277 = vdwg.mxu0
  %278 = vmatpush.msra.mxu0 %v152
  %279 = vmatpush.msra.mxu0 %v148
  %280 = vmatpush.msra.mxu0 %v144
  %281 = vmatpush.msra.mxu0 %v140
  %282 = vmatpush.msra.mxu0 %v136
  %283 = vmatpush.msra.mxu0 %v132
  %284 = vmatpush.msra.mxu0 %v128
  %285 = vmatpush.msra.mxu0 %v124
  %286 = vmatpush.msra.mxu0 %v120
  %287 = vmatpush.msra.mxu0 %v116
  %288 = vmatpush.msra.mxu0 %v112
  %289 = vmatpush.msra.mxu0 %v108
  %290 = vmatpush.msra.mxu0 %v104
  %291 = vmatpush.msra.mxu0 %v100
  %292 = vmatpush.msra.mxu0 %v96
  %293 = vmatpush.msra.mxu0 %v92
  %294 = vmatmul.f32.gmra.mxu0 %v12
  %v295 = vpop.f32.mrf.mxu0
  %v296 = vadd.f32 %v255, %v295
  %297 = vmatmul.f32.gmra.mxu0 %v14
  %v298 = vpop.f32.mrf.mxu0
  %v299 = vadd.f32 %v258, %v298
  %300 = vmatmul.f32.gmra.mxu0 %v16
  %v301 = vpop.f32.mrf.mxu0
  %v302 = vadd.f32 %v261, %v301
  %303 = vmatmul.f32.gmra.mxu0 %v18
  %v304 = vpop.f32.mrf.mxu0
  %v305 = vadd.f32 %v264, %v304
  %306 = vmatmul.f32.gmra.mxu0 %v20
  %v307 = vpop.f32.mrf.mxu0
  %v308 = vadd.f32 %v267, %v307
  %309 = vmatmul.f32.gmra.mxu0 %v22
  %v310 = vpop.f32.mrf.mxu0
  %v311 = vadd.f32 %v270, %v310
  %312 = vmatmul.f32.gmra.mxu0 %v24
  %v313 = vpop.f32.mrf.mxu0
  %v314 = vadd.f32 %v273, %v313
  %315 = vmatmul.f32.gmra.mxu0 %v26
  %v316 = vpop.f32.mrf.mxu0
  %v317 = vadd.f32 %v276, %v316
  %318 = vdwg.mxu0
  %319 = vmatpush.msra.mxu0 %v89
  %320 = vmatpush.msra.mxu0 %v85
  %321 = vmatpush.msra.mxu0 %v81
  %322 = vmatpush.msra.mxu0 %v77
  %323 = vmatpush.msra.mxu0 %v73
  %324 = vmatpush.msra.mxu0 %v69
  %325 = vmatpush.msra.mxu0 %v65
  %326 = vmatpush.msra.mxu0 %v61
  %327 = vmatpush.msra.mxu0 %v57
  %328 = vmatpush.msra.mxu0 %v53
  %329 = vmatpush.msra.mxu0 %v49
  %330 = vmatpush.msra.mxu0 %v45
  %331 = vmatpush.msra.mxu0 %v41
  %332 = vmatpush.msra.mxu0 %v37
  %333 = vmatpush.msra.mxu0 %v33
  %334 = vmatpush.msra.mxu0 %v29
  %335 = vmatmul.f32.gmra.mxu0 %v11
  %v336 = vpop.f32.mrf.mxu0
  %v337 = vadd.f32 0.0, %v336
  %338 = vmatmul.f32.gmra.mxu0 %v13
  %v339 = vpop.f32.mrf.mxu0
  %v340 = vadd.f32 0.0, %v339
  %341 = vmatmul.f32.gmra.mxu0 %v15
  %v342 = vpop.f32.mrf.mxu0
  %v343 = vadd.f32 0.0, %v342
  %344 = vmatmul.f32.gmra.mxu0 %v17
  %v345 = vpop.f32.mrf.mxu0
  %v346 = vadd.f32 0.0, %v345
  %347 = vmatmul.f32.gmra.mxu0 %v19
  %v348 = vpop.f32.mrf.mxu0
  %v349 = vadd.f32 0.0, %v348
  %350 = vmatmul.f32.gmra.mxu0 %v21
  %v351 = vpop.f32.mrf.mxu0
  %v352 = vadd.f32 0.0, %v351
  %353 = vmatmul.f32.gmra.mxu0 %v23
  %v354 = vpop.f32.mrf.mxu0
  %v355 = vadd.f32 0.0, %v354
  %356 = vmatmul.f32.gmra.mxu0 %v25
  %v357 = vpop.f32.mrf.mxu0
  %v358 = vadd.f32 0.0, %v357
  %359 = vdwg.mxu0
  %360 = vmatpush.msra.mxu0 %v153
  %361 = vmatpush.msra.mxu0 %v149
  %362 = vmatpush.msra.mxu0 %v145
  %363 = vmatpush.msra.mxu0 %v141
  %364 = vmatpush.msra.mxu0 %v137
  %365 = vmatpush.msra.mxu0 %v133
  %366 = vmatpush.msra.mxu0 %v129
  %367 = vmatpush.msra.mxu0 %v125
  %368 = vmatpush.msra.mxu0 %v121
  %369 = vmatpush.msra.mxu0 %v117
  %370 = vmatpush.msra.mxu0 %v113
  %371 = vmatpush.msra.mxu0 %v109
  %372 = vmatpush.msra.mxu0 %v105
  %373 = vmatpush.msra.mxu0 %v101
  %374 = vmatpush.msra.mxu0 %v97
  %375 = vmatpush.msra.mxu0 %v93
  %376 = vmatmul.f32.gmra.mxu0 %v12
  %v377 = vpop.f32.mrf.mxu0
  %v378 = vadd.f32 %v337, %v377
  %379 = vmatmul.f32.gmra.mxu0 %v14
  %v380 = vpop.f32.mrf.mxu0
  %v381 = vadd.f32 %v340, %v380
  %382 = vmatmul.f32.gmra.mxu0 %v16
  %v383 = vpop.f32.mrf.mxu0
  %v384 = vadd.f32 %v343, %v383
  %385 = vmatmul.f32.gmra.mxu0 %v18
  %v386 = vpop.f32.mrf.mxu0
  %v387 = vadd.f32 %v346, %v386
  %388 = vmatmul.f32.gmra.mxu0 %v20
  %v389 = vpop.f32.mrf.mxu0
  %v390 = vadd.f32 %v349, %v389
  %391 = vmatmul.f32.gmra.mxu0 %v22
  %v392 = vpop.f32.mrf.mxu0
  %v393 = vadd.f32 %v352, %v392
  %394 = vmatmul.f32.gmra.mxu0 %v24
  %v395 = vpop.f32.mrf.mxu0
  %v396 = vadd.f32 %v355, %v395
  %397 = vmatmul.f32.gmra.mxu0 %v26
  %v398 = vpop.f32.mrf.mxu0
  %v399 = vadd.f32 %v358, %v398
  %400 = vdwg.mxu0
  %401 = vmatpush.msra.mxu0 %v90
  %402 = vmatpush.msra.mxu0 %v86
  %403 = vmatpush.msra.mxu0 %v82
  %404 = vmatpush.msra.mxu0 %v78
  %405 = vmatpush.msra.mxu0 %v74
  %406 = vmatpush.msra.mxu0 %v70
  %407 = vmatpush.msra.mxu0 %v66
  %408 = vmatpush.msra.mxu0 %v62
  %409 = vmatpush.msra.mxu0 %v58
  %410 = vmatpush.msra.mxu0 %v54
  %411 = vmatpush.msra.mxu0 %v50
  %412 = vmatpush.msra.mxu0 %v46
  %413 = vmatpush.msra.mxu0 %v42
  %414 = vmatpush.msra.mxu0 %v38
  %415 = vmatpush.msra.mxu0 %v34
  %416 = vmatpush.msra.mxu0 %v30
  %417 = vmatmul.f32.gmra.mxu0 %v11
  %v418 = vpop.f32.mrf.mxu0
  %v419 = vadd.f32 0.0, %v418
  %420 = vmatmul.f32.gmra.mxu0 %v13
  %v421 = vpop.f32.mrf.mxu0
  %v422 = vadd.f32 0.0, %v421
  %423 = vmatmul.f32.gmra.mxu0 %v15
  %v424 = vpop.f32.mrf.mxu0
  %v425 = vadd.f32 0.0, %v424
  %426 = vmatmul.f32.gmra.mxu0 %v17
  %v427 = vpop.f32.mrf.mxu0
  %v428 = vadd.f32 0.0, %v427
  %429 = vmatmul.f32.gmra.mxu0 %v19
  %v430 = vpop.f32.mrf.mxu0
  %v431 = vadd.f32 0.0, %v430
  %432 = vmatmul.f32.gmra.mxu0 %v21
  %v433 = vpop.f32.mrf.mxu0
  %v434 = vadd.f32 0.0, %v433
  %435 = vmatmul.f32.gmra.mxu0 %v23
  %v436 = vpop.f32.mrf.mxu0
  %v437 = vadd.f32 0.0, %v436
  %438 = vmatmul.f32.gmra.mxu0 %v25
  %v439 = vpop.f32.mrf.mxu0
  %v440 = vadd.f32 0.0, %v439
  %441 = vdwg.mxu0
  %442 = vmatpush.msra.mxu0 %v154
  %443 = vmatpush.msra.mxu0 %v150
  %444 = vmatpush.msra.mxu0 %v146
  %445 = vmatpush.msra.mxu0 %v142
  %446 = vmatpush.msra.mxu0 %v138
  %447 = vmatpush.msra.mxu0 %v134
  %448 = vmatpush.msra.mxu0 %v130
  %449 = vmatpush.msra.mxu0 %v126
  %450 = vmatpush.msra.mxu0 %v122
  %451 = vmatpush.msra.mxu0 %v118
  %452 = vmatpush.msra.mxu0 %v114
  %453 = vmatpush.msra.mxu0 %v110
  %454 = vmatpush.msra.mxu0 %v106
  %455 = vmatpush.msra.mxu0 %v102
  %456 = vmatpush.msra.mxu0 %v98
  %457 = vmatpush.msra.mxu0 %v94
  %458 = vmatmul.f32.gmra.mxu0 %v12
  %v459 = vpop.f32.mrf.mxu0
  %v460 = vadd.f32 %v419, %v459
  %461 = vmatmul.f32.gmra.mxu0 %v14
  %v462 = vpop.f32.mrf.mxu0
  %v463 = vadd.f32 %v422, %v462
  %464 = vmatmul.f32.gmra.mxu0 %v16
  %v465 = vpop.f32.mrf.mxu0
  %v466 = vadd.f32 %v425, %v465
  %467 = vmatmul.f32.gmra.mxu0 %v18
  %v468 = vpop.f32.mrf.mxu0
  %v469 = vadd.f32 %v428, %v468
  %470 = vmatmul.f32.gmra.mxu0 %v20
  %v471 = vpop.f32.mrf.mxu0
  %v472 = vadd.f32 %v431, %v471
  %473 = vmatmul.f32.gmra.mxu0 %v22
  %v474 = vpop.f32.mrf.mxu0
  %v475 = vadd.f32 %v434, %v474
  %476 = vmatmul.f32.gmra.mxu0 %v24
  %v477 = vpop.f32.mrf.mxu0
  %v478 = vadd.f32 %v437, %v477
  %479 = vmatmul.f32.gmra.mxu0 %v26
  %v480 = vpop.f32.mrf.mxu0
  %v481 = vadd.f32 %v440, %v480
  %482 = vdwg.mxu0
  %v483 = vadd.f32 %v214, %v217
  %v484 = vadd.f32 %v483, %v220
  %v485 = vadd.f32 %v484, %v223
  %v486 = vadd.f32 %v485, %v226
  %v487 = vadd.f32 %v486, %v229
  %v488 = vadd.f32 %v487, %v232
  %v489 = vadd.f32 %v488, %v235
  %v490 = vrot.slane %v489, 4
  %v491 = vadd.f32 %v489, %v490
  %v492 = vrot.slane %v491, 2
  %v493 = vadd.f32 %v491, %v492
  %v494 = vrot.slane %v493, 1
  %v495 = vadd.f32 %v493, %v494
  %v496 = vadd.f32 %v296, %v299
  %v497 = vadd.f32 %v496, %v302
  %v498 = vadd.f32 %v497, %v305
  %v499 = vadd.f32 %v498, %v308
  %v500 = vadd.f32 %v499, %v311
  %v501 = vadd.f32 %v500, %v314
  %v502 = vadd.f32 %v501, %v317
  %v503 = vrot.slane %v502, 4
  %v504 = vadd.f32 %v502, %v503
  %v505 = vrot.slane %v504, 2
  %v506 = vadd.f32 %v504, %v505
  %v507 = vrot.slane %v506, 1
  %v508 = vadd.f32 %v506, %v507
  %v509 = vadd.f32 %v378, %v381
  %v510 = vadd.f32 %v509, %v384
  %v511 = vadd.f32 %v510, %v387
  %v512 = vadd.f32 %v511, %v390
  %v513 = vadd.f32 %v512, %v393
  %v514 = vadd.f32 %v513, %v396
  %v515 = vadd.f32 %v514, %v399
  %v516 = vrot.slane %v515, 4
  %v517 = vadd.f32 %v515, %v516
  %v518 = vrot.slane %v517, 2
  %v519 = vadd.f32 %v517, %v518
  %v520 = vrot.slane %v519, 1
  %v521 = vadd.f32 %v519, %v520
  %v522 = vadd.f32 %v460, %v463
  %v523 = vadd.f32 %v522, %v466
  %v524 = vadd.f32 %v523, %v469
  %v525 = vadd.f32 %v524, %v472
  %v526 = vadd.f32 %v525, %v475
  %v527 = vadd.f32 %v526, %v478
  %v528 = vadd.f32 %v527, %v481
  %v529 = vrot.slane %v528, 4
  %v530 = vadd.f32 %v528, %v529
  %v531 = vrot.slane %v530, 2
  %v532 = vadd.f32 %v530, %v531
  %v533 = vrot.slane %v532, 1
  %v534 = vadd.f32 %v532, %v533
  %v535 = vmul.f32 %v214, %v214
  %v536 = vmul.f32 %v296, %v296
  %v537 = vmul.f32 %v378, %v378
  %v538 = vmul.f32 %v460, %v460
  %v539 = vmul.f32 %v217, %v217
  %v540 = vmul.f32 %v299, %v299
  %v541 = vmul.f32 %v381, %v381
  %v542 = vmul.f32 %v463, %v463
  %v543 = vmul.f32 %v220, %v220
  %v544 = vmul.f32 %v302, %v302
  %v545 = vmul.f32 %v384, %v384
  %v546 = vmul.f32 %v466, %v466
  %v547 = vmul.f32 %v223, %v223
  %v548 = vmul.f32 %v305, %v305
  %v549 = vmul.f32 %v387, %v387
  %v550 = vmul.f32 %v469, %v469
  %v551 = vmul.f32 %v226, %v226
  %v552 = vmul.f32 %v308, %v308
  %v553 = vmul.f32 %v390, %v390
  %v554 = vmul.f32 %v472, %v472
  %v555 = vmul.f32 %v229, %v229
  %v556 = vmul.f32 %v311, %v311
  %v557 = vmul.f32 %v393, %v393
  %v558 = vmul.f32 %v475, %v475
  %v559 = vmul.f32 %v232, %v232
  %v560 = vmul.f32 %v314, %v314
  %v561 = vmul.f32 %v396, %v396
  %v562 = vmul.f32 %v478, %v478
  %v563 = vmul.f32 %v235, %v235
  %v564 = vmul.f32 %v317, %v317
  %v565 = vmul.f32 %v399, %v399
  %v566 = vmul.f32 %v481, %v481
  %v567 = vadd.f32 %v535, %v539
  %v568 = vadd.f32 %v567, %v543
  %v569 = vadd.f32 %v568, %v547
  %v570 = vadd.f32 %v569, %v551
  %v571 = vadd.f32 %v570, %v555
  %v572 = vadd.f32 %v571, %v559
  %v573 = vadd.f32 %v572, %v563
  %v574 = vrot.slane %v573, 4
  %v575 = vadd.f32 %v573, %v574
  %v576 = vrot.slane %v575, 2
  %v577 = vadd.f32 %v575, %v576
  %v578 = vrot.slane %v577, 1
  %v579 = vadd.f32 %v577, %v578
  %v580 = vadd.f32 %v536, %v540
  %v581 = vadd.f32 %v580, %v544
  %v582 = vadd.f32 %v581, %v548
  %v583 = vadd.f32 %v582, %v552
  %v584 = vadd.f32 %v583, %v556
  %v585 = vadd.f32 %v584, %v560
  %v586 = vadd.f32 %v585, %v564
  %v587 = vrot.slane %v586, 4
  %v588 = vadd.f32 %v586, %v587
  %v589 = vrot.slane %v588, 2
  %v590 = vadd.f32 %v588, %v589
  %v591 = vrot.slane %v590, 1
  %v592 = vadd.f32 %v590, %v591
  %v593 = vadd.f32 %v537, %v541
  %v594 = vadd.f32 %v593, %v545
  %v595 = vadd.f32 %v594, %v549
  %v596 = vadd.f32 %v595, %v553
  %v597 = vadd.f32 %v596, %v557
  %v598 = vadd.f32 %v597, %v561
  %v599 = vadd.f32 %v598, %v565
  %v600 = vrot.slane %v599, 4
  %v601 = vadd.f32 %v599, %v600
  %v602 = vrot.slane %v601, 2
  %v603 = vadd.f32 %v601, %v602
  %v604 = vrot.slane %v603, 1
  %v605 = vadd.f32 %v603, %v604
  %v606 = vadd.f32 %v538, %v542
  %v607 = vadd.f32 %v606, %v546
  %v608 = vadd.f32 %v607, %v550
  %v609 = vadd.f32 %v608, %v554
  %v610 = vadd.f32 %v609, %v558
  %v611 = vadd.f32 %v610, %v562
  %v612 = vadd.f32 %v611, %v566
  %v613 = vrot.slane %v612, 4
  %v614 = vadd.f32 %v612, %v613
  %v615 = vrot.slane %v614, 2
  %v616 = vadd.f32 %v614, %v615
  %v617 = vrot.slane %v616, 1
  %v618 = vadd.f32 %v616, %v617
  %vm619 = vcmask 1040384
  %v620 = vsel %vm619, %v495, %v579
  %v621 = vsel %vm619, %v508, %v592
  %v622 = vsel %vm619, %v521, %v605
  %v623 = vsel %vm619, %v534, %v618
  %v628 = vrot.slane %v621, 6
  %v629 = vrot.slane %v622, 4
  %v630 = vrot.slane %v623, 2
  %vm631 = vcmask 1041408
  %v632 = vsel %vm631, %v620, %v628
  %vm633 = vcmask 1045508
  %v634 = vsel %vm633, %v629, %v630
  %vm635 = vcmask 1043456
  %v636 = vsel %vm635, %v632, %v634
  %638 = vst [vmem:[%s2] sm:$0xff] %v636
  // Predicated region
  $region10: #{_upsampler_forward.6} parent=0 // pred_check
    _
  $region11: #{_upsampler_forward.6} parent=0 // pred_check_branch
    %640 = sbr.rel (0) target = $region13
  $region12: #{_upsampler_forward.6} parent=0 // pred_region
    _
  $region13: #{_upsampler_forward.6} parent=0 // pred_fallthru
    _
  // Predicated region
  $region14: #{_upsampler_forward.6} parent=0 // pred_check
    _
  $region15: #{_upsampler_forward.6} parent=0 // pred_check_branch
    %642 = sbr.rel (0) target = $region17
  $region16: #{_upsampler_forward.6} parent=0 // pred_region
    _
  $region17: #{_upsampler_forward.6} parent=0 // pred_fallthru
    _

// kernel: _upsampler_forward.7
$region0: #{_upsampler_forward.7}
  #allocation0 [shape = 'u32[]', space=smem, size = 0x4, offset = 0x4, fixed_abs, tag = 'smem constant byte address 0x4 - core index']
  #allocation1 [shape = 'u32[72,128]{1,0:T(1,128)}', space=vmem, size = 0x9000, scoped, tag = 'internal scratch']
  %s0 = inlined_call_operand.vmem [shape: f32[64,256], index: 0, kind: input, shape index: {}]
  %s1 = inlined_call_operand.vmem [shape: f32[256,512], index: 1, kind: input, shape index: {}]
  %s2 = inlined_call_operand.vmem [shape: f32[1,512], index: 2, kind: input, shape index: {}]
  %s3 = inlined_call_operand.vmem [shape: f32[1,512], index: 3, kind: input, shape index: {}]
  %s4 = inlined_call_operand.vmem [shape: f32[64,512], index: 4, kind: output, shape index: {}]
  %s5 = sld [smem:[#allocation0]]
  $region26: #{_upsampler_forward.7} parent=0
    _
  %s7 = ssub.s32 1, %s5
  %s8 = scalar_select 0, %s7, %s5
  // Predicated region
  $region2: #{_upsampler_forward.7} parent=0 // pred_check
    _
  $region3: #{_upsampler_forward.7} parent=0 // pred_check_branch
    %10 = sbr.rel (0) target = $region5
  $region4: #{_upsampler_forward.7} parent=0 // pred_region
    _
  $region5: #{_upsampler_forward.7} parent=0 // pred_fallthru
    _
  // Predicated region
  $region6: #{_upsampler_forward.7} parent=0 // pred_check
    _
  $region7: #{_upsampler_forward.7} parent=0 // pred_check_branch
    %12 = sbr.rel (0) target = $region9
  $region8: #{_upsampler_forward.7} parent=0 // pred_region
    _
  $region9: #{_upsampler_forward.7} parent=0 // pred_fallthru
    _
  // Predicated region
  $region10: #{_upsampler_forward.7} parent=0 // pred_check
    _
  $region11: #{_upsampler_forward.7} parent=0 // pred_check_branch
    %14 = sbr.rel (0) target = $region13
  $region12: #{_upsampler_forward.7} parent=0 // pred_region
    _
  $region13: #{_upsampler_forward.7} parent=0 // pred_fallthru
    _
  // Predicated region
  $region14: #{_upsampler_forward.7} parent=0 // pred_check
    _
  $region15: #{_upsampler_forward.7} parent=0 // pred_check_branch
    %16 = sbr.rel (0) target = $region17
  $region16: #{_upsampler_forward.7} parent=0 // pred_region
    _
  $region17: #{_upsampler_forward.7} parent=0 // pred_fallthru
    _
  %v17 = vld [vmem:[%s0] sm:$0xff]
  %v18 = vld [vmem:[%s0 + $0x8] sm:$0xff]
  %v19 = vld [vmem:[%s0 + $0x10] sm:$0xff]
  %v20 = vld [vmem:[%s0 + $0x18] sm:$0xff]
  %v21 = vld [vmem:[%s0 + $0x20] sm:$0xff]
  %v22 = vld [vmem:[%s0 + $0x28] sm:$0xff]
  %v23 = vld [vmem:[%s0 + $0x30] sm:$0xff]
  %v24 = vld [vmem:[%s0 + $0x38] sm:$0xff]
  %v25 = vld [vmem:[%s0 + $0x40] sm:$0xff]
  %v26 = vld [vmem:[%s0 + $0x48] sm:$0xff]
  %v27 = vld [vmem:[%s0 + $0x50] sm:$0xff]
  %v28 = vld [vmem:[%s0 + $0x58] sm:$0xff]
  %v29 = vld [vmem:[%s0 + $0x60] sm:$0xff]
  %v30 = vld [vmem:[%s0 + $0x68] sm:$0xff]
  %v31 = vld [vmem:[%s0 + $0x70] sm:$0xff]
  %v32 = vld [vmem:[%s0 + $0x78] sm:$0xff]
  %v33 = vld [vmem:[%s1] sm:$0xff]
  %v34 = vld [vmem:[%s1 + $0x8] sm:$0xff]
  %v35 = vld [vmem:[%s1 + $0x10] sm:$0xff]
  %v36 = vld [vmem:[%s1 + $0x18] sm:$0xff]
  %v37 = vld [vmem:[%s1 + $0x20] sm:$0xff]
  %v38 = vld [vmem:[%s1 + $0x28] sm:$0xff]
  %v39 = vld [vmem:[%s1 + $0x30] sm:$0xff]
  %v40 = vld [vmem:[%s1 + $0x38] sm:$0xff]
  %v41 = vld [vmem:[%s1 + $0x40] sm:$0xff]
  %v42 = vld [vmem:[%s1 + $0x48] sm:$0xff]
  %v43 = vld [vmem:[%s1 + $0x50] sm:$0xff]
  %v44 = vld [vmem:[%s1 + $0x58] sm:$0xff]
  %v45 = vld [vmem:[%s1 + $0x60] sm:$0xff]
  %v46 = vld [vmem:[%s1 + $0x68] sm:$0xff]
  %v47 = vld [vmem:[%s1 + $0x70] sm:$0xff]
  %v48 = vld [vmem:[%s1 + $0x78] sm:$0xff]
  %v49 = vld [vmem:[%s1 + $0x80] sm:$0xff]
  %v50 = vld [vmem:[%s1 + $0x88] sm:$0xff]
  %v51 = vld [vmem:[%s1 + $0x90] sm:$0xff]
  %v52 = vld [vmem:[%s1 + $0x98] sm:$0xff]
  %v53 = vld [vmem:[%s1 + $0xa0] sm:$0xff]
  %v54 = vld [vmem:[%s1 + $0xa8] sm:$0xff]
  %v55 = vld [vmem:[%s1 + $0xb0] sm:$0xff]
  %v56 = vld [vmem:[%s1 + $0xb8] sm:$0xff]
  %v57 = vld [vmem:[%s1 + $0xc0] sm:$0xff]
  %v58 = vld [vmem:[%s1 + $0xc8] sm:$0xff]
  %v59 = vld [vmem:[%s1 + $0xd0] sm:$0xff]
  %v60 = vld [vmem:[%s1 + $0xd8] sm:$0xff]
  %v61 = vld [vmem:[%s1 + $0xe0] sm:$0xff]
  %v62 = vld [vmem:[%s1 + $0xe8] sm:$0xff]
  %v63 = vld [vmem:[%s1 + $0xf0] sm:$0xff]
  %v64 = vld [vmem:[%s1 + $0xf8] sm:$0xff]
  %v65 = vld [vmem:[%s1 + $0x100] sm:$0xff]
  %v66 = vld [vmem:[%s1 + $0x108] sm:$0xff]
  %v67 = vld [vmem:[%s1 + $0x110] sm:$0xff]
  %v68 = vld [vmem:[%s1 + $0x118] sm:$0xff]
  %v69 = vld [vmem:[%s1 + $0x120] sm:$0xff]
  %v70 = vld [vmem:[%s1 + $0x128] sm:$0xff]
  %v71 = vld [vmem:[%s1 + $0x130] sm:$0xff]
  %v72 = vld [vmem:[%s1 + $0x138] sm:$0xff]
  %v73 = vld [vmem:[%s1 + $0x140] sm:$0xff]
  %v74 = vld [vmem:[%s1 + $0x148] sm:$0xff]
  %v75 = vld [vmem:[%s1 + $0x150] sm:$0xff]
  %v76 = vld [vmem:[%s1 + $0x158] sm:$0xff]
  %v77 = vld [vmem:[%s1 + $0x160] sm:$0xff]
  %v78 = vld [vmem:[%s1 + $0x168] sm:$0xff]
  %v79 = vld [vmem:[%s1 + $0x170] sm:$0xff]
  %v80 = vld [vmem:[%s1 + $0x178] sm:$0xff]
  %v81 = vld [vmem:[%s1 + $0x180] sm:$0xff]
  %v82 = vld [vmem:[%s1 + $0x188] sm:$0xff]
  %v83 = vld [vmem:[%s1 + $0x190] sm:$0xff]
  %v84 = vld [vmem:[%s1 + $0x198] sm:$0xff]
  %v85 = vld [vmem:[%s1 + $0x1a0] sm:$0xff]
  %v86 = vld [vmem:[%s1 + $0x1a8] sm:$0xff]
  %v87 = vld [vmem:[%s1 + $0x1b0] sm:$0xff]
  %v88 = vld [vmem:[%s1 + $0x1b8] sm:$0xff]
  %v89 = vld [vmem:[%s1 + $0x1c0] sm:$0xff]
  %v90 = vld [vmem:[%s1 + $0x1c8] sm:$0xff]
  %v91 = vld [vmem:[%s1 + $0x1d0] sm:$0xff]
  %v92 = vld [vmem:[%s1 + $0x1d8] sm:$0xff]
  %v93 = vld [vmem:[%s1 + $0x1e0] sm:$0xff]
  %v94 = vld [vmem:[%s1 + $0x1e8] sm:$0xff]
  %v95 = vld [vmem:[%s1 + $0x1f0] sm:$0xff]
  %v96 = vld [vmem:[%s1 + $0x1f8] sm:$0xff]
  %v97 = vld [vmem:[%s1 + $0x200] sm:$0xff]
  %v98 = vld [vmem:[%s1 + $0x208] sm:$0xff]
  %v99 = vld [vmem:[%s1 + $0x210] sm:$0xff]
  %v100 = vld [vmem:[%s1 + $0x218] sm:$0xff]
  %v101 = vld [vmem:[%s1 + $0x220] sm:$0xff]
  %v102 = vld [vmem:[%s1 + $0x228] sm:$0xff]
  %v103 = vld [vmem:[%s1 + $0x230] sm:$0xff]
  %v104 = vld [vmem:[%s1 + $0x238] sm:$0xff]
  %v105 = vld [vmem:[%s1 + $0x240] sm:$0xff]
  %v106 = vld [vmem:[%s1 + $0x248] sm:$0xff]
  %v107 = vld [vmem:[%s1 + $0x250] sm:$0xff]
  %v108 = vld [vmem:[%s1 + $0x258] sm:$0xff]
  %v109 = vld [vmem:[%s1 + $0x260] sm:$0xff]
  %v110 = vld [vmem:[%s1 + $0x268] sm:$0xff]
  %v111 = vld [vmem:[%s1 + $0x270] sm:$0xff]
  %v112 = vld [vmem:[%s1 + $0x278] sm:$0xff]
  %v113 = vld [vmem:[%s1 + $0x280] sm:$0xff]
  %v114 = vld [vmem:[%s1 + $0x288] sm:$0xff]
  %v115 = vld [vmem:[%s1 + $0x290] sm:$0xff]
  %v116 = vld [vmem:[%s1 + $0x298] sm:$0xff]
  %v117 = vld [vmem:[%s1 + $0x2a0] sm:$0xff]
  %v118 = vld [vmem:[%s1 + $0x2a8] sm:$0xff]
  %v119 = vld [vmem:[%s1 + $0x2b0] sm:$0xff]
  %v120 = vld [vmem:[%s1 + $0x2b8] sm:$0xff]
  %v121 = vld [vmem:[%s1 + $0x2c0] sm:$0xff]
  %v122 = vld [vmem:[%s1 + $0x2c8] sm:$0xff]
  %v123 = vld [vmem:[%s1 + $0x2d0] sm:$0xff]
  %v124 = vld [vmem:[%s1 + $0x2d8] sm:$0xff]
  %v125 = vld [vmem:[%s1 + $0x2e0] sm:$0xff]
  %v126 = vld [vmem:[%s1 + $0x2e8] sm:$0xff]
  %v127 = vld [vmem:[%s1 + $0x2f0] sm:$0xff]
  %v128 = vld [vmem:[%s1 + $0x2f8] sm:$0xff]
  %v129 = vld [vmem:[%s1 + $0x300] sm:$0xff]
  %v130 = vld [vmem:[%s1 + $0x308] sm:$0xff]
  %v131 = vld [vmem:[%s1 + $0x310] sm:$0xff]
  %v132 = vld [vmem:[%s1 + $0x318] sm:$0xff]
  %v133 = vld [vmem:[%s1 + $0x320] sm:$0xff]
  %v134 = vld [vmem:[%s1 + $0x328] sm:$0xff]
  %v135 = vld [vmem:[%s1 + $0x330] sm:$0xff]
  %v136 = vld [vmem:[%s1 + $0x338] sm:$0xff]
  %v137 = vld [vmem:[%s1 + $0x340] sm:$0xff]
  %v138 = vld [vmem:[%s1 + $0x348] sm:$0xff]
  %v139 = vld [vmem:[%s1 + $0x350] sm:$0xff]
  %v140 = vld [vmem:[%s1 + $0x358] sm:$0xff]
  %v141 = vld [vmem:[%s1 + $0x360] sm:$0xff]
  %v142 = vld [vmem:[%s1 + $0x368] sm:$0xff]
  %v143 = vld [vmem:[%s1 + $0x370] sm:$0xff]
  %v144 = vld [vmem:[%s1 + $0x378] sm:$0xff]
  %v145 = vld [vmem:[%s1 + $0x380] sm:$0xff]
  %v146 = vld [vmem:[%s1 + $0x388] sm:$0xff]
  %v147 = vld [vmem:[%s1 + $0x390] sm:$0xff]
  %v148 = vld [vmem:[%s1 + $0x398] sm:$0xff]
  %v149 = vld [vmem:[%s1 + $0x3a0] sm:$0xff]
  %v150 = vld [vmem:[%s1 + $0x3a8] sm:$0xff]
  %v151 = vld [vmem:[%s1 + $0x3b0] sm:$0xff]
  %v152 = vld [vmem:[%s1 + $0x3b8] sm:$0xff]
  %v153 = vld [vmem:[%s1 + $0x3c0] sm:$0xff]
  %v154 = vld [vmem:[%s1 + $0x3c8] sm:$0xff]
  %v155 = vld [vmem:[%s1 + $0x3d0] sm:$0xff]
  %v156 = vld [vmem:[%s1 + $0x3d8] sm:$0xff]
  %v157 = vld [vmem:[%s1 + $0x3e0] sm:$0xff]
  %v158 = vld [vmem:[%s1 + $0x3e8] sm:$0xff]
  %v159 = vld [vmem:[%s1 + $0x3f0] sm:$0xff]
  %v160 = vld [vmem:[%s1 + $0x3f8] sm:$0xff]
  %161 = vmatpush.msra.mxu0 %v93
  %162 = vmatpush.msra.mxu0 %v89
  %163 = vmatpush.msra.mxu0 %v85
  %164 = vmatpush.msra.mxu0 %v81
  %165 = vmatpush.msra.mxu0 %v77
  %166 = vmatpush.msra.mxu0 %v73
  %167 = vmatpush.msra.mxu0 %v69
  %168 = vmatpush.msra.mxu0 %v65
  %169 = vmatpush.msra.mxu0 %v61
  %170 = vmatpush.msra.mxu0 %v57
  %171 = vmatpush.msra.mxu0 %v53
  %172 = vmatpush.msra.mxu0 %v49
  %173 = vmatpush.msra.mxu0 %v45
  %174 = vmatpush.msra.mxu0 %v41
  %175 = vmatpush.msra.mxu0 %v37
  %176 = vmatpush.msra.mxu0 %v33
  %177 = vmatmul.f32.gmra.mxu0 %v17
  %v178 = vpop.f32.mrf.mxu0
  %v179 = vadd.f32 0.0, %v178
  %180 = vmatmul.f32.gmra.mxu0 %v19
  %v181 = vpop.f32.mrf.mxu0
  %v182 = vadd.f32 0.0, %v181
  %183 = vmatmul.f32.gmra.mxu0 %v21
  %v184 = vpop.f32.mrf.mxu0
  %v185 = vadd.f32 0.0, %v184
  %186 = vmatmul.f32.gmra.mxu0 %v23
  %v187 = vpop.f32.mrf.mxu0
  %v188 = vadd.f32 0.0, %v187
  %189 = vmatmul.f32.gmra.mxu0 %v25
  %v190 = vpop.f32.mrf.mxu0
  %v191 = vadd.f32 0.0, %v190
  %192 = vmatmul.f32.gmra.mxu0 %v27
  %v193 = vpop.f32.mrf.mxu0
  %v194 = vadd.f32 0.0, %v193
  %195 = vmatmul.f32.gmra.mxu0 %v29
  %v196 = vpop.f32.mrf.mxu0
  %v197 = vadd.f32 0.0, %v196
  %198 = vmatmul.f32.gmra.mxu0 %v31
  %v199 = vpop.f32.mrf.mxu0
  %v200 = vadd.f32 0.0, %v199
  %201 = vdwg.mxu0
  %202 = vmatpush.msra.mxu0 %v157
  %203 = vmatpush.msra.mxu0 %v153
  %204 = vmatpush.msra.mxu0 %v149
  %205 = vmatpush.msra.mxu0 %v145
  %206 = vmatpush.msra.mxu0 %v141
  %207 = vmatpush.msra.mxu0 %v137
  %208 = vmatpush.msra.mxu0 %v133
  %209 = vmatpush.msra.mxu0 %v129
  %210 = vmatpush.msra.mxu0 %v125
  %211 = vmatpush.msra.mxu0 %v121
  %212 = vmatpush.msra.mxu0 %v117
  %213 = vmatpush.msra.mxu0 %v113
  %214 = vmatpush.msra.mxu0 %v109
  %215 = vmatpush.msra.mxu0 %v105
  %216 = vmatpush.msra.mxu0 %v101
  %217 = vmatpush.msra.mxu0 %v97
  %218 = vmatmul.f32.gmra.mxu0 %v18
  %v219 = vpop.f32.mrf.mxu0
  %v220 = vadd.f32 %v179, %v219
  %221 = vmatmul.f32.gmra.mxu0 %v20
  %v222 = vpop.f32.mrf.mxu0
  %v223 = vadd.f32 %v182, %v222
  %224 = vmatmul.f32.gmra.mxu0 %v22
  %v225 = vpop.f32.mrf.mxu0
  %v226 = vadd.f32 %v185, %v225
  %227 = vmatmul.f32.gmra.mxu0 %v24
  %v228 = vpop.f32.mrf.mxu0
  %v229 = vadd.f32 %v188, %v228
  %230 = vmatmul.f32.gmra.mxu0 %v26
  %v231 = vpop.f32.mrf.mxu0
  %v232 = vadd.f32 %v191, %v231
  %233 = vmatmul.f32.gmra.mxu0 %v28
  %v234 = vpop.f32.mrf.mxu0
  %v235 = vadd.f32 %v194, %v234
  %236 = vmatmul.f32.gmra.mxu0 %v30
  %v237 = vpop.f32.mrf.mxu0
  %v238 = vadd.f32 %v197, %v237
  %239 = vmatmul.f32.gmra.mxu0 %v32
  %v240 = vpop.f32.mrf.mxu0
  %v241 = vadd.f32 %v200, %v240
  %242 = vdwg.mxu0
  %243 = vmatpush.msra.mxu0 %v94
  %244 = vmatpush.msra.mxu0 %v90
  %245 = vmatpush.msra.mxu0 %v86
  %246 = vmatpush.msra.mxu0 %v82
  %247 = vmatpush.msra.mxu0 %v78
  %248 = vmatpush.msra.mxu0 %v74
  %249 = vmatpush.msra.mxu0 %v70
  %250 = vmatpush.msra.mxu0 %v66
  %251 = vmatpush.msra.mxu0 %v62
  %252 = vmatpush.msra.mxu0 %v58
  %253 = vmatpush.msra.mxu0 %v54
  %254 = vmatpush.msra.mxu0 %v50
  %255 = vmatpush.msra.mxu0 %v46
  %256 = vmatpush.msra.mxu0 %v42
  %257 = vmatpush.msra.mxu0 %v38
  %258 = vmatpush.msra.mxu0 %v34
  %259 = vmatmul.f32.gmra.mxu0 %v17
  %v260 = vpop.f32.mrf.mxu0
  %v261 = vadd.f32 0.0, %v260
  %262 = vmatmul.f32.gmra.mxu0 %v19
  %v263 = vpop.f32.mrf.mxu0
  %v264 = vadd.f32 0.0, %v263
  %265 = vmatmul.f32.gmra.mxu0 %v21
  %v266 = vpop.f32.mrf.mxu0
  %v267 = vadd.f32 0.0, %v266
  %268 = vmatmul.f32.gmra.mxu0 %v23
  %v269 = vpop.f32.mrf.mxu0
  %v270 = vadd.f32 0.0, %v269
  %271 = vmatmul.f32.gmra.mxu0 %v25
  %v272 = vpop.f32.mrf.mxu0
  %v273 = vadd.f32 0.0, %v272
  %274 = vmatmul.f32.gmra.mxu0 %v27
  %v275 = vpop.f32.mrf.mxu0
  %v276 = vadd.f32 0.0, %v275
  %277 = vmatmul.f32.gmra.mxu0 %v29
  %v278 = vpop.f32.mrf.mxu0
  %v279 = vadd.f32 0.0, %v278
  %280 = vmatmul.f32.gmra.mxu0 %v31
  %v281 = vpop.f32.mrf.mxu0
  %v282 = vadd.f32 0.0, %v281
  %283 = vdwg.mxu0
  %284 = vmatpush.msra.mxu0 %v158
  %285 = vmatpush.msra.mxu0 %v154
  %286 = vmatpush.msra.mxu0 %v150
  %287 = vmatpush.msra.mxu0 %v146
  %288 = vmatpush.msra.mxu0 %v142
  %289 = vmatpush.msra.mxu0 %v138
  %290 = vmatpush.msra.mxu0 %v134
  %291 = vmatpush.msra.mxu0 %v130
  %292 = vmatpush.msra.mxu0 %v126
  %293 = vmatpush.msra.mxu0 %v122
  %294 = vmatpush.msra.mxu0 %v118
  %295 = vmatpush.msra.mxu0 %v114
  %296 = vmatpush.msra.mxu0 %v110
  %297 = vmatpush.msra.mxu0 %v106
  %298 = vmatpush.msra.mxu0 %v102
  %299 = vmatpush.msra.mxu0 %v98
  %300 = vmatmul.f32.gmra.mxu0 %v18
  %v301 = vpop.f32.mrf.mxu0
  %v302 = vadd.f32 %v261, %v301
  %303 = vmatmul.f32.gmra.mxu0 %v20
  %v304 = vpop.f32.mrf.mxu0
  %v305 = vadd.f32 %v264, %v304
  %306 = vmatmul.f32.gmra.mxu0 %v22
  %v307 = vpop.f32.mrf.mxu0
  %v308 = vadd.f32 %v267, %v307
  %309 = vmatmul.f32.gmra.mxu0 %v24
  %v310 = vpop.f32.mrf.mxu0
  %v311 = vadd.f32 %v270, %v310
  %312 = vmatmul.f32.gmra.mxu0 %v26
  %v313 = vpop.f32.mrf.mxu0
  %v314 = vadd.f32 %v273, %v313
  %315 = vmatmul.f32.gmra.mxu0 %v28
  %v316 = vpop.f32.mrf.mxu0
  %v317 = vadd.f32 %v276, %v316
  %318 = vmatmul.f32.gmra.mxu0 %v30
  %v319 = vpop.f32.mrf.mxu0
  %v320 = vadd.f32 %v279, %v319
  %321 = vmatmul.f32.gmra.mxu0 %v32
  %v322 = vpop.f32.mrf.mxu0
  %v323 = vadd.f32 %v282, %v322
  %324 = vdwg.mxu0
  %325 = vmatpush.msra.mxu0 %v95
  %326 = vmatpush.msra.mxu0 %v91
  %327 = vmatpush.msra.mxu0 %v87
  %328 = vmatpush.msra.mxu0 %v83
  %329 = vmatpush.msra.mxu0 %v79
  %330 = vmatpush.msra.mxu0 %v75
  %331 = vmatpush.msra.mxu0 %v71
  %332 = vmatpush.msra.mxu0 %v67
  %333 = vmatpush.msra.mxu0 %v63
  %334 = vmatpush.msra.mxu0 %v59
  %335 = vmatpush.msra.mxu0 %v55
  %336 = vmatpush.msra.mxu0 %v51
  %337 = vmatpush.msra.mxu0 %v47
  %338 = vmatpush.msra.mxu0 %v43
  %339 = vmatpush.msra.mxu0 %v39
  %340 = vmatpush.msra.mxu0 %v35
  %341 = vmatmul.f32.gmra.mxu0 %v17
  %v342 = vpop.f32.mrf.mxu0
  %v343 = vadd.f32 0.0, %v342
  %344 = vmatmul.f32.gmra.mxu0 %v19
  %v345 = vpop.f32.mrf.mxu0
  %v346 = vadd.f32 0.0, %v345
  %347 = vmatmul.f32.gmra.mxu0 %v21
  %v348 = vpop.f32.mrf.mxu0
  %v349 = vadd.f32 0.0, %v348
  %350 = vmatmul.f32.gmra.mxu0 %v23
  %v351 = vpop.f32.mrf.mxu0
  %v352 = vadd.f32 0.0, %v351
  %353 = vmatmul.f32.gmra.mxu0 %v25
  %v354 = vpop.f32.mrf.mxu0
  %v355 = vadd.f32 0.0, %v354
  %356 = vmatmul.f32.gmra.mxu0 %v27
  %v357 = vpop.f32.mrf.mxu0
  %v358 = vadd.f32 0.0, %v357
  %359 = vmatmul.f32.gmra.mxu0 %v29
  %v360 = vpop.f32.mrf.mxu0
  %v361 = vadd.f32 0.0, %v360
  %362 = vmatmul.f32.gmra.mxu0 %v31
  %v363 = vpop.f32.mrf.mxu0
  %v364 = vadd.f32 0.0, %v363
  %365 = vdwg.mxu0
  %366 = vmatpush.msra.mxu0 %v159
  %367 = vmatpush.msra.mxu0 %v155
  %368 = vmatpush.msra.mxu0 %v151
  %369 = vmatpush.msra.mxu0 %v147
  %370 = vmatpush.msra.mxu0 %v143
  %371 = vmatpush.msra.mxu0 %v139
  %372 = vmatpush.msra.mxu0 %v135
  %373 = vmatpush.msra.mxu0 %v131
  %374 = vmatpush.msra.mxu0 %v127
  %375 = vmatpush.msra.mxu0 %v123
  %376 = vmatpush.msra.mxu0 %v119
  %377 = vmatpush.msra.mxu0 %v115
  %378 = vmatpush.msra.mxu0 %v111
  %379 = vmatpush.msra.mxu0 %v107
  %380 = vmatpush.msra.mxu0 %v103
  %381 = vmatpush.msra.mxu0 %v99
  %382 = vmatmul.f32.gmra.mxu0 %v18
  %v383 = vpop.f32.mrf.mxu0
  %v384 = vadd.f32 %v343, %v383
  %385 = vmatmul.f32.gmra.mxu0 %v20
  %v386 = vpop.f32.mrf.mxu0
  %v387 = vadd.f32 %v346, %v386
  %388 = vmatmul.f32.gmra.mxu0 %v22
  %v389 = vpop.f32.mrf.mxu0
  %v390 = vadd.f32 %v349, %v389
  %391 = vmatmul.f32.gmra.mxu0 %v24
  %v392 = vpop.f32.mrf.mxu0
  %v393 = vadd.f32 %v352, %v392
  %394 = vmatmul.f32.gmra.mxu0 %v26
  %v395 = vpop.f32.mrf.mxu0
  %v396 = vadd.f32 %v355, %v395
  %397 = vmatmul.f32.gmra.mxu0 %v28
  %v398 = vpop.f32.mrf.mxu0
  %v399 = vadd.f32 %v358, %v398
  %400 = vmatmul.f32.gmra.mxu0 %v30
  %v401 = vpop.f32.mrf.mxu0
  %v402 = vadd.f32 %v361, %v401
  %403 = vmatmul.f32.gmra.mxu0 %v32
  %v404 = vpop.f32.mrf.mxu0
  %v405 = vadd.f32 %v364, %v404
  %406 = vdwg.mxu0
  %407 = vmatpush.msra.mxu0 %v96
  %408 = vmatpush.msra.mxu0 %v92
  %409 = vmatpush.msra.mxu0 %v88
  %410 = vmatpush.msra.mxu0 %v84
  %411 = vmatpush.msra.mxu0 %v80
  %412 = vmatpush.msra.mxu0 %v76
  %413 = vmatpush.msra.mxu0 %v72
  %414 = vmatpush.msra.mxu0 %v68
  %415 = vmatpush.msra.mxu0 %v64
  %416 = vmatpush.msra.mxu0 %v60
  %417 = vmatpush.msra.mxu0 %v56
  %418 = vmatpush.msra.mxu0 %v52
  %419 = vmatpush.msra.mxu0 %v48
  %420 = vmatpush.msra.mxu0 %v44
  %421 = vmatpush.msra.mxu0 %v40
  %422 = vmatpush.msra.mxu0 %v36
  %423 = vmatmul.f32.gmra.mxu0 %v17
  %v424 = vpop.f32.mrf.mxu0
  %v425 = vadd.f32 0.0, %v424
  %426 = vmatmul.f32.gmra.mxu0 %v19
  %v427 = vpop.f32.mrf.mxu0
  %v428 = vadd.f32 0.0, %v427
  %429 = vmatmul.f32.gmra.mxu0 %v21
  %v430 = vpop.f32.mrf.mxu0
  %v431 = vadd.f32 0.0, %v430
  %432 = vmatmul.f32.gmra.mxu0 %v23
  %v433 = vpop.f32.mrf.mxu0
  %v434 = vadd.f32 0.0, %v433
  %435 = vmatmul.f32.gmra.mxu0 %v25
  %v436 = vpop.f32.mrf.mxu0
  %v437 = vadd.f32 0.0, %v436
  %438 = vmatmul.f32.gmra.mxu0 %v27
  %v439 = vpop.f32.mrf.mxu0
  %v440 = vadd.f32 0.0, %v439
  %441 = vmatmul.f32.gmra.mxu0 %v29
  %v442 = vpop.f32.mrf.mxu0
  %v443 = vadd.f32 0.0, %v442
  %444 = vmatmul.f32.gmra.mxu0 %v31
  %v445 = vpop.f32.mrf.mxu0
  %v446 = vadd.f32 0.0, %v445
  %447 = vdwg.mxu0
  %448 = vmatpush.msra.mxu0 %v160
  %449 = vmatpush.msra.mxu0 %v156
  %450 = vmatpush.msra.mxu0 %v152
  %451 = vmatpush.msra.mxu0 %v148
  %452 = vmatpush.msra.mxu0 %v144
  %453 = vmatpush.msra.mxu0 %v140
  %454 = vmatpush.msra.mxu0 %v136
  %455 = vmatpush.msra.mxu0 %v132
  %456 = vmatpush.msra.mxu0 %v128
  %457 = vmatpush.msra.mxu0 %v124
  %458 = vmatpush.msra.mxu0 %v120
  %459 = vmatpush.msra.mxu0 %v116
  %460 = vmatpush.msra.mxu0 %v112
  %461 = vmatpush.msra.mxu0 %v108
  %462 = vmatpush.msra.mxu0 %v104
  %463 = vmatpush.msra.mxu0 %v100
  %464 = vmatmul.f32.gmra.mxu0 %v18
  %v465 = vpop.f32.mrf.mxu0
  %v466 = vadd.f32 %v425, %v465
  %467 = vmatmul.f32.gmra.mxu0 %v20
  %v468 = vpop.f32.mrf.mxu0
  %v469 = vadd.f32 %v428, %v468
  %470 = vmatmul.f32.gmra.mxu0 %v22
  %v471 = vpop.f32.mrf.mxu0
  %v472 = vadd.f32 %v431, %v471
  %473 = vmatmul.f32.gmra.mxu0 %v24
  %v474 = vpop.f32.mrf.mxu0
  %v475 = vadd.f32 %v434, %v474
  %476 = vmatmul.f32.gmra.mxu0 %v26
  %v477 = vpop.f32.mrf.mxu0
  %v478 = vadd.f32 %v437, %v477
  %479 = vmatmul.f32.gmra.mxu0 %v28
  %v480 = vpop.f32.mrf.mxu0
  %v481 = vadd.f32 %v440, %v480
  %482 = vmatmul.f32.gmra.mxu0 %v30
  %v483 = vpop.f32.mrf.mxu0
  %v484 = vadd.f32 %v443, %v483
  %485 = vmatmul.f32.gmra.mxu0 %v32
  %v486 = vpop.f32.mrf.mxu0
  %v487 = vadd.f32 %v446, %v486
  %488 = vdwg.mxu0
  %v489 = vld [vmem:[%s2] sm:$0xf]
  %v491 = vperm.slane %v489, 0
  %v492 = vperm.slane %v489, 1
  %v493 = vperm.slane %v489, 2
  %v494 = vperm.slane %v489, 3
  %v499 = vmul.f32 %v220, %v491
  %v500 = vmul.f32 %v302, %v492
  %v501 = vmul.f32 %v384, %v493
  %v502 = vmul.f32 %v466, %v494
  %v503 = vmul.f32 %v223, %v491
  %v504 = vmul.f32 %v305, %v492
  %v505 = vmul.f32 %v387, %v493
  %v506 = vmul.f32 %v469, %v494
  %v507 = vmul.f32 %v226, %v491
  %v508 = vmul.f32 %v308, %v492
  %v509 = vmul.f32 %v390, %v493
  %v510 = vmul.f32 %v472, %v494
  %v511 = vmul.f32 %v229, %v491
  %v512 = vmul.f32 %v311, %v492
  %v513 = vmul.f32 %v393, %v493
  %v514 = vmul.f32 %v475, %v494
  %v515 = vmul.f32 %v232, %v491
  %v516 = vmul.f32 %v314, %v492
  %v517 = vmul.f32 %v396, %v493
  %v518 = vmul.f32 %v478, %v494
  %v519 = vmul.f32 %v235, %v491
  %v520 = vmul.f32 %v317, %v492
  %v521 = vmul.f32 %v399, %v493
  %v522 = vmul.f32 %v481, %v494
  %v523 = vmul.f32 %v238, %v491
  %v524 = vmul.f32 %v320, %v492
  %v525 = vmul.f32 %v402, %v493
  %v526 = vmul.f32 %v484, %v494
  %v527 = vmul.f32 %v241, %v491
  %v528 = vmul.f32 %v323, %v492
  %v529 = vmul.f32 %v405, %v493
  %v530 = vmul.f32 %v487, %v494
  %v531 = vld [vmem:[%s3] sm:$0xf]
  %v533 = vperm.slane %v531, 0
  %v534 = vperm.slane %v531, 1
  %v535 = vperm.slane %v531, 2
  %v536 = vperm.slane %v531, 3
  %v541 = vadd.f32 %v499, %v533
  %v542 = vadd.f32 %v500, %v534
  %v543 = vadd.f32 %v501, %v535
  %v544 = vadd.f32 %v502, %v536
  %v545 = vadd.f32 %v503, %v533
  %v546 = vadd.f32 %v504, %v534
  %v547 = vadd.f32 %v505, %v535
  %v548 = vadd.f32 %v506, %v536
  %v549 = vadd.f32 %v507, %v533
  %v550 = vadd.f32 %v508, %v534
  %v551 = vadd.f32 %v509, %v535
  %v552 = vadd.f32 %v510, %v536
  %v553 = vadd.f32 %v511, %v533
  %v554 = vadd.f32 %v512, %v534
  %v555 = vadd.f32 %v513, %v535
  %v556 = vadd.f32 %v514, %v536
  %v557 = vadd.f32 %v515, %v533
  %v558 = vadd.f32 %v516, %v534
  %v559 = vadd.f32 %v517, %v535
  %v560 = vadd.f32 %v518, %v536
  %v561 = vadd.f32 %v519, %v533
  %v562 = vadd.f32 %v520, %v534
  %v563 = vadd.f32 %v521, %v535
  %v564 = vadd.f32 %v522, %v536
  %v565 = vadd.f32 %v523, %v533
  %v566 = vadd.f32 %v524, %v534
  %v567 = vadd.f32 %v525, %v535
  %v568 = vadd.f32 %v526, %v536
  %v569 = vadd.f32 %v527, %v533
  %v570 = vadd.f32 %v528, %v534
  %v571 = vadd.f32 %v529, %v535
  %v572 = vadd.f32 %v530, %v536
  %v573 = vmax.f32 %v541, 0.0
  %v574 = vmax.f32 %v542, 0.0
  %v575 = vmax.f32 %v543, 0.0
  %v576 = vmax.f32 %v544, 0.0
  %v577 = vmax.f32 %v545, 0.0
  %v578 = vmax.f32 %v546, 0.0
  %v579 = vmax.f32 %v547, 0.0
  %v580 = vmax.f32 %v548, 0.0
  %v581 = vmax.f32 %v549, 0.0
  %v582 = vmax.f32 %v550, 0.0
  %v583 = vmax.f32 %v551, 0.0
  %v584 = vmax.f32 %v552, 0.0
  %v585 = vmax.f32 %v553, 0.0
  %v586 = vmax.f32 %v554, 0.0
  %v587 = vmax.f32 %v555, 0.0
  %v588 = vmax.f32 %v556, 0.0
  %v589 = vmax.f32 %v557, 0.0
  %v590 = vmax.f32 %v558, 0.0
  %v591 = vmax.f32 %v559, 0.0
  %v592 = vmax.f32 %v560, 0.0
  %v593 = vmax.f32 %v561, 0.0
  %v594 = vmax.f32 %v562, 0.0
  %v595 = vmax.f32 %v563, 0.0
  %v596 = vmax.f32 %v564, 0.0
  %v597 = vmax.f32 %v565, 0.0
  %v598 = vmax.f32 %v566, 0.0
  %v599 = vmax.f32 %v567, 0.0
  %v600 = vmax.f32 %v568, 0.0
  %v601 = vmax.f32 %v569, 0.0
  %v602 = vmax.f32 %v570, 0.0
  %v603 = vmax.f32 %v571, 0.0
  %v604 = vmax.f32 %v572, 0.0
  %605 = vst [vmem:[%s4] sm:$0xff] %v573
  %606 = vst [vmem:[%s4 + $0x8] sm:$0xff] %v574
  %607 = vst [vmem:[%s4 + $0x10] sm:$0xff] %v575
  %608 = vst [vmem:[%s4 + $0x18] sm:$0xff] %v576
  %609 = vst [vmem:[%s4 + $0x20] sm:$0xff] %v577
  %610 = vst [vmem:[%s4 + $0x28] sm:$0xff] %v578
  %611 = vst [vmem:[%s4 + $0x30] sm:$0xff] %v579
  %612 = vst [vmem:[%s4 + $0x38] sm:$0xff] %v580
  %613 = vst [vmem:[%s4 + $0x40] sm:$0xff] %v581
  %614 = vst [vmem:[%s4 + $0x48] sm:$0xff] %v582
  %615 = vst [vmem:[%s4 + $0x50] sm:$0xff] %v583
  %616 = vst [vmem:[%s4 + $0x58] sm:$0xff] %v584
  %617 = vst [vmem:[%s4 + $0x60] sm:$0xff] %v585
  %618 = vst [vmem:[%s4 + $0x68] sm:$0xff] %v586
  %619 = vst [vmem:[%s4 + $0x70] sm:$0xff] %v587
  %620 = vst [vmem:[%s4 + $0x78] sm:$0xff] %v588
  %621 = vst [vmem:[%s4 + $0x80] sm:$0xff] %v589
  %622 = vst [vmem:[%s4 + $0x88] sm:$0xff] %v590
  %623 = vst [vmem:[%s4 + $0x90] sm:$0xff] %v591
  %624 = vst [vmem:[%s4 + $0x98] sm:$0xff] %v592
  %625 = vst [vmem:[%s4 + $0xa0] sm:$0xff] %v593
  %626 = vst [vmem:[%s4 + $0xa8] sm:$0xff] %v594
  %627 = vst [vmem:[%s4 + $0xb0] sm:$0xff] %v595
  %628 = vst [vmem:[%s4 + $0xb8] sm:$0xff] %v596
  %629 = vst [vmem:[%s4 + $0xc0] sm:$0xff] %v597
  %630 = vst [vmem:[%s4 + $0xc8] sm:$0xff] %v598
  %631 = vst [vmem:[%s4 + $0xd0] sm:$0xff] %v599
  %632 = vst [vmem:[%s4 + $0xd8] sm:$0xff] %v600
  %633 = vst [vmem:[%s4 + $0xe0] sm:$0xff] %v601
  %634 = vst [vmem:[%s4 + $0xe8] sm:$0xff] %v602
  %635 = vst [vmem:[%s4 + $0xf0] sm:$0xff] %v603
  %636 = vst [vmem:[%s4 + $0xf8] sm:$0xff] %v604
  // Predicated region
  $region18: #{_upsampler_forward.7} parent=0 // pred_check
    _
  $region19: #{_upsampler_forward.7} parent=0 // pred_check_branch
    %638 = sbr.rel (0) target = $region21
  $region20: #{_upsampler_forward.7} parent=0 // pred_region
    _
  $region21: #{_upsampler_forward.7} parent=0 // pred_fallthru
    _
  // Predicated region
  $region22: #{_upsampler_forward.7} parent=0 // pred_check
    _
  $region23: #{_upsampler_forward.7} parent=0 // pred_check_branch
    %640 = sbr.rel (0) target = $region25
  $region24: #{_upsampler_forward.7} parent=0 // pred_region
    _
  $region25: #{_upsampler_forward.7} parent=0 // pred_fallthru
    _

</llo_original>
